<compile_context>
chip_gen: v6e
topology: v6e:2x2x1
jax: 0.10.0
libtpu: 0.0.40
codegen_flags: <defaults>
</compile_context>

<pallas_src>
import functools

import jax
import jax.numpy as jnp
from jax.experimental import pallas as pl
from jax.experimental.pallas import tpu as pltpu


def _layer_specs(in_c, out_c, mid_c, layers):
    """Replicates Encoder._build_layers: (cin, cout, stride) per block."""
    specs = [(in_c, out_c, 1)]                 # conv_block(in, out)
    for i in range(layers - 1):
        if i == 0:
            specs.append((out_c, mid_c, 1))    # conv_block(out, mid)
        else:
            specs.append((mid_c, mid_c, 2))    # conv_down_block(mid, mid)
    return specs


def _pick_images_per_step(n):
    """Images per grid step: amortize step overhead but keep >= 2 grid steps
    (DMA double-buffering + both v7x TensorCores busy)."""
    for nb in (4, 2, 1):
        if n % nb == 0 and n // nb >= 2:
            return nb
    return 1


def _make_encoder_kernel(layer_meta, nb, H, W, cmax):
    """Fused kernel body.

    layer_meta: list of (cin, cout, stride, h_in, w_in, h_out, w_out), static.
    Kernel refs: (x, [w, scale, bias] * n_layers, out, buf0, buf1).
    Scratch bufs are (nb, H+2, W+2, cmax); each layer writes only the interior
    and zeroes the 1-pixel ring strips around it, which IS the conv padding
    for the next layer.
    """
    n_layers = len(layer_meta)

    def kernel(*refs):
        x_ref = refs[0]
        p_refs = refs[1:1 + 3 * n_layers]
        o_ref = refs[1 + 3 * n_layers]
        buf0, buf1 = refs[2 + 3 * n_layers:]

        def zero_ring(buf, h, w):
            # Zero only the 4 ring strips around an (h, w) interior at (1, 1).
            zrow = jnp.zeros((nb, 1, w + 2, cmax), jnp.float32)
            zcol = jnp.zeros((nb, h + 2, 1, cmax), jnp.float32)
            buf[:, 0:1, 0:w + 2, :] = zrow
            buf[:, h + 1:h + 2, 0:w + 2, :] = zrow
            buf[:, 0:h + 2, 0:1, :] = zcol
            buf[:, 0:h + 2, w + 1:w + 2, :] = zcol

        # Padding ring for layer 0; every read window below is fully covered
        # by writes in this same grid step (no persistence assumptions, so the
        # batch grid can be sharded "parallel" across cores safely).
        zero_ring(buf0, H, W)

        # Stage the (lane-dense) (cin, H*W) input block into the interior.
        cin0 = layer_meta[0][0]
        for n in range(nb):
            img = x_ref[n].astype(jnp.float32)            # (cin0, H*W)
            buf0[n, 1:1 + H, 1:1 + W, 0:cin0] = img.T.reshape(H, W, cin0)

        bufs = (buf0, buf1)
        for li, (cin, cout, stride, h_in, w_in, h_out, w_out) in enumerate(layer_meta):
            src = bufs[li % 2]
            w_ref = p_refs[3 * li]       # (9*cin, cout)
            s_ref = p_refs[3 * li + 1]   # (1, cout)  folded BN scale
            b_ref = p_refs[3 * li + 2]   # (1, cout)  folded BN/conv bias

            # im2col: 9 shifted windows (strided for the stride-2 down block)
            # concatenated along channels -> one K = 9*cin MXU matmul.
            parts = []
            for kh in range(3):
                for kw in range(3):
                    if stride == 1:
                        parts.append(src[:, kh:kh + h_out, kw:kw + w_out, 0:cin])
                    else:
                        parts.append(src[:, pl.ds(kh, h_out, 2),
                                         pl.ds(kw, w_out, 2), 0:cin])
            slab = jnp.concatenate(parts, axis=-1)         # (nb, h_out, w_out, 9*cin)
            slab = slab.reshape(nb * h_out * w_out, 9 * cin)

            acc = jnp.dot(slab, w_ref[...], preferred_element_type=jnp.float32)
            y = jnp.maximum(acc * s_ref[...] + b_ref[...], 0.0)   # (M, cout)

            if li == n_layers - 1:
                # Lane-dense output store: (cout, h*w) per image.
                hw = h_out * w_out
                for n in range(nb):
                    o_ref[n] = y[n * hw:(n + 1) * hw].T.astype(o_ref.dtype)
            else:
                dst = bufs[(li + 1) % 2]
                zero_ring(dst, h_out, w_out)               # padding for next layer
                dst[:, 1:1 + h_out, 1:1 + w_out, 0:cout] = (
                    y.reshape(nb, h_out, w_out, cout))

    return kernel


def _build_encoder_call(specs, N, nb, H, W, dtype):
    """Constructs the single fused pallas_call for the whole encoder."""
    layer_meta = []
    h, w = H, W
    for (cin, cout, stride) in specs:
        h_out = (h - 1) // stride + 1          # conv(k=3, pad=1, stride)
        w_out = (w - 1) // stride + 1
        layer_meta.append((cin, cout, stride, h, w, h_out, w_out))
        h, w = h_out, w_out
    h_f, w_f, c_f = h, w, specs[-1][1]
    cmax = max(max(ci, co) for ci, co, _ in specs)

    kernel = _make_encoder_kernel(layer_meta, nb, H, W, cmax)

    in_specs = [pl.BlockSpec((nb, specs[0][0], H * W), lambda i: (i, 0, 0))]
    for (cin, cout, _) in specs:
        in_specs.append(pl.BlockSpec((9 * cin, cout), lambda i: (0, 0)))
        in_specs.append(pl.BlockSpec((1, cout), lambda i: (0, 0)))
        in_specs.append(pl.BlockSpec((1, cout), lambda i: (0, 0)))

    # Advisory cost estimate (helps XLA schedule around the custom call).
    flops = 0
    for (cin, cout, stride, h_in, w_in, h_out, w_out) in layer_meta:
        flops += 2 * h_out * w_out * 9 * cin * cout
    flops *= N
    bytes_accessed = N * (specs[0][0] * H * W + c_f * h_f * w_f) * 4
    for (cin, cout, _) in specs:
        bytes_accessed += (9 * cin * cout + 2 * cout) * 4

    call = pl.pallas_call(
        kernel,
        out_shape=jax.ShapeDtypeStruct((N, c_f, h_f * w_f), dtype),
        grid_spec=pltpu.PrefetchScalarGridSpec(
            num_scalar_prefetch=0,
            grid=(N // nb,),                   # nb images per grid step
            in_specs=in_specs,
            out_specs=pl.BlockSpec((nb, c_f, h_f * w_f), lambda i: (i, 0, 0)),
            scratch_shapes=[
                pltpu.VMEM((nb, H + 2, W + 2, cmax), jnp.float32),   # ping
                pltpu.VMEM((nb, H + 2, W + 2, cmax), jnp.float32),   # pong
            ],
        ),
        compiler_params=pltpu.CompilerParams(
            dimension_semantics=("parallel",)),
        cost_estimate=pl.CostEstimate(
            flops=flops, transcendentals=0, bytes_accessed=bytes_accessed),
    )
    return call, (h_f, w_f, c_f)


def encoder_forward(x_nchw, params, *, in_c, out_c, mid_c, layers):
    """Forward pass of Encoder. Input/output NCHW like the PyTorch module."""
    specs = _layer_specs(in_c, out_c, mid_c, layers)
    N, C, H, W = x_nchw.shape
    assert C == in_c
    nb = _pick_images_per_step(N)
    assert N % nb == 0

    call, (h_f, w_f, c_f) = _build_encoder_call(specs, N, nb, H, W, x_nchw.dtype)

    x = x_nchw.reshape(N, in_c, H * W)         # lane-dense input block, no transpose
    flat = []
    for p, (ci, co, _) in zip(params, specs):
        flat += [p["w"].reshape(9 * ci, co), p["scale"], p["bias"]]
    out = call(x, *flat)                       # (N, c_f, h_f*w_f)
    return out.reshape(N, c_f, h_f, w_f)       # NCHW, no transpose needed


def init_encoder_params(key, in_c, out_c, mid_c, layers, eps=1e-5):
    """Deterministic synthetic parameters; BN folded to (scale, bias).
    Weights are HWIO (3, 3, cin, cout)."""
    params = []
    for (ci, co, _) in _layer_specs(in_c, out_c, mid_c, layers):
        key, k1, k2, k3, k4, k5, k6 = jax.random.split(key, 7)
        fan_in = ci * 9
        w = jax.random.normal(k1, (3, 3, ci, co), jnp.float32) / jnp.sqrt(fan_in)
        b = 0.01 * jax.random.normal(k2, (co,), jnp.float32)            # conv bias
        gamma = 1.0 + 0.1 * jax.random.normal(k3, (co,), jnp.float32)   # BN weight
        beta = 0.1 * jax.random.normal(k4, (co,), jnp.float32)          # BN bias
        r_mean = 0.1 * jax.random.normal(k5, (co,), jnp.float32)
        r_var = 1.0 + 0.1 * jax.random.uniform(k6, (co,), jnp.float32)
        scale = gamma / jnp.sqrt(r_var + eps)
        bias = (b - r_mean) * scale + beta
        params.append(dict(w=w, scale=scale.reshape(1, co), bias=bias.reshape(1, co)))
    return params


if __name__ == "__main__":
    # Encoder(in_channel=4, out_channel=8, mid_channel=16, layers=3)
    IN_C, OUT_C, MID_C, LAYERS = 4, 8, 16, 3
    N, H, W = 2, 16, 16

    key = jax.random.PRNGKey(0)
    k_x, k_p = jax.random.split(key)
    x = jax.random.normal(k_x, (N, IN_C, H, W), jnp.float32)
    params = init_encoder_params(k_p, IN_C, OUT_C, MID_C, LAYERS)

    fwd = jax.jit(functools.partial(
        encoder_forward, in_c=IN_C, out_c=OUT_C, mid_c=MID_C, layers=LAYERS))
    out = jax.block_until_ready(fwd(x, params))

    # conv_block -> (2,8,16,16) -> conv_block -> (2,16,16,16)
    # -> conv_down_block (stride 2) -> (2,16,8,8)
    assert out.shape == (N, MID_C, H // 2, W // 2), out.shape
    assert bool(jnp.all(jnp.isfinite(out)))

    print("KERNEL_OK")
</pallas_src>

<mosaic_0001>
module attributes {stable_mosaic.version = 11 : i64} {
  func.func @kernel(%arg0: i32, %arg1: memref<1x4x256xf32, #tpu.memory_space<vmem>>, %arg2: memref<36x8xf32, #tpu.memory_space<vmem>>, %arg3: memref<1x8xf32, #tpu.memory_space<vmem>>, %arg4: memref<1x8xf32, #tpu.memory_space<vmem>>, %arg5: memref<72x16xf32, #tpu.memory_space<vmem>>, %arg6: memref<1x16xf32, #tpu.memory_space<vmem>>, %arg7: memref<1x16xf32, #tpu.memory_space<vmem>>, %arg8: memref<144x16xf32, #tpu.memory_space<vmem>>, %arg9: memref<1x16xf32, #tpu.memory_space<vmem>>, %arg10: memref<1x16xf32, #tpu.memory_space<vmem>>, %arg11: memref<1x16x64xf32, #tpu.memory_space<vmem>>, %arg12: memref<1x18x18x16xf32, #tpu.memory_space<vmem>>, %arg13: memref<1x18x18x16xf32, #tpu.memory_space<vmem>>) attributes {dimension_semantics = [#tpu.dimension_semantics<parallel>], iteration_bounds = array<i64: 2>, scalar_prefetch = 0 : i64, scratch_operands = 2 : i64, tpu.core_type = #tpu.core_type<tc>, window_params = [{transform_indices = @transform_0, window_bounds = array<i64: 1, 4, 256>}, {pipeline_mode = #tpu.pipeline_mode<synchronous>, transform_indices = @transform_1, window_bounds = array<i64: 36, 8>}, {pipeline_mode = #tpu.pipeline_mode<synchronous>, transform_indices = @transform_2, window_bounds = array<i64: 1, 8>}, {pipeline_mode = #tpu.pipeline_mode<synchronous>, transform_indices = @transform_3, window_bounds = array<i64: 1, 8>}, {pipeline_mode = #tpu.pipeline_mode<synchronous>, transform_indices = @transform_4, window_bounds = array<i64: 72, 16>}, {pipeline_mode = #tpu.pipeline_mode<synchronous>, transform_indices = @transform_5, window_bounds = array<i64: 1, 16>}, {pipeline_mode = #tpu.pipeline_mode<synchronous>, transform_indices = @transform_6, window_bounds = array<i64: 1, 16>}, {pipeline_mode = #tpu.pipeline_mode<synchronous>, transform_indices = @transform_7, window_bounds = array<i64: 144, 16>}, {pipeline_mode = #tpu.pipeline_mode<synchronous>, transform_indices = @transform_8, window_bounds = array<i64: 1, 16>}, {pipeline_mode = #tpu.pipeline_mode<synchronous>, transform_indices = @transform_9, window_bounds = array<i64: 1, 16>}, {transform_indices = @transform_10, window_bounds = array<i64: 1, 16, 64>}]} {
    %cst = arith.constant 0.000000e+00 : f32
    %0 = vector.broadcast %cst : f32 to vector<1x1x18x16xf32>
    %cst_0 = arith.constant 0.000000e+00 : f32
    %1 = vector.broadcast %cst_0 : f32 to vector<1x18x1x16xf32>
    %c0 = arith.constant 0 : index
    %c0_1 = arith.constant 0 : index
    %c0_2 = arith.constant 0 : index
    %c0_3 = arith.constant 0 : index
    %2 = vector.load %arg12[%c0, %c0_1, %c0_2, %c0_3] : memref<1x18x18x16xf32, #tpu.memory_space<vmem>>, vector<1x1x18x16xf32>
    tpu.vector_store %arg12[%c0, %c0_1, %c0_2, %c0_3], %0 {strides = array<i32>} : memref<1x18x18x16xf32, #tpu.memory_space<vmem>>, vector<1x1x18x16xf32>,
    %c0_4 = arith.constant 0 : index
    %c17 = arith.constant 17 : index
    %c0_5 = arith.constant 0 : index
    %c0_6 = arith.constant 0 : index
    %3 = vector.load %arg12[%c0_4, %c17, %c0_5, %c0_6] : memref<1x18x18x16xf32, #tpu.memory_space<vmem>>, vector<1x1x18x16xf32>
    tpu.vector_store %arg12[%c0_4, %c17, %c0_5, %c0_6], %0 {strides = array<i32>} : memref<1x18x18x16xf32, #tpu.memory_space<vmem>>, vector<1x1x18x16xf32>,
    %c0_7 = arith.constant 0 : index
    %c0_8 = arith.constant 0 : index
    %c0_9 = arith.constant 0 : index
    %c0_10 = arith.constant 0 : index
    %4 = vector.load %arg12[%c0_7, %c0_8, %c0_9, %c0_10] : memref<1x18x18x16xf32, #tpu.memory_space<vmem>>, vector<1x18x1x16xf32>
    tpu.vector_store %arg12[%c0_7, %c0_8, %c0_9, %c0_10], %1 {strides = array<i32>} : memref<1x18x18x16xf32, #tpu.memory_space<vmem>>, vector<1x18x1x16xf32>,
    %c0_11 = arith.constant 0 : index
    %c0_12 = arith.constant 0 : index
    %c17_13 = arith.constant 17 : index
    %c0_14 = arith.constant 0 : index
    %5 = vector.load %arg12[%c0_11, %c0_12, %c17_13, %c0_14] : memref<1x18x18x16xf32, #tpu.memory_space<vmem>>, vector<1x18x1x16xf32>
    tpu.vector_store %arg12[%c0_11, %c0_12, %c17_13, %c0_14], %1 {strides = array<i32>} : memref<1x18x18x16xf32, #tpu.memory_space<vmem>>, vector<1x18x1x16xf32>,
    %c0_15 = arith.constant 0 : index
    %c0_16 = arith.constant 0 : index
    %c0_17 = arith.constant 0 : index
    %6 = vector.load %arg1[%c0_15, %c0_16, %c0_17] : memref<1x4x256xf32, #tpu.memory_space<vmem>>, vector<1x4x256xf32>
    %7 = vector.shape_cast %6 : vector<1x4x256xf32> to vector<4x256xf32>
    %8 = tpu.transpose %7, [1, 0] : vector<4x256xf32> -> vector<256x4xf32>
    %9 = vector.shape_cast %8 : vector<256x4xf32> to vector<16x16x4xf32>
    %c0_18 = arith.constant 0 : index
    %c1 = arith.constant 1 : index
    %c1_19 = arith.constant 1 : index
    %c0_20 = arith.constant 0 : index
    %10 = vector.load %arg12[%c0_18, %c1, %c1_19, %c0_20] : memref<1x18x18x16xf32, #tpu.memory_space<vmem>>, vector<1x16x16x4xf32>
    %11 = vector.shape_cast %10 : vector<1x16x16x4xf32> to vector<16x16x4xf32>
    %12 = vector.shape_cast %9 : vector<16x16x4xf32> to vector<1x16x16x4xf32>
    tpu.vector_store %arg12[%c0_18, %c1, %c1_19, %c0_20], %12 {strides = array<i32>} : memref<1x18x18x16xf32, #tpu.memory_space<vmem>>, vector<1x16x16x4xf32>,
    %c0_21 = arith.constant 0 : index
    %c0_22 = arith.constant 0 : index
    %c0_23 = arith.constant 0 : index
    %c0_24 = arith.constant 0 : index
    %13 = vector.load %arg12[%c0_21, %c0_22, %c0_23, %c0_24] : memref<1x18x18x16xf32, #tpu.memory_space<vmem>>, vector<1x16x16x4xf32>
    %c0_25 = arith.constant 0 : index
    %c0_26 = arith.constant 0 : index
    %c1_27 = arith.constant 1 : index
    %c0_28 = arith.constant 0 : index
    %14 = vector.load %arg12[%c0_25, %c0_26, %c1_27, %c0_28] : memref<1x18x18x16xf32, #tpu.memory_space<vmem>>, vector<1x16x16x4xf32>
    %c0_29 = arith.constant 0 : index
    %c0_30 = arith.constant 0 : index
    %c2 = arith.constant 2 : index
    %c0_31 = arith.constant 0 : index
    %15 = vector.load %arg12[%c0_29, %c0_30, %c2, %c0_31] : memref<1x18x18x16xf32, #tpu.memory_space<vmem>>, vector<1x16x16x4xf32>
    %c0_32 = arith.constant 0 : index
    %c1_33 = arith.constant 1 : index
    %c0_34 = arith.constant 0 : index
    %c0_35 = arith.constant 0 : index
    %16 = vector.load %arg12[%c0_32, %c1_33, %c0_34, %c0_35] : memref<1x18x18x16xf32, #tpu.memory_space<vmem>>, vector<1x16x16x4xf32>
    %c0_36 = arith.constant 0 : index
    %c1_37 = arith.constant 1 : index
    %c1_38 = arith.constant 1 : index
    %c0_39 = arith.constant 0 : index
    %17 = vector.load %arg12[%c0_36, %c1_37, %c1_38, %c0_39] : memref<1x18x18x16xf32, #tpu.memory_space<vmem>>, vector<1x16x16x4xf32>
    %c0_40 = arith.constant 0 : index
    %c1_41 = arith.constant 1 : index
    %c2_42 = arith.constant 2 : index
    %c0_43 = arith.constant 0 : index
    %18 = vector.load %arg12[%c0_40, %c1_41, %c2_42, %c0_43] : memref<1x18x18x16xf32, #tpu.memory_space<vmem>>, vector<1x16x16x4xf32>
    %c0_44 = arith.constant 0 : index
    %c2_45 = arith.constant 2 : index
    %c0_46 = arith.constant 0 : index
    %c0_47 = arith.constant 0 : index
    %19 = vector.load %arg12[%c0_44, %c2_45, %c0_46, %c0_47] : memref<1x18x18x16xf32, #tpu.memory_space<vmem>>, vector<1x16x16x4xf32>
    %c0_48 = arith.constant 0 : index
    %c2_49 = arith.constant 2 : index
    %c1_50 = arith.constant 1 : index
    %c0_51 = arith.constant 0 : index
    %20 = vector.load %arg12[%c0_48, %c2_49, %c1_50, %c0_51] : memref<1x18x18x16xf32, #tpu.memory_space<vmem>>, vector<1x16x16x4xf32>
    %c0_52 = arith.constant 0 : index
    %c2_53 = arith.constant 2 : index
    %c2_54 = arith.constant 2 : index
    %c0_55 = arith.constant 0 : index
    %21 = vector.load %arg12[%c0_52, %c2_53, %c2_54, %c0_55] : memref<1x18x18x16xf32, #tpu.memory_space<vmem>>, vector<1x16x16x4xf32>
    %22 = tpu.concatenate %13, %14, %15, %16, %17, %18, %19, %20, %21 in 3 : vector<1x16x16x4xf32>, vector<1x16x16x4xf32>, vector<1x16x16x4xf32>, vector<1x16x16x4xf32>, vector<1x16x16x4xf32>, vector<1x16x16x4xf32>, vector<1x16x16x4xf32>, vector<1x16x16x4xf32>, vector<1x16x16x4xf32> -> vector<1x16x16x36xf32>
    %23 = vector.shape_cast %22 : vector<1x16x16x36xf32> to vector<256x36xf32>
    %c0_56 = arith.constant 0 : index
    %c0_57 = arith.constant 0 : index
    %24 = vector.load %arg2[%c0_56, %c0_57] : memref<36x8xf32, #tpu.memory_space<vmem>>, vector<36x8xf32>
    %cst_58 = arith.constant dense<0.000000e+00> : vector<256x8xf32>
    %25 = tpu.matmul %23, %24, %cst_58 {dimension_numbers = #tpu.dot_dimension_numbers<[1], [0], [0], [1], [0, 0, 1, 1], [], []>} : vector<256x36xf32>, vector<36x8xf32>, vector<256x8xf32> -> vector<256x8xf32>
    %c0_59 = arith.constant 0 : index
    %c0_60 = arith.constant 0 : index
    %26 = vector.load %arg3[%c0_59, %c0_60] : memref<1x8xf32, #tpu.memory_space<vmem>>, vector<1x8xf32>
    %27 = vector.broadcast %26 : vector<1x8xf32> to vector<256x8xf32>
    %28 = arith.mulf %25, %27 : vector<256x8xf32>
    %c0_61 = arith.constant 0 : index
    %c0_62 = arith.constant 0 : index
    %29 = vector.load %arg4[%c0_61, %c0_62] : memref<1x8xf32, #tpu.memory_space<vmem>>, vector<1x8xf32>
    %30 = vector.broadcast %29 : vector<1x8xf32> to vector<256x8xf32>
    %31 = arith.addf %28, %30 : vector<256x8xf32>
    %cst_63 = arith.constant 0.000000e+00 : f32
    %32 = vector.broadcast %cst_63 : f32 to vector<256x8xf32>
    %33 = arith.maximumf %31, %32 : vector<256x8xf32>
    %cst_64 = arith.constant 0.000000e+00 : f32
    %34 = vector.broadcast %cst_64 : f32 to vector<1x1x18x16xf32>
    %cst_65 = arith.constant 0.000000e+00 : f32
    %35 = vector.broadcast %cst_65 : f32 to vector<1x18x1x16xf32>
    %c0_66 = arith.constant 0 : index
    %c0_67 = arith.constant 0 : index
    %c0_68 = arith.constant 0 : index
    %c0_69 = arith.constant 0 : index
    %36 = vector.load %arg13[%c0_66, %c0_67, %c0_68, %c0_69] : memref<1x18x18x16xf32, #tpu.memory_space<vmem>>, vector<1x1x18x16xf32>
    tpu.vector_store %arg13[%c0_66, %c0_67, %c0_68, %c0_69], %34 {strides = array<i32>} : memref<1x18x18x16xf32, #tpu.memory_space<vmem>>, vector<1x1x18x16xf32>,
    %c0_70 = arith.constant 0 : index
    %c17_71 = arith.constant 17 : index
    %c0_72 = arith.constant 0 : index
    %c0_73 = arith.constant 0 : index
    %37 = vector.load %arg13[%c0_70, %c17_71, %c0_72, %c0_73] : memref<1x18x18x16xf32, #tpu.memory_space<vmem>>, vector<1x1x18x16xf32>
    tpu.vector_store %arg13[%c0_70, %c17_71, %c0_72, %c0_73], %34 {strides = array<i32>} : memref<1x18x18x16xf32, #tpu.memory_space<vmem>>, vector<1x1x18x16xf32>,
    %c0_74 = arith.constant 0 : index
    %c0_75 = arith.constant 0 : index
    %c0_76 = arith.constant 0 : index
    %c0_77 = arith.constant 0 : index
    %38 = vector.load %arg13[%c0_74, %c0_75, %c0_76, %c0_77] : memref<1x18x18x16xf32, #tpu.memory_space<vmem>>, vector<1x18x1x16xf32>
    tpu.vector_store %arg13[%c0_74, %c0_75, %c0_76, %c0_77], %35 {strides = array<i32>} : memref<1x18x18x16xf32, #tpu.memory_space<vmem>>, vector<1x18x1x16xf32>,
    %c0_78 = arith.constant 0 : index
    %c0_79 = arith.constant 0 : index
    %c17_80 = arith.constant 17 : index
    %c0_81 = arith.constant 0 : index
    %39 = vector.load %arg13[%c0_78, %c0_79, %c17_80, %c0_81] : memref<1x18x18x16xf32, #tpu.memory_space<vmem>>, vector<1x18x1x16xf32>
    tpu.vector_store %arg13[%c0_78, %c0_79, %c17_80, %c0_81], %35 {strides = array<i32>} : memref<1x18x18x16xf32, #tpu.memory_space<vmem>>, vector<1x18x1x16xf32>,
    %40 = vector.shape_cast %33 : vector<256x8xf32> to vector<1x16x16x8xf32>
    %c0_82 = arith.constant 0 : index
    %c1_83 = arith.constant 1 : index
    %c1_84 = arith.constant 1 : index
    %c0_85 = arith.constant 0 : index
    %41 = vector.load %arg13[%c0_82, %c1_83, %c1_84, %c0_85] : memref<1x18x18x16xf32, #tpu.memory_space<vmem>>, vector<1x16x16x8xf32>
    tpu.vector_store %arg13[%c0_82, %c1_83, %c1_84, %c0_85], %40 {strides = array<i32>} : memref<1x18x18x16xf32, #tpu.memory_space<vmem>>, vector<1x16x16x8xf32>,
    %c0_86 = arith.constant 0 : index
    %c0_87 = arith.constant 0 : index
    %c0_88 = arith.constant 0 : index
    %c0_89 = arith.constant 0 : index
    %42 = vector.load %arg13[%c0_86, %c0_87, %c0_88, %c0_89] : memref<1x18x18x16xf32, #tpu.memory_space<vmem>>, vector<1x16x16x8xf32>
    %c0_90 = arith.constant 0 : index
    %c0_91 = arith.constant 0 : index
    %c1_92 = arith.constant 1 : index
    %c0_93 = arith.constant 0 : index
    %43 = vector.load %arg13[%c0_90, %c0_91, %c1_92, %c0_93] : memref<1x18x18x16xf32, #tpu.memory_space<vmem>>, vector<1x16x16x8xf32>
    %c0_94 = arith.constant 0 : index
    %c0_95 = arith.constant 0 : index
    %c2_96 = arith.constant 2 : index
    %c0_97 = arith.constant 0 : index
    %44 = vector.load %arg13[%c0_94, %c0_95, %c2_96, %c0_97] : memref<1x18x18x16xf32, #tpu.memory_space<vmem>>, vector<1x16x16x8xf32>
    %c0_98 = arith.constant 0 : index
    %c1_99 = arith.constant 1 : index
    %c0_100 = arith.constant 0 : index
    %c0_101 = arith.constant 0 : index
    %45 = vector.load %arg13[%c0_98, %c1_99, %c0_100, %c0_101] : memref<1x18x18x16xf32, #tpu.memory_space<vmem>>, vector<1x16x16x8xf32>
    %c0_102 = arith.constant 0 : index
    %c1_103 = arith.constant 1 : index
    %c1_104 = arith.constant 1 : index
    %c0_105 = arith.constant 0 : index
    %46 = vector.load %arg13[%c0_102, %c1_103, %c1_104, %c0_105] : memref<1x18x18x16xf32, #tpu.memory_space<vmem>>, vector<1x16x16x8xf32>
    %c0_106 = arith.constant 0 : index
    %c1_107 = arith.constant 1 : index
    %c2_108 = arith.constant 2 : index
    %c0_109 = arith.constant 0 : index
    %47 = vector.load %arg13[%c0_106, %c1_107, %c2_108, %c0_109] : memref<1x18x18x16xf32, #tpu.memory_space<vmem>>, vector<1x16x16x8xf32>
    %c0_110 = arith.constant 0 : index
    %c2_111 = arith.constant 2 : index
    %c0_112 = arith.constant 0 : index
    %c0_113 = arith.constant 0 : index
    %48 = vector.load %arg13[%c0_110, %c2_111, %c0_112, %c0_113] : memref<1x18x18x16xf32, #tpu.memory_space<vmem>>, vector<1x16x16x8xf32>
    %c0_114 = arith.constant 0 : index
    %c2_115 = arith.constant 2 : index
    %c1_116 = arith.constant 1 : index
    %c0_117 = arith.constant 0 : index
    %49 = vector.load %arg13[%c0_114, %c2_115, %c1_116, %c0_117] : memref<1x18x18x16xf32, #tpu.memory_space<vmem>>, vector<1x16x16x8xf32>
    %c0_118 = arith.constant 0 : index
    %c2_119 = arith.constant 2 : index
    %c2_120 = arith.constant 2 : index
    %c0_121 = arith.constant 0 : index
    %50 = vector.load %arg13[%c0_118, %c2_119, %c2_120, %c0_121] : memref<1x18x18x16xf32, #tpu.memory_space<vmem>>, vector<1x16x16x8xf32>
    %51 = tpu.concatenate %42, %43, %44, %45, %46, %47, %48, %49, %50 in 3 : vector<1x16x16x8xf32>, vector<1x16x16x8xf32>, vector<1x16x16x8xf32>, vector<1x16x16x8xf32>, vector<1x16x16x8xf32>, vector<1x16x16x8xf32>, vector<1x16x16x8xf32>, vector<1x16x16x8xf32>, vector<1x16x16x8xf32> -> vector<1x16x16x72xf32>
    %52 = vector.shape_cast %51 : vector<1x16x16x72xf32> to vector<256x72xf32>
    %c0_122 = arith.constant 0 : index
    %c0_123 = arith.constant 0 : index
    %53 = vector.load %arg5[%c0_122, %c0_123] : memref<72x16xf32, #tpu.memory_space<vmem>>, vector<72x16xf32>
    %cst_124 = arith.constant dense<0.000000e+00> : vector<256x16xf32>
    %54 = tpu.matmul %52, %53, %cst_124 {dimension_numbers = #tpu.dot_dimension_numbers<[1], [0], [0], [1], [0, 0, 1, 1], [], []>} : vector<256x72xf32>, vector<72x16xf32>, vector<256x16xf32> -> vector<256x16xf32>
    %c0_125 = arith.constant 0 : index
    %c0_126 = arith.constant 0 : index
    %55 = vector.load %arg6[%c0_125, %c0_126] : memref<1x16xf32, #tpu.memory_space<vmem>>, vector<1x16xf32>
    %56 = vector.broadcast %55 : vector<1x16xf32> to vector<256x16xf32>
    %57 = arith.mulf %54, %56 : vector<256x16xf32>
    %c0_127 = arith.constant 0 : index
    %c0_128 = arith.constant 0 : index
    %58 = vector.load %arg7[%c0_127, %c0_128] : memref<1x16xf32, #tpu.memory_space<vmem>>, vector<1x16xf32>
    %59 = vector.broadcast %58 : vector<1x16xf32> to vector<256x16xf32>
    %60 = arith.addf %57, %59 : vector<256x16xf32>
    %cst_129 = arith.constant 0.000000e+00 : f32
    %61 = vector.broadcast %cst_129 : f32 to vector<256x16xf32>
    %62 = arith.maximumf %60, %61 : vector<256x16xf32>
    %cst_130 = arith.constant 0.000000e+00 : f32
    %63 = vector.broadcast %cst_130 : f32 to vector<1x1x18x16xf32>
    %cst_131 = arith.constant 0.000000e+00 : f32
    %64 = vector.broadcast %cst_131 : f32 to vector<1x18x1x16xf32>
    %c0_132 = arith.constant 0 : index
    %c0_133 = arith.constant 0 : index
    %c0_134 = arith.constant 0 : index
    %c0_135 = arith.constant 0 : index
    %65 = vector.load %arg12[%c0_132, %c0_133, %c0_134, %c0_135] : memref<1x18x18x16xf32, #tpu.memory_space<vmem>>, vector<1x1x18x16xf32>
    tpu.vector_store %arg12[%c0_132, %c0_133, %c0_134, %c0_135], %63 {strides = array<i32>} : memref<1x18x18x16xf32, #tpu.memory_space<vmem>>, vector<1x1x18x16xf32>,
    %c0_136 = arith.constant 0 : index
    %c17_137 = arith.constant 17 : index
    %c0_138 = arith.constant 0 : index
    %c0_139 = arith.constant 0 : index
    %66 = vector.load %arg12[%c0_136, %c17_137, %c0_138, %c0_139] : memref<1x18x18x16xf32, #tpu.memory_space<vmem>>, vector<1x1x18x16xf32>
    tpu.vector_store %arg12[%c0_136, %c17_137, %c0_138, %c0_139], %63 {strides = array<i32>} : memref<1x18x18x16xf32, #tpu.memory_space<vmem>>, vector<1x1x18x16xf32>,
    %c0_140 = arith.constant 0 : index
    %c0_141 = arith.constant 0 : index
    %c0_142 = arith.constant 0 : index
    %c0_143 = arith.constant 0 : index
    %67 = vector.load %arg12[%c0_140, %c0_141, %c0_142, %c0_143] : memref<1x18x18x16xf32, #tpu.memory_space<vmem>>, vector<1x18x1x16xf32>
    tpu.vector_store %arg12[%c0_140, %c0_141, %c0_142, %c0_143], %64 {strides = array<i32>} : memref<1x18x18x16xf32, #tpu.memory_space<vmem>>, vector<1x18x1x16xf32>,
    %c0_144 = arith.constant 0 : index
    %c0_145 = arith.constant 0 : index
    %c17_146 = arith.constant 17 : index
    %c0_147 = arith.constant 0 : index
    %68 = vector.load %arg12[%c0_144, %c0_145, %c17_146, %c0_147] : memref<1x18x18x16xf32, #tpu.memory_space<vmem>>, vector<1x18x1x16xf32>
    tpu.vector_store %arg12[%c0_144, %c0_145, %c17_146, %c0_147], %64 {strides = array<i32>} : memref<1x18x18x16xf32, #tpu.memory_space<vmem>>, vector<1x18x1x16xf32>,
    %69 = vector.shape_cast %62 : vector<256x16xf32> to vector<1x16x16x16xf32>
    %c0_148 = arith.constant 0 : index
    %c1_149 = arith.constant 1 : index
    %c1_150 = arith.constant 1 : index
    %c0_151 = arith.constant 0 : index
    %70 = vector.load %arg12[%c0_148, %c1_149, %c1_150, %c0_151] : memref<1x18x18x16xf32, #tpu.memory_space<vmem>>, vector<1x16x16x16xf32>
    tpu.vector_store %arg12[%c0_148, %c1_149, %c1_150, %c0_151], %69 {strides = array<i32>} : memref<1x18x18x16xf32, #tpu.memory_space<vmem>>, vector<1x16x16x16xf32>,
    %c0_152 = arith.constant 0 : index
    %c0_153 = arith.constant 0 : index
    %c0_154 = arith.constant 0 : index
    %c0_155 = arith.constant 0 : index
    %71 = tpu.strided_load %arg12[%c0_152, %c0_153, %c0_154, %c0_155] {strides = array<i32: 1, 2, 2, 1>} : memref<1x18x18x16xf32, #tpu.memory_space<vmem>>, vector<1x8x8x16xf32>
    %c0_156 = arith.constant 0 : index
    %c0_157 = arith.constant 0 : index
    %c1_158 = arith.constant 1 : index
    %c0_159 = arith.constant 0 : index
    %72 = tpu.strided_load %arg12[%c0_156, %c0_157, %c1_158, %c0_159] {strides = array<i32: 1, 2, 2, 1>} : memref<1x18x18x16xf32, #tpu.memory_space<vmem>>, vector<1x8x8x16xf32>
    %c0_160 = arith.constant 0 : index
    %c0_161 = arith.constant 0 : index
    %c2_162 = arith.constant 2 : index
    %c0_163 = arith.constant 0 : index
    %73 = tpu.strided_load %arg12[%c0_160, %c0_161, %c2_162, %c0_163] {strides = array<i32: 1, 2, 2, 1>} : memref<1x18x18x16xf32, #tpu.memory_space<vmem>>, vector<1x8x8x16xf32>
    %c0_164 = arith.constant 0 : index
    %c1_165 = arith.constant 1 : index
    %c0_166 = arith.constant 0 : index
    %c0_167 = arith.constant 0 : index
    %74 = tpu.strided_load %arg12[%c0_164, %c1_165, %c0_166, %c0_167] {strides = array<i32: 1, 2, 2, 1>} : memref<1x18x18x16xf32, #tpu.memory_space<vmem>>, vector<1x8x8x16xf32>
    %c0_168 = arith.constant 0 : index
    %c1_169 = arith.constant 1 : index
    %c1_170 = arith.constant 1 : index
    %c0_171 = arith.constant 0 : index
    %75 = tpu.strided_load %arg12[%c0_168, %c1_169, %c1_170, %c0_171] {strides = array<i32: 1, 2, 2, 1>} : memref<1x18x18x16xf32, #tpu.memory_space<vmem>>, vector<1x8x8x16xf32>
    %c0_172 = arith.constant 0 : index
    %c1_173 = arith.constant 1 : index
    %c2_174 = arith.constant 2 : index
    %c0_175 = arith.constant 0 : index
    %76 = tpu.strided_load %arg12[%c0_172, %c1_173, %c2_174, %c0_175] {strides = array<i32: 1, 2, 2, 1>} : memref<1x18x18x16xf32, #tpu.memory_space<vmem>>, vector<1x8x8x16xf32>
    %c0_176 = arith.constant 0 : index
    %c2_177 = arith.constant 2 : index
    %c0_178 = arith.constant 0 : index
    %c0_179 = arith.constant 0 : index
    %77 = tpu.strided_load %arg12[%c0_176, %c2_177, %c0_178, %c0_179] {strides = array<i32: 1, 2, 2, 1>} : memref<1x18x18x16xf32, #tpu.memory_space<vmem>>, vector<1x8x8x16xf32>
    %c0_180 = arith.constant 0 : index
    %c2_181 = arith.constant 2 : index
    %c1_182 = arith.constant 1 : index
    %c0_183 = arith.constant 0 : index
    %78 = tpu.strided_load %arg12[%c0_180, %c2_181, %c1_182, %c0_183] {strides = array<i32: 1, 2, 2, 1>} : memref<1x18x18x16xf32, #tpu.memory_space<vmem>>, vector<1x8x8x16xf32>
    %c0_184 = arith.constant 0 : index
    %c2_185 = arith.constant 2 : index
    %c2_186 = arith.constant 2 : index
    %c0_187 = arith.constant 0 : index
    %79 = tpu.strided_load %arg12[%c0_184, %c2_185, %c2_186, %c0_187] {strides = array<i32: 1, 2, 2, 1>} : memref<1x18x18x16xf32, #tpu.memory_space<vmem>>, vector<1x8x8x16xf32>
    %80 = tpu.concatenate %71, %72, %73, %74, %75, %76, %77, %78, %79 in 3 : vector<1x8x8x16xf32>, vector<1x8x8x16xf32>, vector<1x8x8x16xf32>, vector<1x8x8x16xf32>, vector<1x8x8x16xf32>, vector<1x8x8x16xf32>, vector<1x8x8x16xf32>, vector<1x8x8x16xf32>, vector<1x8x8x16xf32> -> vector<1x8x8x144xf32>
    %81 = vector.shape_cast %80 : vector<1x8x8x144xf32> to vector<64x144xf32>
    %c0_188 = arith.constant 0 : index
    %c0_189 = arith.constant 0 : index
    %82 = vector.load %arg8[%c0_188, %c0_189] : memref<144x16xf32, #tpu.memory_space<vmem>>, vector<144x16xf32>
    %cst_190 = arith.constant dense<0.000000e+00> : vector<64x16xf32>
    %83 = tpu.matmul %81, %82, %cst_190 {dimension_numbers = #tpu.dot_dimension_numbers<[1], [0], [0], [1], [0, 0, 1, 1], [], []>} : vector<64x144xf32>, vector<144x16xf32>, vector<64x16xf32> -> vector<64x16xf32>
    %c0_191 = arith.constant 0 : index
    %c0_192 = arith.constant 0 : index
    %84 = vector.load %arg9[%c0_191, %c0_192] : memref<1x16xf32, #tpu.memory_space<vmem>>, vector<1x16xf32>
    %85 = vector.broadcast %84 : vector<1x16xf32> to vector<64x16xf32>
    %86 = arith.mulf %83, %85 : vector<64x16xf32>
    %c0_193 = arith.constant 0 : index
    %c0_194 = arith.constant 0 : index
    %87 = vector.load %arg10[%c0_193, %c0_194] : memref<1x16xf32, #tpu.memory_space<vmem>>, vector<1x16xf32>
    %88 = vector.broadcast %87 : vector<1x16xf32> to vector<64x16xf32>
    %89 = arith.addf %86, %88 : vector<64x16xf32>
    %cst_195 = arith.constant 0.000000e+00 : f32
    %90 = vector.broadcast %cst_195 : f32 to vector<64x16xf32>
    %91 = arith.maximumf %89, %90 : vector<64x16xf32>
    %92 = tpu.transpose %91, [1, 0] : vector<64x16xf32> -> vector<16x64xf32>
    %c0_196 = arith.constant 0 : index
    %c0_197 = arith.constant 0 : index
    %c0_198 = arith.constant 0 : index
    %93 = vector.load %arg11[%c0_196, %c0_197, %c0_198] : memref<1x16x64xf32, #tpu.memory_space<vmem>>, vector<1x16x64xf32>
    %94 = vector.shape_cast %93 : vector<1x16x64xf32> to vector<16x64xf32>
    %95 = vector.shape_cast %92 : vector<16x64xf32> to vector<1x16x64xf32>
    tpu.vector_store %arg11[%c0_196, %c0_197, %c0_198], %95 {strides = array<i32>} : memref<1x16x64xf32, #tpu.memory_space<vmem>>, vector<1x16x64xf32>,
    return
  }
  func.func @transform_0(%arg0: i32) -> (i32, i32, i32) {
    %c0_i32 = arith.constant 0 : i32
    %c0_i32_0 = arith.constant 0 : i32
    %c0_i32_1 = arith.constant 0 : i32
    return %arg0, %c0_i32, %c0_i32_0 : i32, i32, i32
  }
  func.func @transform_1(%arg0: i32) -> (i32, i32) {
    %c0_i32 = arith.constant 0 : i32
    %c0_i32_0 = arith.constant 0 : i32
    %c0_i32_1 = arith.constant 0 : i32
    return %c0_i32, %c0_i32_0 : i32, i32
  }
  func.func @transform_2(%arg0: i32) -> (i32, i32) {
    %c0_i32 = arith.constant 0 : i32
    %c0_i32_0 = arith.constant 0 : i32
    %c0_i32_1 = arith.constant 0 : i32
    return %c0_i32, %c0_i32_0 : i32, i32
  }
  func.func @transform_3(%arg0: i32) -> (i32, i32) {
    %c0_i32 = arith.constant 0 : i32
    %c0_i32_0 = arith.constant 0 : i32
    %c0_i32_1 = arith.constant 0 : i32
    return %c0_i32, %c0_i32_0 : i32, i32
  }
  func.func @transform_4(%arg0: i32) -> (i32, i32) {
    %c0_i32 = arith.constant 0 : i32
    %c0_i32_0 = arith.constant 0 : i32
    %c0_i32_1 = arith.constant 0 : i32
    return %c0_i32, %c0_i32_0 : i32, i32
  }
  func.func @transform_5(%arg0: i32) -> (i32, i32) {
    %c0_i32 = arith.constant 0 : i32
    %c0_i32_0 = arith.constant 0 : i32
    %c0_i32_1 = arith.constant 0 : i32
    return %c0_i32, %c0_i32_0 : i32, i32
  }
  func.func @transform_6(%arg0: i32) -> (i32, i32) {
    %c0_i32 = arith.constant 0 : i32
    %c0_i32_0 = arith.constant 0 : i32
    %c0_i32_1 = arith.constant 0 : i32
    return %c0_i32, %c0_i32_0 : i32, i32
  }
  func.func @transform_7(%arg0: i32) -> (i32, i32) {
    %c0_i32 = arith.constant 0 : i32
    %c0_i32_0 = arith.constant 0 : i32
    %c0_i32_1 = arith.constant 0 : i32
    return %c0_i32, %c0_i32_0 : i32, i32
  }
  func.func @transform_8(%arg0: i32) -> (i32, i32) {
    %c0_i32 = arith.constant 0 : i32
    %c0_i32_0 = arith.constant 0 : i32
    %c0_i32_1 = arith.constant 0 : i32
    return %c0_i32, %c0_i32_0 : i32, i32
  }
  func.func @transform_9(%arg0: i32) -> (i32, i32) {
    %c0_i32 = arith.constant 0 : i32
    %c0_i32_0 = arith.constant 0 : i32
    %c0_i32_1 = arith.constant 0 : i32
    return %c0_i32, %c0_i32_0 : i32, i32
  }
  func.func @transform_10(%arg0: i32) -> (i32, i32, i32) {
    %c0_i32 = arith.constant 0 : i32
    %c0_i32_0 = arith.constant 0 : i32
    %c0_i32_1 = arith.constant 0 : i32
    return %arg0, %c0_i32, %c0_i32_0 : i32, i32, i32
  }
}

</mosaic_0001>

<llo_original>
// kernel: encoder_forward.1
$region0: #{encoder_forward.1}
  #allocation0 [shape = 'u32[]', space=smem, size = 0x4, offset = 0x4, fixed_abs, tag = 'smem constant byte address 0x4 - core index']
  #allocation1 [shape = 'u32[144,128]{1,0:T(1,128)}', space=vmem, size = 0x12000, scoped, tag = 'internal scratch']
  #allocation2 [shape = 'f32[1,18,18,16]{3,2,1,0:T(8,128)}', space=vmem, size = 0x36000, scoped, tag = 'scratch operand']
  #allocation3 [shape = 'f32[1,18,18,16]{3,2,1,0:T(8,128)}', space=vmem, size = 0x36000, scoped, tag = 'scratch operand']
  %s0 = inlined_call_operand.vmem [shape: f32[2,4,256], index: 0, kind: input, shape index: {}]
  %s1 = inlined_call_operand.vmem [shape: f32[36,8], index: 1, kind: input, shape index: {}]
  %s2 = inlined_call_operand.vmem [shape: f32[1,8], index: 2, kind: input, shape index: {}]
  %s3 = inlined_call_operand.vmem [shape: f32[1,8], index: 3, kind: input, shape index: {}]
  %s4 = inlined_call_operand.vmem [shape: f32[72,16], index: 4, kind: input, shape index: {}]
  %s5 = inlined_call_operand.vmem [shape: f32[1,16], index: 5, kind: input, shape index: {}]
  %s6 = inlined_call_operand.vmem [shape: f32[1,16], index: 6, kind: input, shape index: {}]
  %s7 = inlined_call_operand.vmem [shape: f32[144,16], index: 7, kind: input, shape index: {}]
  %s8 = inlined_call_operand.vmem [shape: f32[1,16], index: 8, kind: input, shape index: {}]
  %s9 = inlined_call_operand.vmem [shape: f32[1,16], index: 9, kind: input, shape index: {}]
  %s10 = inlined_call_operand.vmem [shape: f32[2,16,64], index: 10, kind: output, shape index: {}]
  %s11 = sld [smem:[#allocation0]]
  $region73: #{encoder_forward.1} parent=0
    _
  %s13 = ssub.s32 1, %s11
  %s14 = scalar_select 0, %s13, %s11
  loop: start=0, step=1, limit=4
  $region2: #{encoder_forward.1} parent=0 // loop_pre_header
    _
  $region3: #{encoder_forward.1} parent=0 // loop_header
    %s16 = sphi 0, %s20
    %p17 = scmp.ge.s32.totalorder %s16, 4
    %s26 = sphi 0, %s28
    %s29 = sphi 0, %s26
    %s30 = sphi 0, %s29
    %s46 = sphi 0, %s30
    %s50 = sphi 0, %s50
    %s52 = sphi 0, %s50
    %s53 = sphi 0, %s52
    %s67 = sphi 0, %s53
    %s71 = sphi 0, %s71
    %s73 = sphi 0, %s71
    %s74 = sphi 0, %s73
    %s88 = sphi 0, %s74
    %s92 = sphi 0, %s92
    %s94 = sphi 0, %s92
    %s95 = sphi 0, %s94
    %s109 = sphi 0, %s95
    %s113 = sphi 0, %s113
    %s115 = sphi 0, %s113
    %s116 = sphi 0, %s115
    %s130 = sphi 0, %s116
    %s134 = sphi 0, %s134
    %s136 = sphi 0, %s134
    %s137 = sphi 0, %s136
    %s151 = sphi 0, %s137
    %s155 = sphi 0, %s155
    %s157 = sphi 0, %s155
    %s158 = sphi 0, %s157
    %s172 = sphi 0, %s158
    %s176 = sphi 0, %s176
    %s178 = sphi 0, %s176
    %s179 = sphi 0, %s178
    %s193 = sphi 0, %s179
    %s197 = sphi 0, %s197
    %s199 = sphi 0, %s197
    %s200 = sphi 0, %s199
    %s214 = sphi 0, %s200
    %s218 = sphi 0, %s218
    %s220 = sphi 0, %s218
    %s221 = sphi 0, %s220
    %s235 = sphi 0, %s221
    %s241 = sphi 0, %s243
    %s244 = sphi 0, %s241
    %s245 = sphi 0, %s244
    %s261 = sphi 0, %s245
  $region4: #{encoder_forward.1} parent=0 // loop_header_branch
    %19 = sbr.rel (%p17) target = $region8
  $region5: #{encoder_forward.1} parent=0 // loop_body
    %s21 = ssub.s32 %s16, 1
    %s22 = ssub.s32 %s16, 2
    %s23 = sadd.s32 %s16, 1
    %s24 = ssub.s32 %s16, %s23
    %p25 = scmp.eq.s32.totalorder %s24, 0
    %s27 = sadd.s32 %s26, 1
    %s28 = scalar_select %p25, %s26, %s27
    %p31 = pneg %p25
    %p32 = scmp.eq.s32.totalorder %s16, 1
    %p33 = por %p31, %p32
    %p34 = scmp.ne.s32.totalorder %s26, %s29
    %p35 = scmp.eq.s32.totalorder %s16, 0
    %p36 = por %p34, %p35
    %p37 = scmp.ne.s32.totalorder %s26, %s29
    %p38 = scmp.eq.s32.totalorder %s21, 1
    %p39 = por %p37, %p38
    %p40 = scmp.ne.s32.totalorder %s29, %s30
    %p41 = scmp.eq.s32.totalorder %s21, 0
    %p42 = por %p40, %p41
    %p43 = scmp.ne.s32.totalorder %s29, %s30
    %p44 = scmp.eq.s32.totalorder %s22, 1
    %p45 = por %p43, %p44
    %p47 = scmp.ne.s32.totalorder %s30, %s46
    %p48 = scmp.eq.s32.totalorder %s22, 0
    %p49 = por %p47, %p48
    %s51 = sadd.s32 %s50, 1
    %p54 = scmp.eq.s32.totalorder %s16, 1
    %p55 = scmp.ne.s32.totalorder %s50, %s52
    %p56 = scmp.eq.s32.totalorder %s16, 0
    %p57 = por %p55, %p56
    %p58 = scmp.ne.s32.totalorder %s50, %s52
    %p59 = scmp.eq.s32.totalorder %s21, 1
    %p60 = por %p58, %p59
    %p61 = scmp.ne.s32.totalorder %s52, %s53
    %p62 = scmp.eq.s32.totalorder %s21, 0
    %p63 = por %p61, %p62
    %p64 = scmp.ne.s32.totalorder %s52, %s53
    %p65 = scmp.eq.s32.totalorder %s22, 1
    %p66 = por %p64, %p65
    %p68 = scmp.ne.s32.totalorder %s53, %s67
    %p69 = scmp.eq.s32.totalorder %s22, 0
    %p70 = por %p68, %p69
    %s72 = sadd.s32 %s71, 1
    %p75 = scmp.eq.s32.totalorder %s16, 1
    %p76 = scmp.ne.s32.totalorder %s71, %s73
    %p77 = scmp.eq.s32.totalorder %s16, 0
    %p78 = por %p76, %p77
    %p79 = scmp.ne.s32.totalorder %s71, %s73
    %p80 = scmp.eq.s32.totalorder %s21, 1
    %p81 = por %p79, %p80
    %p82 = scmp.ne.s32.totalorder %s73, %s74
    %p83 = scmp.eq.s32.totalorder %s21, 0
    %p84 = por %p82, %p83
    %p85 = scmp.ne.s32.totalorder %s73, %s74
    %p86 = scmp.eq.s32.totalorder %s22, 1
    %p87 = por %p85, %p86
    %p89 = scmp.ne.s32.totalorder %s74, %s88
    %p90 = scmp.eq.s32.totalorder %s22, 0
    %p91 = por %p89, %p90
    %s93 = sadd.s32 %s92, 1
    %p96 = scmp.eq.s32.totalorder %s16, 1
    %p97 = scmp.ne.s32.totalorder %s92, %s94
    %p98 = scmp.eq.s32.totalorder %s16, 0
    %p99 = por %p97, %p98
    %p100 = scmp.ne.s32.totalorder %s92, %s94
    %p101 = scmp.eq.s32.totalorder %s21, 1
    %p102 = por %p100, %p101
    %p103 = scmp.ne.s32.totalorder %s94, %s95
    %p104 = scmp.eq.s32.totalorder %s21, 0
    %p105 = por %p103, %p104
    %p106 = scmp.ne.s32.totalorder %s94, %s95
    %p107 = scmp.eq.s32.totalorder %s22, 1
    %p108 = por %p106, %p107
    %p110 = scmp.ne.s32.totalorder %s95, %s109
    %p111 = scmp.eq.s32.totalorder %s22, 0
    %p112 = por %p110, %p111
    %s114 = sadd.s32 %s113, 1
    %p117 = scmp.eq.s32.totalorder %s16, 1
    %p118 = scmp.ne.s32.totalorder %s113, %s115
    %p119 = scmp.eq.s32.totalorder %s16, 0
    %p120 = por %p118, %p119
    %p121 = scmp.ne.s32.totalorder %s113, %s115
    %p122 = scmp.eq.s32.totalorder %s21, 1
    %p123 = por %p121, %p122
    %p124 = scmp.ne.s32.totalorder %s115, %s116
    %p125 = scmp.eq.s32.totalorder %s21, 0
    %p126 = por %p124, %p125
    %p127 = scmp.ne.s32.totalorder %s115, %s116
    %p128 = scmp.eq.s32.totalorder %s22, 1
    %p129 = por %p127, %p128
    %p131 = scmp.ne.s32.totalorder %s116, %s130
    %p132 = scmp.eq.s32.totalorder %s22, 0
    %p133 = por %p131, %p132
    %s135 = sadd.s32 %s134, 1
    %p138 = scmp.eq.s32.totalorder %s16, 1
    %p139 = scmp.ne.s32.totalorder %s134, %s136
    %p140 = scmp.eq.s32.totalorder %s16, 0
    %p141 = por %p139, %p140
    %p142 = scmp.ne.s32.totalorder %s134, %s136
    %p143 = scmp.eq.s32.totalorder %s21, 1
    %p144 = por %p142, %p143
    %p145 = scmp.ne.s32.totalorder %s136, %s137
    %p146 = scmp.eq.s32.totalorder %s21, 0
    %p147 = por %p145, %p146
    %p148 = scmp.ne.s32.totalorder %s136, %s137
    %p149 = scmp.eq.s32.totalorder %s22, 1
    %p150 = por %p148, %p149
    %p152 = scmp.ne.s32.totalorder %s137, %s151
    %p153 = scmp.eq.s32.totalorder %s22, 0
    %p154 = por %p152, %p153
    %s156 = sadd.s32 %s155, 1
    %p159 = scmp.eq.s32.totalorder %s16, 1
    %p160 = scmp.ne.s32.totalorder %s155, %s157
    %p161 = scmp.eq.s32.totalorder %s16, 0
    %p162 = por %p160, %p161
    %p163 = scmp.ne.s32.totalorder %s155, %s157
    %p164 = scmp.eq.s32.totalorder %s21, 1
    %p165 = por %p163, %p164
    %p166 = scmp.ne.s32.totalorder %s157, %s158
    %p167 = scmp.eq.s32.totalorder %s21, 0
    %p168 = por %p166, %p167
    %p169 = scmp.ne.s32.totalorder %s157, %s158
    %p170 = scmp.eq.s32.totalorder %s22, 1
    %p171 = por %p169, %p170
    %p173 = scmp.ne.s32.totalorder %s158, %s172
    %p174 = scmp.eq.s32.totalorder %s22, 0
    %p175 = por %p173, %p174
    %s177 = sadd.s32 %s176, 1
    %p180 = scmp.eq.s32.totalorder %s16, 1
    %p181 = scmp.ne.s32.totalorder %s176, %s178
    %p182 = scmp.eq.s32.totalorder %s16, 0
    %p183 = por %p181, %p182
    %p184 = scmp.ne.s32.totalorder %s176, %s178
    %p185 = scmp.eq.s32.totalorder %s21, 1
    %p186 = por %p184, %p185
    %p187 = scmp.ne.s32.totalorder %s178, %s179
    %p188 = scmp.eq.s32.totalorder %s21, 0
    %p189 = por %p187, %p188
    %p190 = scmp.ne.s32.totalorder %s178, %s179
    %p191 = scmp.eq.s32.totalorder %s22, 1
    %p192 = por %p190, %p191
    %p194 = scmp.ne.s32.totalorder %s179, %s193
    %p195 = scmp.eq.s32.totalorder %s22, 0
    %p196 = por %p194, %p195
    %s198 = sadd.s32 %s197, 1
    %p201 = scmp.eq.s32.totalorder %s16, 1
    %p202 = scmp.ne.s32.totalorder %s197, %s199
    %p203 = scmp.eq.s32.totalorder %s16, 0
    %p204 = por %p202, %p203
    %p205 = scmp.ne.s32.totalorder %s197, %s199
    %p206 = scmp.eq.s32.totalorder %s21, 1
    %p207 = por %p205, %p206
    %p208 = scmp.ne.s32.totalorder %s199, %s200
    %p209 = scmp.eq.s32.totalorder %s21, 0
    %p210 = por %p208, %p209
    %p211 = scmp.ne.s32.totalorder %s199, %s200
    %p212 = scmp.eq.s32.totalorder %s22, 1
    %p213 = por %p211, %p212
    %p215 = scmp.ne.s32.totalorder %s200, %s214
    %p216 = scmp.eq.s32.totalorder %s22, 0
    %p217 = por %p215, %p216
    %s219 = sadd.s32 %s218, 1
    %p222 = scmp.eq.s32.totalorder %s16, 1
    %p223 = scmp.ne.s32.totalorder %s218, %s220
    %p224 = scmp.eq.s32.totalorder %s16, 0
    %p225 = por %p223, %p224
    %p226 = scmp.ne.s32.totalorder %s218, %s220
    %p227 = scmp.eq.s32.totalorder %s21, 1
    %p228 = por %p226, %p227
    %p229 = scmp.ne.s32.totalorder %s220, %s221
    %p230 = scmp.eq.s32.totalorder %s21, 0
    %p231 = por %p229, %p230
    %p232 = scmp.ne.s32.totalorder %s220, %s221
    %p233 = scmp.eq.s32.totalorder %s22, 1
    %p234 = por %p232, %p233
    %p236 = scmp.ne.s32.totalorder %s221, %s235
    %p237 = scmp.eq.s32.totalorder %s22, 0
    %p238 = por %p236, %p237
    %s239 = ssub.s32 %s16, %s23
    %p240 = scmp.eq.s32.totalorder %s239, 0
    %s242 = sadd.s32 %s241, 1
    %s243 = scalar_select %p240, %s241, %s242
    %p246 = pneg %p240
    %p247 = scmp.eq.s32.totalorder %s16, 1
    %p248 = por %p246, %p247
    %p249 = scmp.ne.s32.totalorder %s241, %s244
    %p250 = scmp.eq.s32.totalorder %s16, 0
    %p251 = por %p249, %p250
    %p252 = scmp.ne.s32.totalorder %s241, %s244
    %p253 = scmp.eq.s32.totalorder %s21, 1
    %p254 = por %p252, %p253
    %p255 = scmp.ne.s32.totalorder %s244, %s245
    %p256 = scmp.eq.s32.totalorder %s21, 0
    %p257 = por %p255, %p256
    %p258 = scmp.ne.s32.totalorder %s244, %s245
    %p259 = scmp.eq.s32.totalorder %s22, 1
    %p260 = por %p258, %p259
    %p262 = scmp.ne.s32.totalorder %s245, %s261
    %p263 = scmp.eq.s32.totalorder %s22, 0
    %p264 = por %p262, %p263
    %p265 = scmp.le.s32.totalorder 1, %s16
    %p266 = scmp.lt.s32.totalorder %s16, 3
    %p267 = pnand %p265, %p266
    %p268 = pneg %p267
    // Predicated region
    $region9: #{encoder_forward.1} parent=5 // pred_check
      _
    $region10: #{encoder_forward.1} parent=5 // pred_check_branch
      %270 = sbr.rel (%p267) target = $region12
    $region11: #{encoder_forward.1} parent=5 // pred_region
      %s271 = ssub.s32 %s16, 1
      // Predicated region
      $region13: #{encoder_forward.1} parent=11 // pred_check
        %p272 = pneg %p63
      $region14: #{encoder_forward.1} parent=11 // pred_check_branch
        %274 = sbr.rel (%p272) target = $region16
      $region15: #{encoder_forward.1} parent=11 // pred_region
        _
      $region16: #{encoder_forward.1} parent=11 // pred_fallthru
        _
      // Predicated region
      $region17: #{encoder_forward.1} parent=11 // pred_check
        %p275 = pneg %p84
      $region18: #{encoder_forward.1} parent=11 // pred_check_branch
        %277 = sbr.rel (%p275) target = $region20
      $region19: #{encoder_forward.1} parent=11 // pred_region
        _
      $region20: #{encoder_forward.1} parent=11 // pred_fallthru
        _
      // Predicated region
      $region21: #{encoder_forward.1} parent=11 // pred_check
        %p278 = pneg %p105
      $region22: #{encoder_forward.1} parent=11 // pred_check_branch
        %280 = sbr.rel (%p278) target = $region24
      $region23: #{encoder_forward.1} parent=11 // pred_region
        _
      $region24: #{encoder_forward.1} parent=11 // pred_fallthru
        _
      // Predicated region
      $region25: #{encoder_forward.1} parent=11 // pred_check
        %p281 = pneg %p126
      $region26: #{encoder_forward.1} parent=11 // pred_check_branch
        %283 = sbr.rel (%p281) target = $region28
      $region27: #{encoder_forward.1} parent=11 // pred_region
        _
      $region28: #{encoder_forward.1} parent=11 // pred_fallthru
        _
      // Predicated region
      $region29: #{encoder_forward.1} parent=11 // pred_check
        %p284 = pneg %p147
      $region30: #{encoder_forward.1} parent=11 // pred_check_branch
        %286 = sbr.rel (%p284) target = $region32
      $region31: #{encoder_forward.1} parent=11 // pred_region
        _
      $region32: #{encoder_forward.1} parent=11 // pred_fallthru
        _
      // Predicated region
      $region33: #{encoder_forward.1} parent=11 // pred_check
        %p287 = pneg %p168
      $region34: #{encoder_forward.1} parent=11 // pred_check_branch
        %289 = sbr.rel (%p287) target = $region36
      $region35: #{encoder_forward.1} parent=11 // pred_region
        _
      $region36: #{encoder_forward.1} parent=11 // pred_fallthru
        _
      // Predicated region
      $region37: #{encoder_forward.1} parent=11 // pred_check
        %p290 = pneg %p189
      $region38: #{encoder_forward.1} parent=11 // pred_check_branch
        %292 = sbr.rel (%p290) target = $region40
      $region39: #{encoder_forward.1} parent=11 // pred_region
        _
      $region40: #{encoder_forward.1} parent=11 // pred_fallthru
        _
      // Predicated region
      $region41: #{encoder_forward.1} parent=11 // pred_check
        %p293 = pneg %p210
      $region42: #{encoder_forward.1} parent=11 // pred_check_branch
        %295 = sbr.rel (%p293) target = $region44
      $region43: #{encoder_forward.1} parent=11 // pred_region
        _
      $region44: #{encoder_forward.1} parent=11 // pred_fallthru
        _
      // Predicated region
      $region45: #{encoder_forward.1} parent=11 // pred_check
        %p296 = pneg %p231
      $region46: #{encoder_forward.1} parent=11 // pred_check_branch
        %298 = sbr.rel (%p296) target = $region48
      $region47: #{encoder_forward.1} parent=11 // pred_region
        _
      $region48: #{encoder_forward.1} parent=11 // pred_fallthru
        _
    $region12: #{encoder_forward.1} parent=5 // pred_fallthru
      _
    %p299 = scmp.lt.s32.totalorder %s16, 2
    // Predicated region
    $region49: #{encoder_forward.1} parent=5 // pred_check
      %p300 = pneg %p299
    $region50: #{encoder_forward.1} parent=5 // pred_check_branch
      %302 = sbr.rel (%p300) target = $region52
    $region51: #{encoder_forward.1} parent=5 // pred_region
      // Predicated region
      $region53: #{encoder_forward.1} parent=51 // pred_check
        %p303 = pneg %p36
      $region54: #{encoder_forward.1} parent=51 // pred_check_branch
        %305 = sbr.rel (%p303) target = $region56
      $region55: #{encoder_forward.1} parent=51 // pred_region
        %p306 = scmp.lt.s32.totalorder %s16, 1
        %s307 = scalar_select %p306, %s16, 1
        %s308 = smul.addr %s307, 2
        %s309 = smul.addr %s308, 4
        %s310 = scalar_lea.vmem %s0, %s309
      $region56: #{encoder_forward.1} parent=51 // pred_fallthru
        _
    $region52: #{encoder_forward.1} parent=5 // pred_fallthru
      _
    %p311 = scmp.le.s32.totalorder 1, %s16
    %p312 = scmp.lt.s32.totalorder %s16, 3
    %p313 = pnand %p311, %p312
    %p314 = pneg %p313
    // Predicated region
    $region57: #{encoder_forward.1} parent=5 // pred_check
      _
    $region58: #{encoder_forward.1} parent=5 // pred_check_branch
      %316 = sbr.rel (%p313) target = $region60
    $region59: #{encoder_forward.1} parent=5 // pred_region
      %s317 = ssub.s32 %s16, 1
      %p318 = scmp.lt.s32.totalorder %s21, 1
      %s319 = scalar_select %p318, %s21, 1
      %s320 = smul.addr %s319, 2
      %s321 = smul.addr %s320, 4
      %s322 = scalar_lea.vmem %s0, %s321
      %p323 = pneg %p42
      %p324 = pneg %p39
      %p325 = pneg %p63
      %p326 = pneg %p60
      %p327 = pneg %p84
      %p328 = pneg %p81
      %p329 = pneg %p105
      %p330 = pneg %p102
      %p331 = pneg %p126
      %p332 = pneg %p123
      %p333 = pneg %p147
      %p334 = pneg %p144
      %p335 = pneg %p168
      %p336 = pneg %p165
      %p337 = pneg %p189
      %p338 = pneg %p186
      %p339 = pneg %p210
      %p340 = pneg %p207
      %p341 = pneg %p231
      %p342 = pneg %p228
      %p343 = pneg %p257
      %p344 = pneg %p254
      %p345 = scmp.lt.s32.totalorder %s21, 1
      %s346 = scalar_select %p345, %s21, 1
      %s347 = smul.addr %s346, 2
      %s348 = smul.addr %s347, 8
      %s349 = scalar_lea.vmem %s10, %s348
      %p350 = scmp.lt.s32.totalorder %s21, 1
      %s351 = scalar_select %p350, %s21, 1
      %s352 = smul.addr %s351, 2
      %s353 = smul.addr %s352, 4
      %s354 = scalar_lea.vmem %s0, %s353
      %p355 = scmp.lt.s32.totalorder %s21, 1
      %s356 = scalar_select %p355, %s21, 1
      %s357 = smul.addr %s356, 2
      %s358 = smul.addr %s357, 8
      %s359 = scalar_lea.vmem %s10, %s358
      %vm360 = vcmask 130048
      %361 = vst.msk [vmem:[#allocation2] sm:$0xff] %vm360, 0.0
      %362 = vst.msk [vmem:[#allocation2 + $0x8] sm:$0xff] %vm360, 0.0
      %vm363 = vcmask 123904
      %364 = vst.msk [vmem:[#allocation2 + $0x10] sm:$0x3] %vm363, 0.0
      %s365 = scalar_lea.vmem [#allocation2], 408
      %366 = vst.msk [vmem:[%s365] sm:$0xff] %vm360, 0.0
      %367 = vst.msk [vmem:[%s365 + $0x8] sm:$0xff] %vm360, 0.0
      %368 = vst.msk [vmem:[%s365 + $0x10] sm:$0x3] %vm363, 0.0
      %vm369 = vcmask 122880
      %370 = vst.msk [vmem:[#allocation2] sm:$0x1] %vm369, 0.0
      %371 = vst.msk [vmem:[#allocation2 + $0x18] sm:$0x1] %vm369, 0.0
      %372 = vst.msk [vmem:[#allocation2 + $0x30] sm:$0x1] %vm369, 0.0
      %373 = vst.msk [vmem:[#allocation2 + $0x48] sm:$0x1] %vm369, 0.0
      %374 = vst.msk [vmem:[#allocation2 + $0x60] sm:$0x1] %vm369, 0.0
      %375 = vst.msk [vmem:[#allocation2 + $0x78] sm:$0x1] %vm369, 0.0
      %376 = vst.msk [vmem:[#allocation2 + $0x90] sm:$0x1] %vm369, 0.0
      %377 = vst.msk [vmem:[#allocation2 + $0xa8] sm:$0x1] %vm369, 0.0
      %378 = vst.msk [vmem:[#allocation2 + $0xc0] sm:$0x1] %vm369, 0.0
      %379 = vst.msk [vmem:[#allocation2 + $0xd8] sm:$0x1] %vm369, 0.0
      %380 = vst.msk [vmem:[#allocation2 + $0xf0] sm:$0x1] %vm369, 0.0
      %381 = vst.msk [vmem:[#allocation2 + $0x108] sm:$0x1] %vm369, 0.0
      %382 = vst.msk [vmem:[#allocation2 + $0x120] sm:$0x1] %vm369, 0.0
      %383 = vst.msk [vmem:[#allocation2 + $0x138] sm:$0x1] %vm369, 0.0
      %384 = vst.msk [vmem:[#allocation2 + $0x150] sm:$0x1] %vm369, 0.0
      %385 = vst.msk [vmem:[#allocation2 + $0x168] sm:$0x1] %vm369, 0.0
      %386 = vst.msk [vmem:[#allocation2 + $0x180] sm:$0x1] %vm369, 0.0
      %387 = vst.msk [vmem:[#allocation2 + $0x198] sm:$0x1] %vm369, 0.0
      %388 = vst.msk [vmem:[#allocation2 + $0x11] sm:$0x1] %vm369, 0.0
      %389 = vst.msk [vmem:[#allocation2 + $0x29] sm:$0x1] %vm369, 0.0
      %390 = vst.msk [vmem:[#allocation2 + $0x41] sm:$0x1] %vm369, 0.0
      %391 = vst.msk [vmem:[#allocation2 + $0x59] sm:$0x1] %vm369, 0.0
      %392 = vst.msk [vmem:[#allocation2 + $0x71] sm:$0x1] %vm369, 0.0
      %393 = vst.msk [vmem:[#allocation2 + $0x89] sm:$0x1] %vm369, 0.0
      %394 = vst.msk [vmem:[#allocation2 + $0xa1] sm:$0x1] %vm369, 0.0
      %395 = vst.msk [vmem:[#allocation2 + $0xb9] sm:$0x1] %vm369, 0.0
      %396 = vst.msk [vmem:[#allocation2 + $0xd1] sm:$0x1] %vm369, 0.0
      %397 = vst.msk [vmem:[#allocation2 + $0xe9] sm:$0x1] %vm369, 0.0
      %398 = vst.msk [vmem:[#allocation2 + $0x101] sm:$0x1] %vm369, 0.0
      %399 = vst.msk [vmem:[#allocation2 + $0x119] sm:$0x1] %vm369, 0.0
      %400 = vst.msk [vmem:[#allocation2 + $0x131] sm:$0x1] %vm369, 0.0
      %401 = vst.msk [vmem:[#allocation2 + $0x149] sm:$0x1] %vm369, 0.0
      %402 = vst.msk [vmem:[#allocation2 + $0x161] sm:$0x1] %vm369, 0.0
      %403 = vst.msk [vmem:[#allocation2 + $0x179] sm:$0x1] %vm369, 0.0
      %404 = vst.msk [vmem:[#allocation2 + $0x191] sm:$0x1] %vm369, 0.0
      %405 = vst.msk [vmem:[#allocation2 + $0x1a9] sm:$0x1] %vm369, 0.0
      %v406 = vld [vmem:[%s354] sm:$0xff]
      %v408 = vcombine.high %v406, %v406
      %410 = vxpose.xlu0.b32.start [1/16] %v406, 128
      %411 = vxpose.xlu0.b32.cont [2/16] 0.0, 128
      %412 = vxpose.xlu0.b32.cont [3/16] 0.0, 128
      %413 = vxpose.xlu0.b32.cont [4/16] 0.0, 128
      %414 = vxpose.xlu0.b32.cont [5/16] 0.0, 128
      %415 = vxpose.xlu0.b32.cont [6/16] 0.0, 128
      %416 = vxpose.xlu0.b32.cont [7/16] 0.0, 128
      %417 = vxpose.xlu0.b32.cont [8/16] 0.0, 128
      %418 = vxpose.xlu0.b32.cont [9/16] 0.0, 128
      %419 = vxpose.xlu0.b32.cont [10/16] 0.0, 128
      %420 = vxpose.xlu0.b32.cont [11/16] 0.0, 128
      %421 = vxpose.xlu0.b32.cont [12/16] 0.0, 128
      %422 = vxpose.xlu0.b32.cont [13/16] 0.0, 128
      %423 = vxpose.xlu0.b32.cont [14/16] 0.0, 128
      %424 = vxpose.xlu0.b32.cont [15/16] 0.0, 128
      %425 = vxpose.xlu0.b32.end [16/16] 0.0, 128
      %v426 = vpop.trf.xlu0
      %v427 = vpop.trf.xlu0
      %v428 = vpop.trf.xlu0
      %v429 = vpop.trf.xlu0
      %v430 = vpop.trf.xlu0
      %v431 = vpop.trf.xlu0
      %v432 = vpop.trf.xlu0
      %v433 = vpop.trf.xlu0
      %v434 = vpop.trf.xlu0
      %v435 = vpop.trf.xlu0
      %v436 = vpop.trf.xlu0
      %v437 = vpop.trf.xlu0
      %v438 = vpop.trf.xlu0
      %v439 = vpop.trf.xlu0
      %v440 = vpop.trf.xlu0
      %v441 = vpop.trf.xlu0
      %442 = vxpose.xlu0.b32.start [1/16] %v408, 128
      %443 = vxpose.xlu0.b32.cont [2/16] 0.0, 128
      %444 = vxpose.xlu0.b32.cont [3/16] 0.0, 128
      %445 = vxpose.xlu0.b32.cont [4/16] 0.0, 128
      %446 = vxpose.xlu0.b32.cont [5/16] 0.0, 128
      %447 = vxpose.xlu0.b32.cont [6/16] 0.0, 128
      %448 = vxpose.xlu0.b32.cont [7/16] 0.0, 128
      %449 = vxpose.xlu0.b32.cont [8/16] 0.0, 128
      %450 = vxpose.xlu0.b32.cont [9/16] 0.0, 128
      %451 = vxpose.xlu0.b32.cont [10/16] 0.0, 128
      %452 = vxpose.xlu0.b32.cont [11/16] 0.0, 128
      %453 = vxpose.xlu0.b32.cont [12/16] 0.0, 128
      %454 = vxpose.xlu0.b32.cont [13/16] 0.0, 128
      %455 = vxpose.xlu0.b32.cont [14/16] 0.0, 128
      %456 = vxpose.xlu0.b32.cont [15/16] 0.0, 128
      %457 = vxpose.xlu0.b32.end [16/16] 0.0, 128
      %v458 = vpop.trf.xlu0
      %v459 = vpop.trf.xlu0
      %v460 = vpop.trf.xlu0
      %v461 = vpop.trf.xlu0
      %v462 = vpop.trf.xlu0
      %v463 = vpop.trf.xlu0
      %v464 = vpop.trf.xlu0
      %v465 = vpop.trf.xlu0
      %v466 = vpop.trf.xlu0
      %v467 = vpop.trf.xlu0
      %v468 = vpop.trf.xlu0
      %v469 = vpop.trf.xlu0
      %v470 = vpop.trf.xlu0
      %v471 = vpop.trf.xlu0
      %v472 = vpop.trf.xlu0
      %v473 = vpop.trf.xlu0
      %s474 = scalar_lea.vmem [#allocation2], 24
      %vm475 = vcmask 31744
      %476 = vst.msk [vmem:[%s474 + $0x1] sm:$0xff] %vm475, %v426
      %477 = vst.msk [vmem:[%s474 + $0x9] sm:$0xff] %vm475, %v427
      %478 = vst.msk [vmem:[%s474 + $0x19] sm:$0xff] %vm475, %v428
      %479 = vst.msk [vmem:[%s474 + $0x21] sm:$0xff] %vm475, %v429
      %480 = vst.msk [vmem:[%s474 + $0x31] sm:$0xff] %vm475, %v430
      %481 = vst.msk [vmem:[%s474 + $0x39] sm:$0xff] %vm475, %v431
      %482 = vst.msk [vmem:[%s474 + $0x49] sm:$0xff] %vm475, %v432
      %483 = vst.msk [vmem:[%s474 + $0x51] sm:$0xff] %vm475, %v433
      %484 = vst.msk [vmem:[%s474 + $0x61] sm:$0xff] %vm475, %v434
      %485 = vst.msk [vmem:[%s474 + $0x69] sm:$0xff] %vm475, %v435
      %486 = vst.msk [vmem:[%s474 + $0x79] sm:$0xff] %vm475, %v436
      %487 = vst.msk [vmem:[%s474 + $0x81] sm:$0xff] %vm475, %v437
      %488 = vst.msk [vmem:[%s474 + $0x91] sm:$0xff] %vm475, %v438
      %489 = vst.msk [vmem:[%s474 + $0x99] sm:$0xff] %vm475, %v439
      %490 = vst.msk [vmem:[%s474 + $0xa9] sm:$0xff] %vm475, %v440
      %491 = vst.msk [vmem:[%s474 + $0xb1] sm:$0xff] %vm475, %v441
      %492 = vst.msk [vmem:[%s474 + $0xc1] sm:$0xff] %vm475, %v458
      %493 = vst.msk [vmem:[%s474 + $0xc9] sm:$0xff] %vm475, %v459
      %494 = vst.msk [vmem:[%s474 + $0xd9] sm:$0xff] %vm475, %v460
      %495 = vst.msk [vmem:[%s474 + $0xe1] sm:$0xff] %vm475, %v461
      %496 = vst.msk [vmem:[%s474 + $0xf1] sm:$0xff] %vm475, %v462
      %497 = vst.msk [vmem:[%s474 + $0xf9] sm:$0xff] %vm475, %v463
      %498 = vst.msk [vmem:[%s474 + $0x109] sm:$0xff] %vm475, %v464
      %499 = vst.msk [vmem:[%s474 + $0x111] sm:$0xff] %vm475, %v465
      %500 = vst.msk [vmem:[%s474 + $0x121] sm:$0xff] %vm475, %v466
      %501 = vst.msk [vmem:[%s474 + $0x129] sm:$0xff] %vm475, %v467
      %502 = vst.msk [vmem:[%s474 + $0x139] sm:$0xff] %vm475, %v468
      %503 = vst.msk [vmem:[%s474 + $0x141] sm:$0xff] %vm475, %v469
      %504 = vst.msk [vmem:[%s474 + $0x151] sm:$0xff] %vm475, %v470
      %505 = vst.msk [vmem:[%s474 + $0x159] sm:$0xff] %vm475, %v471
      %506 = vst.msk [vmem:[%s474 + $0x169] sm:$0xff] %vm475, %v472
      %507 = vst.msk [vmem:[%s474 + $0x171] sm:$0xff] %vm475, %v473
      %v508 = vld [vmem:[#allocation2] sm:$0xff]
      %v509 = vld [vmem:[#allocation2 + $0x8] sm:$0xff]
      %v510 = vld [vmem:[#allocation2 + $0x18] sm:$0xff]
      %v511 = vld [vmem:[#allocation2 + $0x20] sm:$0xff]
      %v512 = vld [vmem:[#allocation2 + $0x30] sm:$0xff]
      %v513 = vld [vmem:[#allocation2 + $0x38] sm:$0xff]
      %v514 = vld [vmem:[#allocation2 + $0x48] sm:$0xff]
      %v515 = vld [vmem:[#allocation2 + $0x50] sm:$0xff]
      %v516 = vld [vmem:[#allocation2 + $0x60] sm:$0xff]
      %v517 = vld [vmem:[#allocation2 + $0x68] sm:$0xff]
      %v518 = vld [vmem:[#allocation2 + $0x78] sm:$0xff]
      %v519 = vld [vmem:[#allocation2 + $0x80] sm:$0xff]
      %v520 = vld [vmem:[#allocation2 + $0x90] sm:$0xff]
      %v521 = vld [vmem:[#allocation2 + $0x98] sm:$0xff]
      %v522 = vld [vmem:[#allocation2 + $0xa8] sm:$0xff]
      %v523 = vld [vmem:[#allocation2 + $0xb0] sm:$0xff]
      %v524 = vld [vmem:[#allocation2 + $0xc0] sm:$0xff]
      %v525 = vld [vmem:[#allocation2 + $0xc8] sm:$0xff]
      %v526 = vld [vmem:[#allocation2 + $0xd8] sm:$0xff]
      %v527 = vld [vmem:[#allocation2 + $0xe0] sm:$0xff]
      %v528 = vld [vmem:[#allocation2 + $0xf0] sm:$0xff]
      %v529 = vld [vmem:[#allocation2 + $0xf8] sm:$0xff]
      %v530 = vld [vmem:[#allocation2 + $0x108] sm:$0xff]
      %v531 = vld [vmem:[#allocation2 + $0x110] sm:$0xff]
      %v532 = vld [vmem:[#allocation2 + $0x120] sm:$0xff]
      %v533 = vld [vmem:[#allocation2 + $0x128] sm:$0xff]
      %v534 = vld [vmem:[#allocation2 + $0x138] sm:$0xff]
      %v535 = vld [vmem:[#allocation2 + $0x140] sm:$0xff]
      %v536 = vld [vmem:[#allocation2 + $0x150] sm:$0xff]
      %v537 = vld [vmem:[#allocation2 + $0x158] sm:$0xff]
      %v538 = vld [vmem:[#allocation2 + $0x168] sm:$0xff]
      %v539 = vld [vmem:[#allocation2 + $0x170] sm:$0xff]
      %v540 = vld [vmem:[#allocation2 + $0x1] sm:$0xff]
      %v541 = vld [vmem:[#allocation2 + $0x9] sm:$0xff]
      %v542 = vld [vmem:[#allocation2 + $0x19] sm:$0xff]
      %v543 = vld [vmem:[#allocation2 + $0x21] sm:$0xff]
      %v544 = vld [vmem:[#allocation2 + $0x31] sm:$0xff]
      %v545 = vld [vmem:[#allocation2 + $0x39] sm:$0xff]
      %v546 = vld [vmem:[#allocation2 + $0x49] sm:$0xff]
      %v547 = vld [vmem:[#allocation2 + $0x51] sm:$0xff]
      %v548 = vld [vmem:[#allocation2 + $0x61] sm:$0xff]
      %v549 = vld [vmem:[#allocation2 + $0x69] sm:$0xff]
      %v550 = vld [vmem:[#allocation2 + $0x79] sm:$0xff]
      %v551 = vld [vmem:[#allocation2 + $0x81] sm:$0xff]
      %v552 = vld [vmem:[#allocation2 + $0x91] sm:$0xff]
      %v553 = vld [vmem:[#allocation2 + $0x99] sm:$0xff]
      %v554 = vld [vmem:[#allocation2 + $0xa9] sm:$0xff]
      %v555 = vld [vmem:[#allocation2 + $0xb1] sm:$0xff]
      %v556 = vld [vmem:[#allocation2 + $0xc1] sm:$0xff]
      %v557 = vld [vmem:[#allocation2 + $0xc9] sm:$0xff]
      %v558 = vld [vmem:[#allocation2 + $0xd9] sm:$0xff]
      %v559 = vld [vmem:[#allocation2 + $0xe1] sm:$0xff]
      %v560 = vld [vmem:[#allocation2 + $0xf1] sm:$0xff]
      %v561 = vld [vmem:[#allocation2 + $0xf9] sm:$0xff]
      %v562 = vld [vmem:[#allocation2 + $0x109] sm:$0xff]
      %v563 = vld [vmem:[#allocation2 + $0x111] sm:$0xff]
      %v564 = vld [vmem:[#allocation2 + $0x121] sm:$0xff]
      %v565 = vld [vmem:[#allocation2 + $0x129] sm:$0xff]
      %v566 = vld [vmem:[#allocation2 + $0x139] sm:$0xff]
      %v567 = vld [vmem:[#allocation2 + $0x141] sm:$0xff]
      %v568 = vld [vmem:[#allocation2 + $0x151] sm:$0xff]
      %v569 = vld [vmem:[#allocation2 + $0x159] sm:$0xff]
      %v570 = vld [vmem:[#allocation2 + $0x169] sm:$0xff]
      %v571 = vld [vmem:[#allocation2 + $0x171] sm:$0xff]
      %v572 = vld [vmem:[#allocation2 + $0x2] sm:$0xff]
      %v573 = vld [vmem:[#allocation2 + $0xa] sm:$0xff]
      %v574 = vld [vmem:[#allocation2 + $0x1a] sm:$0xff]
      %v575 = vld [vmem:[#allocation2 + $0x22] sm:$0xff]
      %v576 = vld [vmem:[#allocation2 + $0x32] sm:$0xff]
      %v577 = vld [vmem:[#allocation2 + $0x3a] sm:$0xff]
      %v578 = vld [vmem:[#allocation2 + $0x4a] sm:$0xff]
      %v579 = vld [vmem:[#allocation2 + $0x52] sm:$0xff]
      %v580 = vld [vmem:[#allocation2 + $0x62] sm:$0xff]
      %v581 = vld [vmem:[#allocation2 + $0x6a] sm:$0xff]
      %v582 = vld [vmem:[#allocation2 + $0x7a] sm:$0xff]
      %v583 = vld [vmem:[#allocation2 + $0x82] sm:$0xff]
      %v584 = vld [vmem:[#allocation2 + $0x92] sm:$0xff]
      %v585 = vld [vmem:[#allocation2 + $0x9a] sm:$0xff]
      %v586 = vld [vmem:[#allocation2 + $0xaa] sm:$0xff]
      %v587 = vld [vmem:[#allocation2 + $0xb2] sm:$0xff]
      %v588 = vld [vmem:[#allocation2 + $0xc2] sm:$0xff]
      %v589 = vld [vmem:[#allocation2 + $0xca] sm:$0xff]
      %v590 = vld [vmem:[#allocation2 + $0xda] sm:$0xff]
      %v591 = vld [vmem:[#allocation2 + $0xe2] sm:$0xff]
      %v592 = vld [vmem:[#allocation2 + $0xf2] sm:$0xff]
      %v593 = vld [vmem:[#allocation2 + $0xfa] sm:$0xff]
      %v594 = vld [vmem:[#allocation2 + $0x10a] sm:$0xff]
      %v595 = vld [vmem:[#allocation2 + $0x112] sm:$0xff]
      %v596 = vld [vmem:[#allocation2 + $0x122] sm:$0xff]
      %v597 = vld [vmem:[#allocation2 + $0x12a] sm:$0xff]
      %v598 = vld [vmem:[#allocation2 + $0x13a] sm:$0xff]
      %v599 = vld [vmem:[#allocation2 + $0x142] sm:$0xff]
      %v600 = vld [vmem:[#allocation2 + $0x152] sm:$0xff]
      %v601 = vld [vmem:[#allocation2 + $0x15a] sm:$0xff]
      %v602 = vld [vmem:[#allocation2 + $0x16a] sm:$0xff]
      %v603 = vld [vmem:[#allocation2 + $0x172] sm:$0xff]
      %v604 = vld [vmem:[%s474] sm:$0xff]
      %v605 = vld [vmem:[%s474 + $0x8] sm:$0xff]
      %v606 = vld [vmem:[%s474 + $0x18] sm:$0xff]
      %v607 = vld [vmem:[%s474 + $0x20] sm:$0xff]
      %v608 = vld [vmem:[%s474 + $0x30] sm:$0xff]
      %v609 = vld [vmem:[%s474 + $0x38] sm:$0xff]
      %v610 = vld [vmem:[%s474 + $0x48] sm:$0xff]
      %v611 = vld [vmem:[%s474 + $0x50] sm:$0xff]
      %v612 = vld [vmem:[%s474 + $0x60] sm:$0xff]
      %v613 = vld [vmem:[%s474 + $0x68] sm:$0xff]
      %v614 = vld [vmem:[%s474 + $0x78] sm:$0xff]
      %v615 = vld [vmem:[%s474 + $0x80] sm:$0xff]
      %v616 = vld [vmem:[%s474 + $0x90] sm:$0xff]
      %v617 = vld [vmem:[%s474 + $0x98] sm:$0xff]
      %v618 = vld [vmem:[%s474 + $0xa8] sm:$0xff]
      %v619 = vld [vmem:[%s474 + $0xb0] sm:$0xff]
      %v620 = vld [vmem:[%s474 + $0xc0] sm:$0xff]
      %v621 = vld [vmem:[%s474 + $0xc8] sm:$0xff]
      %v622 = vld [vmem:[%s474 + $0xd8] sm:$0xff]
      %v623 = vld [vmem:[%s474 + $0xe0] sm:$0xff]
      %v624 = vld [vmem:[%s474 + $0xf0] sm:$0xff]
      %v625 = vld [vmem:[%s474 + $0xf8] sm:$0xff]
      %v626 = vld [vmem:[%s474 + $0x108] sm:$0xff]
      %v627 = vld [vmem:[%s474 + $0x110] sm:$0xff]
      %v628 = vld [vmem:[%s474 + $0x120] sm:$0xff]
      %v629 = vld [vmem:[%s474 + $0x128] sm:$0xff]
      %v630 = vld [vmem:[%s474 + $0x138] sm:$0xff]
      %v631 = vld [vmem:[%s474 + $0x140] sm:$0xff]
      %v632 = vld [vmem:[%s474 + $0x150] sm:$0xff]
      %v633 = vld [vmem:[%s474 + $0x158] sm:$0xff]
      %v634 = vld [vmem:[%s474 + $0x168] sm:$0xff]
      %v635 = vld [vmem:[%s474 + $0x170] sm:$0xff]
      %v636 = vld [vmem:[%s474 + $0x1] sm:$0xff]
      %v637 = vld [vmem:[%s474 + $0x9] sm:$0xff]
      %v638 = vld [vmem:[%s474 + $0x19] sm:$0xff]
      %v639 = vld [vmem:[%s474 + $0x21] sm:$0xff]
      %v640 = vld [vmem:[%s474 + $0x31] sm:$0xff]
      %v641 = vld [vmem:[%s474 + $0x39] sm:$0xff]
      %v642 = vld [vmem:[%s474 + $0x49] sm:$0xff]
      %v643 = vld [vmem:[%s474 + $0x51] sm:$0xff]
      %v644 = vld [vmem:[%s474 + $0x61] sm:$0xff]
      %v645 = vld [vmem:[%s474 + $0x69] sm:$0xff]
      %v646 = vld [vmem:[%s474 + $0x79] sm:$0xff]
      %v647 = vld [vmem:[%s474 + $0x81] sm:$0xff]
      %v648 = vld [vmem:[%s474 + $0x91] sm:$0xff]
      %v649 = vld [vmem:[%s474 + $0x99] sm:$0xff]
      %v650 = vld [vmem:[%s474 + $0xa9] sm:$0xff]
      %v651 = vld [vmem:[%s474 + $0xb1] sm:$0xff]
      %v652 = vld [vmem:[%s474 + $0xc1] sm:$0xff]
      %v653 = vld [vmem:[%s474 + $0xc9] sm:$0xff]
      %v654 = vld [vmem:[%s474 + $0xd9] sm:$0xff]
      %v655 = vld [vmem:[%s474 + $0xe1] sm:$0xff]
      %v656 = vld [vmem:[%s474 + $0xf1] sm:$0xff]
      %v657 = vld [vmem:[%s474 + $0xf9] sm:$0xff]
      %v658 = vld [vmem:[%s474 + $0x109] sm:$0xff]
      %v659 = vld [vmem:[%s474 + $0x111] sm:$0xff]
      %v660 = vld [vmem:[%s474 + $0x121] sm:$0xff]
      %v661 = vld [vmem:[%s474 + $0x129] sm:$0xff]
      %v662 = vld [vmem:[%s474 + $0x139] sm:$0xff]
      %v663 = vld [vmem:[%s474 + $0x141] sm:$0xff]
      %v664 = vld [vmem:[%s474 + $0x151] sm:$0xff]
      %v665 = vld [vmem:[%s474 + $0x159] sm:$0xff]
      %v666 = vld [vmem:[%s474 + $0x169] sm:$0xff]
      %v667 = vld [vmem:[%s474 + $0x171] sm:$0xff]
      %v668 = vld [vmem:[%s474 + $0x2] sm:$0xff]
      %v669 = vld [vmem:[%s474 + $0xa] sm:$0xff]
      %v670 = vld [vmem:[%s474 + $0x1a] sm:$0xff]
      %v671 = vld [vmem:[%s474 + $0x22] sm:$0xff]
      %v672 = vld [vmem:[%s474 + $0x32] sm:$0xff]
      %v673 = vld [vmem:[%s474 + $0x3a] sm:$0xff]
      %v674 = vld [vmem:[%s474 + $0x4a] sm:$0xff]
      %v675 = vld [vmem:[%s474 + $0x52] sm:$0xff]
      %v676 = vld [vmem:[%s474 + $0x62] sm:$0xff]
      %v677 = vld [vmem:[%s474 + $0x6a] sm:$0xff]
      %v678 = vld [vmem:[%s474 + $0x7a] sm:$0xff]
      %v679 = vld [vmem:[%s474 + $0x82] sm:$0xff]
      %v680 = vld [vmem:[%s474 + $0x92] sm:$0xff]
      %v681 = vld [vmem:[%s474 + $0x9a] sm:$0xff]
      %v682 = vld [vmem:[%s474 + $0xaa] sm:$0xff]
      %v683 = vld [vmem:[%s474 + $0xb2] sm:$0xff]
      %v684 = vld [vmem:[%s474 + $0xc2] sm:$0xff]
      %v685 = vld [vmem:[%s474 + $0xca] sm:$0xff]
      %v686 = vld [vmem:[%s474 + $0xda] sm:$0xff]
      %v687 = vld [vmem:[%s474 + $0xe2] sm:$0xff]
      %v688 = vld [vmem:[%s474 + $0xf2] sm:$0xff]
      %v689 = vld [vmem:[%s474 + $0xfa] sm:$0xff]
      %v690 = vld [vmem:[%s474 + $0x10a] sm:$0xff]
      %v691 = vld [vmem:[%s474 + $0x112] sm:$0xff]
      %v692 = vld [vmem:[%s474 + $0x122] sm:$0xff]
      %v693 = vld [vmem:[%s474 + $0x12a] sm:$0xff]
      %v694 = vld [vmem:[%s474 + $0x13a] sm:$0xff]
      %v695 = vld [vmem:[%s474 + $0x142] sm:$0xff]
      %v696 = vld [vmem:[%s474 + $0x152] sm:$0xff]
      %v697 = vld [vmem:[%s474 + $0x15a] sm:$0xff]
      %v698 = vld [vmem:[%s474 + $0x16a] sm:$0xff]
      %v699 = vld [vmem:[%s474 + $0x172] sm:$0xff]
      %s700 = scalar_lea.vmem [#allocation2], 48
      %v701 = vld [vmem:[%s700] sm:$0xff]
      %v702 = vld [vmem:[%s700 + $0x8] sm:$0xff]
      %v703 = vld [vmem:[%s700 + $0x18] sm:$0xff]
      %v704 = vld [vmem:[%s700 + $0x20] sm:$0xff]
      %v705 = vld [vmem:[%s700 + $0x30] sm:$0xff]
      %v706 = vld [vmem:[%s700 + $0x38] sm:$0xff]
      %v707 = vld [vmem:[%s700 + $0x48] sm:$0xff]
      %v708 = vld [vmem:[%s700 + $0x50] sm:$0xff]
      %v709 = vld [vmem:[%s700 + $0x60] sm:$0xff]
      %v710 = vld [vmem:[%s700 + $0x68] sm:$0xff]
      %v711 = vld [vmem:[%s700 + $0x78] sm:$0xff]
      %v712 = vld [vmem:[%s700 + $0x80] sm:$0xff]
      %v713 = vld [vmem:[%s700 + $0x90] sm:$0xff]
      %v714 = vld [vmem:[%s700 + $0x98] sm:$0xff]
      %v715 = vld [vmem:[%s700 + $0xa8] sm:$0xff]
      %v716 = vld [vmem:[%s700 + $0xb0] sm:$0xff]
      %v717 = vld [vmem:[%s700 + $0xc0] sm:$0xff]
      %v718 = vld [vmem:[%s700 + $0xc8] sm:$0xff]
      %v719 = vld [vmem:[%s700 + $0xd8] sm:$0xff]
      %v720 = vld [vmem:[%s700 + $0xe0] sm:$0xff]
      %v721 = vld [vmem:[%s700 + $0xf0] sm:$0xff]
      %v722 = vld [vmem:[%s700 + $0xf8] sm:$0xff]
      %v723 = vld [vmem:[%s700 + $0x108] sm:$0xff]
      %v724 = vld [vmem:[%s700 + $0x110] sm:$0xff]
      %v725 = vld [vmem:[%s700 + $0x120] sm:$0xff]
      %v726 = vld [vmem:[%s700 + $0x128] sm:$0xff]
      %v727 = vld [vmem:[%s700 + $0x138] sm:$0xff]
      %v728 = vld [vmem:[%s700 + $0x140] sm:$0xff]
      %v729 = vld [vmem:[%s700 + $0x150] sm:$0xff]
      %v730 = vld [vmem:[%s700 + $0x158] sm:$0xff]
      %v731 = vld [vmem:[%s700 + $0x168] sm:$0xff]
      %v732 = vld [vmem:[%s700 + $0x170] sm:$0xff]
      %v733 = vld [vmem:[%s700 + $0x1] sm:$0xff]
      %v734 = vld [vmem:[%s700 + $0x9] sm:$0xff]
      %v735 = vld [vmem:[%s700 + $0x19] sm:$0xff]
      %v736 = vld [vmem:[%s700 + $0x21] sm:$0xff]
      %v737 = vld [vmem:[%s700 + $0x31] sm:$0xff]
      %v738 = vld [vmem:[%s700 + $0x39] sm:$0xff]
      %v739 = vld [vmem:[%s700 + $0x49] sm:$0xff]
      %v740 = vld [vmem:[%s700 + $0x51] sm:$0xff]
      %v741 = vld [vmem:[%s700 + $0x61] sm:$0xff]
      %v742 = vld [vmem:[%s700 + $0x69] sm:$0xff]
      %v743 = vld [vmem:[%s700 + $0x79] sm:$0xff]
      %v744 = vld [vmem:[%s700 + $0x81] sm:$0xff]
      %v745 = vld [vmem:[%s700 + $0x91] sm:$0xff]
      %v746 = vld [vmem:[%s700 + $0x99] sm:$0xff]
      %v747 = vld [vmem:[%s700 + $0xa9] sm:$0xff]
      %v748 = vld [vmem:[%s700 + $0xb1] sm:$0xff]
      %v749 = vld [vmem:[%s700 + $0xc1] sm:$0xff]
      %v750 = vld [vmem:[%s700 + $0xc9] sm:$0xff]
      %v751 = vld [vmem:[%s700 + $0xd9] sm:$0xff]
      %v752 = vld [vmem:[%s700 + $0xe1] sm:$0xff]
      %v753 = vld [vmem:[%s700 + $0xf1] sm:$0xff]
      %v754 = vld [vmem:[%s700 + $0xf9] sm:$0xff]
      %v755 = vld [vmem:[%s700 + $0x109] sm:$0xff]
      %v756 = vld [vmem:[%s700 + $0x111] sm:$0xff]
      %v757 = vld [vmem:[%s700 + $0x121] sm:$0xff]
      %v758 = vld [vmem:[%s700 + $0x129] sm:$0xff]
      %v759 = vld [vmem:[%s700 + $0x139] sm:$0xff]
      %v760 = vld [vmem:[%s700 + $0x141] sm:$0xff]
      %v761 = vld [vmem:[%s700 + $0x151] sm:$0xff]
      %v762 = vld [vmem:[%s700 + $0x159] sm:$0xff]
      %v763 = vld [vmem:[%s700 + $0x169] sm:$0xff]
      %v764 = vld [vmem:[%s700 + $0x171] sm:$0xff]
      %v765 = vld [vmem:[%s700 + $0x2] sm:$0xff]
      %v766 = vld [vmem:[%s700 + $0xa] sm:$0xff]
      %v767 = vld [vmem:[%s700 + $0x1a] sm:$0xff]
      %v768 = vld [vmem:[%s700 + $0x22] sm:$0xff]
      %v769 = vld [vmem:[%s700 + $0x32] sm:$0xff]
      %v770 = vld [vmem:[%s700 + $0x3a] sm:$0xff]
      %v771 = vld [vmem:[%s700 + $0x4a] sm:$0xff]
      %v772 = vld [vmem:[%s700 + $0x52] sm:$0xff]
      %v773 = vld [vmem:[%s700 + $0x62] sm:$0xff]
      %v774 = vld [vmem:[%s700 + $0x6a] sm:$0xff]
      %v775 = vld [vmem:[%s700 + $0x7a] sm:$0xff]
      %v776 = vld [vmem:[%s700 + $0x82] sm:$0xff]
      %v777 = vld [vmem:[%s700 + $0x92] sm:$0xff]
      %v778 = vld [vmem:[%s700 + $0x9a] sm:$0xff]
      %v779 = vld [vmem:[%s700 + $0xaa] sm:$0xff]
      %v780 = vld [vmem:[%s700 + $0xb2] sm:$0xff]
      %v781 = vld [vmem:[%s700 + $0xc2] sm:$0xff]
      %v782 = vld [vmem:[%s700 + $0xca] sm:$0xff]
      %v783 = vld [vmem:[%s700 + $0xda] sm:$0xff]
      %v784 = vld [vmem:[%s700 + $0xe2] sm:$0xff]
      %v785 = vld [vmem:[%s700 + $0xf2] sm:$0xff]
      %v786 = vld [vmem:[%s700 + $0xfa] sm:$0xff]
      %v787 = vld [vmem:[%s700 + $0x10a] sm:$0xff]
      %v788 = vld [vmem:[%s700 + $0x112] sm:$0xff]
      %v789 = vld [vmem:[%s700 + $0x122] sm:$0xff]
      %v790 = vld [vmem:[%s700 + $0x12a] sm:$0xff]
      %v791 = vld [vmem:[%s700 + $0x13a] sm:$0xff]
      %v792 = vld [vmem:[%s700 + $0x142] sm:$0xff]
      %v793 = vld [vmem:[%s700 + $0x152] sm:$0xff]
      %v794 = vld [vmem:[%s700 + $0x15a] sm:$0xff]
      %v795 = vld [vmem:[%s700 + $0x16a] sm:$0xff]
      %v796 = vld [vmem:[%s700 + $0x172] sm:$0xff]
      %829 = vrot.lane.b32.xlu0 %v540, 4
      %v830 = vpop.permute.xlu0 %829
      %831 = vrot.lane.b32.xlu0 %v541, 4
      %v832 = vpop.permute.xlu0 %831
      %833 = vrot.lane.b32.xlu0 %v542, 4
      %v834 = vpop.permute.xlu0 %833
      %835 = vrot.lane.b32.xlu0 %v543, 4
      %v836 = vpop.permute.xlu0 %835
      %837 = vrot.lane.b32.xlu0 %v544, 4
      %v838 = vpop.permute.xlu0 %837
      %839 = vrot.lane.b32.xlu0 %v545, 4
      %v840 = vpop.permute.xlu0 %839
      %841 = vrot.lane.b32.xlu0 %v546, 4
      %v842 = vpop.permute.xlu0 %841
      %843 = vrot.lane.b32.xlu0 %v547, 4
      %v844 = vpop.permute.xlu0 %843
      %845 = vrot.lane.b32.xlu0 %v548, 4
      %v846 = vpop.permute.xlu0 %845
      %847 = vrot.lane.b32.xlu0 %v549, 4
      %v848 = vpop.permute.xlu0 %847
      %849 = vrot.lane.b32.xlu0 %v550, 4
      %v850 = vpop.permute.xlu0 %849
      %851 = vrot.lane.b32.xlu0 %v551, 4
      %v852 = vpop.permute.xlu0 %851
      %853 = vrot.lane.b32.xlu0 %v552, 4
      %v854 = vpop.permute.xlu0 %853
      %855 = vrot.lane.b32.xlu0 %v553, 4
      %v856 = vpop.permute.xlu0 %855
      %857 = vrot.lane.b32.xlu0 %v554, 4
      %v858 = vpop.permute.xlu0 %857
      %859 = vrot.lane.b32.xlu0 %v555, 4
      %v860 = vpop.permute.xlu0 %859
      %861 = vrot.lane.b32.xlu0 %v556, 4
      %v862 = vpop.permute.xlu0 %861
      %863 = vrot.lane.b32.xlu0 %v557, 4
      %v864 = vpop.permute.xlu0 %863
      %865 = vrot.lane.b32.xlu0 %v558, 4
      %v866 = vpop.permute.xlu0 %865
      %867 = vrot.lane.b32.xlu0 %v559, 4
      %v868 = vpop.permute.xlu0 %867
      %869 = vrot.lane.b32.xlu0 %v560, 4
      %v870 = vpop.permute.xlu0 %869
      %871 = vrot.lane.b32.xlu0 %v561, 4
      %v872 = vpop.permute.xlu0 %871
      %873 = vrot.lane.b32.xlu0 %v562, 4
      %v874 = vpop.permute.xlu0 %873
      %875 = vrot.lane.b32.xlu0 %v563, 4
      %v876 = vpop.permute.xlu0 %875
      %877 = vrot.lane.b32.xlu0 %v564, 4
      %v878 = vpop.permute.xlu0 %877
      %879 = vrot.lane.b32.xlu0 %v565, 4
      %v880 = vpop.permute.xlu0 %879
      %881 = vrot.lane.b32.xlu0 %v566, 4
      %v882 = vpop.permute.xlu0 %881
      %883 = vrot.lane.b32.xlu0 %v567, 4
      %v884 = vpop.permute.xlu0 %883
      %885 = vrot.lane.b32.xlu0 %v568, 4
      %v886 = vpop.permute.xlu0 %885
      %887 = vrot.lane.b32.xlu0 %v569, 4
      %v888 = vpop.permute.xlu0 %887
      %889 = vrot.lane.b32.xlu0 %v570, 4
      %v890 = vpop.permute.xlu0 %889
      %891 = vrot.lane.b32.xlu0 %v571, 4
      %v892 = vpop.permute.xlu0 %891
      %957 = vrot.lane.b32.xlu0 %v572, 8
      %v958 = vpop.permute.xlu0 %957
      %959 = vrot.lane.b32.xlu0 %v573, 8
      %v960 = vpop.permute.xlu0 %959
      %961 = vrot.lane.b32.xlu0 %v574, 8
      %v962 = vpop.permute.xlu0 %961
      %963 = vrot.lane.b32.xlu0 %v575, 8
      %v964 = vpop.permute.xlu0 %963
      %965 = vrot.lane.b32.xlu0 %v576, 8
      %v966 = vpop.permute.xlu0 %965
      %967 = vrot.lane.b32.xlu0 %v577, 8
      %v968 = vpop.permute.xlu0 %967
      %969 = vrot.lane.b32.xlu0 %v578, 8
      %v970 = vpop.permute.xlu0 %969
      %971 = vrot.lane.b32.xlu0 %v579, 8
      %v972 = vpop.permute.xlu0 %971
      %973 = vrot.lane.b32.xlu0 %v580, 8
      %v974 = vpop.permute.xlu0 %973
      %975 = vrot.lane.b32.xlu0 %v581, 8
      %v976 = vpop.permute.xlu0 %975
      %977 = vrot.lane.b32.xlu0 %v582, 8
      %v978 = vpop.permute.xlu0 %977
      %979 = vrot.lane.b32.xlu0 %v583, 8
      %v980 = vpop.permute.xlu0 %979
      %981 = vrot.lane.b32.xlu0 %v584, 8
      %v982 = vpop.permute.xlu0 %981
      %983 = vrot.lane.b32.xlu0 %v585, 8
      %v984 = vpop.permute.xlu0 %983
      %985 = vrot.lane.b32.xlu0 %v586, 8
      %v986 = vpop.permute.xlu0 %985
      %987 = vrot.lane.b32.xlu0 %v587, 8
      %v988 = vpop.permute.xlu0 %987
      %989 = vrot.lane.b32.xlu0 %v588, 8
      %v990 = vpop.permute.xlu0 %989
      %991 = vrot.lane.b32.xlu0 %v589, 8
      %v992 = vpop.permute.xlu0 %991
      %993 = vrot.lane.b32.xlu0 %v590, 8
      %v994 = vpop.permute.xlu0 %993
      %995 = vrot.lane.b32.xlu0 %v591, 8
      %v996 = vpop.permute.xlu0 %995
      %997 = vrot.lane.b32.xlu0 %v592, 8
      %v998 = vpop.permute.xlu0 %997
      %999 = vrot.lane.b32.xlu0 %v593, 8
      %v1000 = vpop.permute.xlu0 %999
      %1001 = vrot.lane.b32.xlu0 %v594, 8
      %v1002 = vpop.permute.xlu0 %1001
      %1003 = vrot.lane.b32.xlu0 %v595, 8
      %v1004 = vpop.permute.xlu0 %1003
      %1005 = vrot.lane.b32.xlu0 %v596, 8
      %v1006 = vpop.permute.xlu0 %1005
      %1007 = vrot.lane.b32.xlu0 %v597, 8
      %v1008 = vpop.permute.xlu0 %1007
      %1009 = vrot.lane.b32.xlu0 %v598, 8
      %v1010 = vpop.permute.xlu0 %1009
      %1011 = vrot.lane.b32.xlu0 %v599, 8
      %v1012 = vpop.permute.xlu0 %1011
      %1013 = vrot.lane.b32.xlu0 %v600, 8
      %v1014 = vpop.permute.xlu0 %1013
      %1015 = vrot.lane.b32.xlu0 %v601, 8
      %v1016 = vpop.permute.xlu0 %1015
      %1017 = vrot.lane.b32.xlu0 %v602, 8
      %v1018 = vpop.permute.xlu0 %1017
      %1019 = vrot.lane.b32.xlu0 %v603, 8
      %v1020 = vpop.permute.xlu0 %1019
      %1085 = vrot.lane.b32.xlu0 %v604, 12
      %v1086 = vpop.permute.xlu0 %1085
      %1087 = vrot.lane.b32.xlu0 %v605, 12
      %v1088 = vpop.permute.xlu0 %1087
      %1089 = vrot.lane.b32.xlu0 %v606, 12
      %v1090 = vpop.permute.xlu0 %1089
      %1091 = vrot.lane.b32.xlu0 %v607, 12
      %v1092 = vpop.permute.xlu0 %1091
      %1093 = vrot.lane.b32.xlu0 %v608, 12
      %v1094 = vpop.permute.xlu0 %1093
      %1095 = vrot.lane.b32.xlu0 %v609, 12
      %v1096 = vpop.permute.xlu0 %1095
      %1097 = vrot.lane.b32.xlu0 %v610, 12
      %v1098 = vpop.permute.xlu0 %1097
      %1099 = vrot.lane.b32.xlu0 %v611, 12
      %v1100 = vpop.permute.xlu0 %1099
      %1101 = vrot.lane.b32.xlu0 %v612, 12
      %v1102 = vpop.permute.xlu0 %1101
      %1103 = vrot.lane.b32.xlu0 %v613, 12
      %v1104 = vpop.permute.xlu0 %1103
      %1105 = vrot.lane.b32.xlu0 %v614, 12
      %v1106 = vpop.permute.xlu0 %1105
      %1107 = vrot.lane.b32.xlu0 %v615, 12
      %v1108 = vpop.permute.xlu0 %1107
      %1109 = vrot.lane.b32.xlu0 %v616, 12
      %v1110 = vpop.permute.xlu0 %1109
      %1111 = vrot.lane.b32.xlu0 %v617, 12
      %v1112 = vpop.permute.xlu0 %1111
      %1113 = vrot.lane.b32.xlu0 %v618, 12
      %v1114 = vpop.permute.xlu0 %1113
      %1115 = vrot.lane.b32.xlu0 %v619, 12
      %v1116 = vpop.permute.xlu0 %1115
      %1117 = vrot.lane.b32.xlu0 %v620, 12
      %v1118 = vpop.permute.xlu0 %1117
      %1119 = vrot.lane.b32.xlu0 %v621, 12
      %v1120 = vpop.permute.xlu0 %1119
      %1121 = vrot.lane.b32.xlu0 %v622, 12
      %v1122 = vpop.permute.xlu0 %1121
      %1123 = vrot.lane.b32.xlu0 %v623, 12
      %v1124 = vpop.permute.xlu0 %1123
      %1125 = vrot.lane.b32.xlu0 %v624, 12
      %v1126 = vpop.permute.xlu0 %1125
      %1127 = vrot.lane.b32.xlu0 %v625, 12
      %v1128 = vpop.permute.xlu0 %1127
      %1129 = vrot.lane.b32.xlu0 %v626, 12
      %v1130 = vpop.permute.xlu0 %1129
      %1131 = vrot.lane.b32.xlu0 %v627, 12
      %v1132 = vpop.permute.xlu0 %1131
      %1133 = vrot.lane.b32.xlu0 %v628, 12
      %v1134 = vpop.permute.xlu0 %1133
      %1135 = vrot.lane.b32.xlu0 %v629, 12
      %v1136 = vpop.permute.xlu0 %1135
      %1137 = vrot.lane.b32.xlu0 %v630, 12
      %v1138 = vpop.permute.xlu0 %1137
      %1139 = vrot.lane.b32.xlu0 %v631, 12
      %v1140 = vpop.permute.xlu0 %1139
      %1141 = vrot.lane.b32.xlu0 %v632, 12
      %v1142 = vpop.permute.xlu0 %1141
      %1143 = vrot.lane.b32.xlu0 %v633, 12
      %v1144 = vpop.permute.xlu0 %1143
      %1145 = vrot.lane.b32.xlu0 %v634, 12
      %v1146 = vpop.permute.xlu0 %1145
      %1147 = vrot.lane.b32.xlu0 %v635, 12
      %v1148 = vpop.permute.xlu0 %1147
      %1213 = vrot.lane.b32.xlu0 %v636, 16
      %v1214 = vpop.permute.xlu0 %1213
      %1215 = vrot.lane.b32.xlu0 %v637, 16
      %v1216 = vpop.permute.xlu0 %1215
      %1217 = vrot.lane.b32.xlu0 %v638, 16
      %v1218 = vpop.permute.xlu0 %1217
      %1219 = vrot.lane.b32.xlu0 %v639, 16
      %v1220 = vpop.permute.xlu0 %1219
      %1221 = vrot.lane.b32.xlu0 %v640, 16
      %v1222 = vpop.permute.xlu0 %1221
      %1223 = vrot.lane.b32.xlu0 %v641, 16
      %v1224 = vpop.permute.xlu0 %1223
      %1225 = vrot.lane.b32.xlu0 %v642, 16
      %v1226 = vpop.permute.xlu0 %1225
      %1227 = vrot.lane.b32.xlu0 %v643, 16
      %v1228 = vpop.permute.xlu0 %1227
      %1229 = vrot.lane.b32.xlu0 %v644, 16
      %v1230 = vpop.permute.xlu0 %1229
      %1231 = vrot.lane.b32.xlu0 %v645, 16
      %v1232 = vpop.permute.xlu0 %1231
      %1233 = vrot.lane.b32.xlu0 %v646, 16
      %v1234 = vpop.permute.xlu0 %1233
      %1235 = vrot.lane.b32.xlu0 %v647, 16
      %v1236 = vpop.permute.xlu0 %1235
      %1237 = vrot.lane.b32.xlu0 %v648, 16
      %v1238 = vpop.permute.xlu0 %1237
      %1239 = vrot.lane.b32.xlu0 %v649, 16
      %v1240 = vpop.permute.xlu0 %1239
      %1241 = vrot.lane.b32.xlu0 %v650, 16
      %v1242 = vpop.permute.xlu0 %1241
      %1243 = vrot.lane.b32.xlu0 %v651, 16
      %v1244 = vpop.permute.xlu0 %1243
      %1245 = vrot.lane.b32.xlu0 %v652, 16
      %v1246 = vpop.permute.xlu0 %1245
      %1247 = vrot.lane.b32.xlu0 %v653, 16
      %v1248 = vpop.permute.xlu0 %1247
      %1249 = vrot.lane.b32.xlu0 %v654, 16
      %v1250 = vpop.permute.xlu0 %1249
      %1251 = vrot.lane.b32.xlu0 %v655, 16
      %v1252 = vpop.permute.xlu0 %1251
      %1253 = vrot.lane.b32.xlu0 %v656, 16
      %v1254 = vpop.permute.xlu0 %1253
      %1255 = vrot.lane.b32.xlu0 %v657, 16
      %v1256 = vpop.permute.xlu0 %1255
      %1257 = vrot.lane.b32.xlu0 %v658, 16
      %v1258 = vpop.permute.xlu0 %1257
      %1259 = vrot.lane.b32.xlu0 %v659, 16
      %v1260 = vpop.permute.xlu0 %1259
      %1261 = vrot.lane.b32.xlu0 %v660, 16
      %v1262 = vpop.permute.xlu0 %1261
      %1263 = vrot.lane.b32.xlu0 %v661, 16
      %v1264 = vpop.permute.xlu0 %1263
      %1265 = vrot.lane.b32.xlu0 %v662, 16
      %v1266 = vpop.permute.xlu0 %1265
      %1267 = vrot.lane.b32.xlu0 %v663, 16
      %v1268 = vpop.permute.xlu0 %1267
      %1269 = vrot.lane.b32.xlu0 %v664, 16
      %v1270 = vpop.permute.xlu0 %1269
      %1271 = vrot.lane.b32.xlu0 %v665, 16
      %v1272 = vpop.permute.xlu0 %1271
      %1273 = vrot.lane.b32.xlu0 %v666, 16
      %v1274 = vpop.permute.xlu0 %1273
      %1275 = vrot.lane.b32.xlu0 %v667, 16
      %v1276 = vpop.permute.xlu0 %1275
      %1341 = vrot.lane.b32.xlu0 %v668, 20
      %v1342 = vpop.permute.xlu0 %1341
      %1343 = vrot.lane.b32.xlu0 %v669, 20
      %v1344 = vpop.permute.xlu0 %1343
      %1345 = vrot.lane.b32.xlu0 %v670, 20
      %v1346 = vpop.permute.xlu0 %1345
      %1347 = vrot.lane.b32.xlu0 %v671, 20
      %v1348 = vpop.permute.xlu0 %1347
      %1349 = vrot.lane.b32.xlu0 %v672, 20
      %v1350 = vpop.permute.xlu0 %1349
      %1351 = vrot.lane.b32.xlu0 %v673, 20
      %v1352 = vpop.permute.xlu0 %1351
      %1353 = vrot.lane.b32.xlu0 %v674, 20
      %v1354 = vpop.permute.xlu0 %1353
      %1355 = vrot.lane.b32.xlu0 %v675, 20
      %v1356 = vpop.permute.xlu0 %1355
      %1357 = vrot.lane.b32.xlu0 %v676, 20
      %v1358 = vpop.permute.xlu0 %1357
      %1359 = vrot.lane.b32.xlu0 %v677, 20
      %v1360 = vpop.permute.xlu0 %1359
      %1361 = vrot.lane.b32.xlu0 %v678, 20
      %v1362 = vpop.permute.xlu0 %1361
      %1363 = vrot.lane.b32.xlu0 %v679, 20
      %v1364 = vpop.permute.xlu0 %1363
      %1365 = vrot.lane.b32.xlu0 %v680, 20
      %v1366 = vpop.permute.xlu0 %1365
      %1367 = vrot.lane.b32.xlu0 %v681, 20
      %v1368 = vpop.permute.xlu0 %1367
      %1369 = vrot.lane.b32.xlu0 %v682, 20
      %v1370 = vpop.permute.xlu0 %1369
      %1371 = vrot.lane.b32.xlu0 %v683, 20
      %v1372 = vpop.permute.xlu0 %1371
      %1373 = vrot.lane.b32.xlu0 %v684, 20
      %v1374 = vpop.permute.xlu0 %1373
      %1375 = vrot.lane.b32.xlu0 %v685, 20
      %v1376 = vpop.permute.xlu0 %1375
      %1377 = vrot.lane.b32.xlu0 %v686, 20
      %v1378 = vpop.permute.xlu0 %1377
      %1379 = vrot.lane.b32.xlu0 %v687, 20
      %v1380 = vpop.permute.xlu0 %1379
      %1381 = vrot.lane.b32.xlu0 %v688, 20
      %v1382 = vpop.permute.xlu0 %1381
      %1383 = vrot.lane.b32.xlu0 %v689, 20
      %v1384 = vpop.permute.xlu0 %1383
      %1385 = vrot.lane.b32.xlu0 %v690, 20
      %v1386 = vpop.permute.xlu0 %1385
      %1387 = vrot.lane.b32.xlu0 %v691, 20
      %v1388 = vpop.permute.xlu0 %1387
      %1389 = vrot.lane.b32.xlu0 %v692, 20
      %v1390 = vpop.permute.xlu0 %1389
      %1391 = vrot.lane.b32.xlu0 %v693, 20
      %v1392 = vpop.permute.xlu0 %1391
      %1393 = vrot.lane.b32.xlu0 %v694, 20
      %v1394 = vpop.permute.xlu0 %1393
      %1395 = vrot.lane.b32.xlu0 %v695, 20
      %v1396 = vpop.permute.xlu0 %1395
      %1397 = vrot.lane.b32.xlu0 %v696, 20
      %v1398 = vpop.permute.xlu0 %1397
      %1399 = vrot.lane.b32.xlu0 %v697, 20
      %v1400 = vpop.permute.xlu0 %1399
      %1401 = vrot.lane.b32.xlu0 %v698, 20
      %v1402 = vpop.permute.xlu0 %1401
      %1403 = vrot.lane.b32.xlu0 %v699, 20
      %v1404 = vpop.permute.xlu0 %1403
      %1469 = vrot.lane.b32.xlu0 %v701, 24
      %v1470 = vpop.permute.xlu0 %1469
      %1471 = vrot.lane.b32.xlu0 %v702, 24
      %v1472 = vpop.permute.xlu0 %1471
      %1473 = vrot.lane.b32.xlu0 %v703, 24
      %v1474 = vpop.permute.xlu0 %1473
      %1475 = vrot.lane.b32.xlu0 %v704, 24
      %v1476 = vpop.permute.xlu0 %1475
      %1477 = vrot.lane.b32.xlu0 %v705, 24
      %v1478 = vpop.permute.xlu0 %1477
      %1479 = vrot.lane.b32.xlu0 %v706, 24
      %v1480 = vpop.permute.xlu0 %1479
      %1481 = vrot.lane.b32.xlu0 %v707, 24
      %v1482 = vpop.permute.xlu0 %1481
      %1483 = vrot.lane.b32.xlu0 %v708, 24
      %v1484 = vpop.permute.xlu0 %1483
      %1485 = vrot.lane.b32.xlu0 %v709, 24
      %v1486 = vpop.permute.xlu0 %1485
      %1487 = vrot.lane.b32.xlu0 %v710, 24
      %v1488 = vpop.permute.xlu0 %1487
      %1489 = vrot.lane.b32.xlu0 %v711, 24
      %v1490 = vpop.permute.xlu0 %1489
      %1491 = vrot.lane.b32.xlu0 %v712, 24
      %v1492 = vpop.permute.xlu0 %1491
      %1493 = vrot.lane.b32.xlu0 %v713, 24
      %v1494 = vpop.permute.xlu0 %1493
      %1495 = vrot.lane.b32.xlu0 %v714, 24
      %v1496 = vpop.permute.xlu0 %1495
      %1497 = vrot.lane.b32.xlu0 %v715, 24
      %v1498 = vpop.permute.xlu0 %1497
      %1499 = vrot.lane.b32.xlu0 %v716, 24
      %v1500 = vpop.permute.xlu0 %1499
      %1501 = vrot.lane.b32.xlu0 %v717, 24
      %v1502 = vpop.permute.xlu0 %1501
      %1503 = vrot.lane.b32.xlu0 %v718, 24
      %v1504 = vpop.permute.xlu0 %1503
      %1505 = vrot.lane.b32.xlu0 %v719, 24
      %v1506 = vpop.permute.xlu0 %1505
      %1507 = vrot.lane.b32.xlu0 %v720, 24
      %v1508 = vpop.permute.xlu0 %1507
      %1509 = vrot.lane.b32.xlu0 %v721, 24
      %v1510 = vpop.permute.xlu0 %1509
      %1511 = vrot.lane.b32.xlu0 %v722, 24
      %v1512 = vpop.permute.xlu0 %1511
      %1513 = vrot.lane.b32.xlu0 %v723, 24
      %v1514 = vpop.permute.xlu0 %1513
      %1515 = vrot.lane.b32.xlu0 %v724, 24
      %v1516 = vpop.permute.xlu0 %1515
      %1517 = vrot.lane.b32.xlu0 %v725, 24
      %v1518 = vpop.permute.xlu0 %1517
      %1519 = vrot.lane.b32.xlu0 %v726, 24
      %v1520 = vpop.permute.xlu0 %1519
      %1521 = vrot.lane.b32.xlu0 %v727, 24
      %v1522 = vpop.permute.xlu0 %1521
      %1523 = vrot.lane.b32.xlu0 %v728, 24
      %v1524 = vpop.permute.xlu0 %1523
      %1525 = vrot.lane.b32.xlu0 %v729, 24
      %v1526 = vpop.permute.xlu0 %1525
      %1527 = vrot.lane.b32.xlu0 %v730, 24
      %v1528 = vpop.permute.xlu0 %1527
      %1529 = vrot.lane.b32.xlu0 %v731, 24
      %v1530 = vpop.permute.xlu0 %1529
      %1531 = vrot.lane.b32.xlu0 %v732, 24
      %v1532 = vpop.permute.xlu0 %1531
      %1597 = vrot.lane.b32.xlu0 %v733, 28
      %v1598 = vpop.permute.xlu0 %1597
      %1599 = vrot.lane.b32.xlu0 %v734, 28
      %v1600 = vpop.permute.xlu0 %1599
      %1601 = vrot.lane.b32.xlu0 %v735, 28
      %v1602 = vpop.permute.xlu0 %1601
      %1603 = vrot.lane.b32.xlu0 %v736, 28
      %v1604 = vpop.permute.xlu0 %1603
      %1605 = vrot.lane.b32.xlu0 %v737, 28
      %v1606 = vpop.permute.xlu0 %1605
      %1607 = vrot.lane.b32.xlu0 %v738, 28
      %v1608 = vpop.permute.xlu0 %1607
      %1609 = vrot.lane.b32.xlu0 %v739, 28
      %v1610 = vpop.permute.xlu0 %1609
      %1611 = vrot.lane.b32.xlu0 %v740, 28
      %v1612 = vpop.permute.xlu0 %1611
      %1613 = vrot.lane.b32.xlu0 %v741, 28
      %v1614 = vpop.permute.xlu0 %1613
      %1615 = vrot.lane.b32.xlu0 %v742, 28
      %v1616 = vpop.permute.xlu0 %1615
      %1617 = vrot.lane.b32.xlu0 %v743, 28
      %v1618 = vpop.permute.xlu0 %1617
      %1619 = vrot.lane.b32.xlu0 %v744, 28
      %v1620 = vpop.permute.xlu0 %1619
      %1621 = vrot.lane.b32.xlu0 %v745, 28
      %v1622 = vpop.permute.xlu0 %1621
      %1623 = vrot.lane.b32.xlu0 %v746, 28
      %v1624 = vpop.permute.xlu0 %1623
      %1625 = vrot.lane.b32.xlu0 %v747, 28
      %v1626 = vpop.permute.xlu0 %1625
      %1627 = vrot.lane.b32.xlu0 %v748, 28
      %v1628 = vpop.permute.xlu0 %1627
      %1629 = vrot.lane.b32.xlu0 %v749, 28
      %v1630 = vpop.permute.xlu0 %1629
      %1631 = vrot.lane.b32.xlu0 %v750, 28
      %v1632 = vpop.permute.xlu0 %1631
      %1633 = vrot.lane.b32.xlu0 %v751, 28
      %v1634 = vpop.permute.xlu0 %1633
      %1635 = vrot.lane.b32.xlu0 %v752, 28
      %v1636 = vpop.permute.xlu0 %1635
      %1637 = vrot.lane.b32.xlu0 %v753, 28
      %v1638 = vpop.permute.xlu0 %1637
      %1639 = vrot.lane.b32.xlu0 %v754, 28
      %v1640 = vpop.permute.xlu0 %1639
      %1641 = vrot.lane.b32.xlu0 %v755, 28
      %v1642 = vpop.permute.xlu0 %1641
      %1643 = vrot.lane.b32.xlu0 %v756, 28
      %v1644 = vpop.permute.xlu0 %1643
      %1645 = vrot.lane.b32.xlu0 %v757, 28
      %v1646 = vpop.permute.xlu0 %1645
      %1647 = vrot.lane.b32.xlu0 %v758, 28
      %v1648 = vpop.permute.xlu0 %1647
      %1649 = vrot.lane.b32.xlu0 %v759, 28
      %v1650 = vpop.permute.xlu0 %1649
      %1651 = vrot.lane.b32.xlu0 %v760, 28
      %v1652 = vpop.permute.xlu0 %1651
      %1653 = vrot.lane.b32.xlu0 %v761, 28
      %v1654 = vpop.permute.xlu0 %1653
      %1655 = vrot.lane.b32.xlu0 %v762, 28
      %v1656 = vpop.permute.xlu0 %1655
      %1657 = vrot.lane.b32.xlu0 %v763, 28
      %v1658 = vpop.permute.xlu0 %1657
      %1659 = vrot.lane.b32.xlu0 %v764, 28
      %v1660 = vpop.permute.xlu0 %1659
      %1725 = vrot.lane.b32.xlu0 %v765, 32
      %v1726 = vpop.permute.xlu0 %1725
      %1727 = vrot.lane.b32.xlu0 %v766, 32
      %v1728 = vpop.permute.xlu0 %1727
      %1729 = vrot.lane.b32.xlu0 %v767, 32
      %v1730 = vpop.permute.xlu0 %1729
      %1731 = vrot.lane.b32.xlu0 %v768, 32
      %v1732 = vpop.permute.xlu0 %1731
      %1733 = vrot.lane.b32.xlu0 %v769, 32
      %v1734 = vpop.permute.xlu0 %1733
      %1735 = vrot.lane.b32.xlu0 %v770, 32
      %v1736 = vpop.permute.xlu0 %1735
      %1737 = vrot.lane.b32.xlu0 %v771, 32
      %v1738 = vpop.permute.xlu0 %1737
      %1739 = vrot.lane.b32.xlu0 %v772, 32
      %v1740 = vpop.permute.xlu0 %1739
      %1741 = vrot.lane.b32.xlu0 %v773, 32
      %v1742 = vpop.permute.xlu0 %1741
      %1743 = vrot.lane.b32.xlu0 %v774, 32
      %v1744 = vpop.permute.xlu0 %1743
      %1745 = vrot.lane.b32.xlu0 %v775, 32
      %v1746 = vpop.permute.xlu0 %1745
      %1747 = vrot.lane.b32.xlu0 %v776, 32
      %v1748 = vpop.permute.xlu0 %1747
      %1749 = vrot.lane.b32.xlu0 %v777, 32
      %v1750 = vpop.permute.xlu0 %1749
      %1751 = vrot.lane.b32.xlu0 %v778, 32
      %v1752 = vpop.permute.xlu0 %1751
      %1753 = vrot.lane.b32.xlu0 %v779, 32
      %v1754 = vpop.permute.xlu0 %1753
      %1755 = vrot.lane.b32.xlu0 %v780, 32
      %v1756 = vpop.permute.xlu0 %1755
      %1757 = vrot.lane.b32.xlu0 %v781, 32
      %v1758 = vpop.permute.xlu0 %1757
      %1759 = vrot.lane.b32.xlu0 %v782, 32
      %v1760 = vpop.permute.xlu0 %1759
      %1761 = vrot.lane.b32.xlu0 %v783, 32
      %v1762 = vpop.permute.xlu0 %1761
      %1763 = vrot.lane.b32.xlu0 %v784, 32
      %v1764 = vpop.permute.xlu0 %1763
      %1765 = vrot.lane.b32.xlu0 %v785, 32
      %v1766 = vpop.permute.xlu0 %1765
      %1767 = vrot.lane.b32.xlu0 %v786, 32
      %v1768 = vpop.permute.xlu0 %1767
      %1769 = vrot.lane.b32.xlu0 %v787, 32
      %v1770 = vpop.permute.xlu0 %1769
      %1771 = vrot.lane.b32.xlu0 %v788, 32
      %v1772 = vpop.permute.xlu0 %1771
      %1773 = vrot.lane.b32.xlu0 %v789, 32
      %v1774 = vpop.permute.xlu0 %1773
      %1775 = vrot.lane.b32.xlu0 %v790, 32
      %v1776 = vpop.permute.xlu0 %1775
      %1777 = vrot.lane.b32.xlu0 %v791, 32
      %v1778 = vpop.permute.xlu0 %1777
      %1779 = vrot.lane.b32.xlu0 %v792, 32
      %v1780 = vpop.permute.xlu0 %1779
      %1781 = vrot.lane.b32.xlu0 %v793, 32
      %v1782 = vpop.permute.xlu0 %1781
      %1783 = vrot.lane.b32.xlu0 %v794, 32
      %v1784 = vpop.permute.xlu0 %1783
      %1785 = vrot.lane.b32.xlu0 %v795, 32
      %v1786 = vpop.permute.xlu0 %1785
      %1787 = vrot.lane.b32.xlu0 %v796, 32
      %v1788 = vpop.permute.xlu0 %1787
      %v1821 = vsel %vm475, %v508, %v830
      %v1822 = vsel %vm475, %v509, %v832
      %v1823 = vsel %vm475, %v510, %v834
      %v1824 = vsel %vm475, %v511, %v836
      %v1825 = vsel %vm475, %v512, %v838
      %v1826 = vsel %vm475, %v513, %v840
      %v1827 = vsel %vm475, %v514, %v842
      %v1828 = vsel %vm475, %v515, %v844
      %v1829 = vsel %vm475, %v516, %v846
      %v1830 = vsel %vm475, %v517, %v848
      %v1831 = vsel %vm475, %v518, %v850
      %v1832 = vsel %vm475, %v519, %v852
      %v1833 = vsel %vm475, %v520, %v854
      %v1834 = vsel %vm475, %v521, %v856
      %v1835 = vsel %vm475, %v522, %v858
      %v1836 = vsel %vm475, %v523, %v860
      %v1837 = vsel %vm475, %v524, %v862
      %v1838 = vsel %vm475, %v525, %v864
      %v1839 = vsel %vm475, %v526, %v866
      %v1840 = vsel %vm475, %v527, %v868
      %v1841 = vsel %vm475, %v528, %v870
      %v1842 = vsel %vm475, %v529, %v872
      %v1843 = vsel %vm475, %v530, %v874
      %v1844 = vsel %vm475, %v531, %v876
      %v1845 = vsel %vm475, %v532, %v878
      %v1846 = vsel %vm475, %v533, %v880
      %v1847 = vsel %vm475, %v534, %v882
      %v1848 = vsel %vm475, %v535, %v884
      %v1849 = vsel %vm475, %v536, %v886
      %v1850 = vsel %vm475, %v537, %v888
      %v1851 = vsel %vm475, %v538, %v890
      %v1852 = vsel %vm475, %v539, %v892
      %vm1853 = vcmask 64512
      %v1854 = vsel %vm1853, %v1821, %v958
      %v1855 = vsel %vm1853, %v1822, %v960
      %v1856 = vsel %vm1853, %v1823, %v962
      %v1857 = vsel %vm1853, %v1824, %v964
      %v1858 = vsel %vm1853, %v1825, %v966
      %v1859 = vsel %vm1853, %v1826, %v968
      %v1860 = vsel %vm1853, %v1827, %v970
      %v1861 = vsel %vm1853, %v1828, %v972
      %v1862 = vsel %vm1853, %v1829, %v974
      %v1863 = vsel %vm1853, %v1830, %v976
      %v1864 = vsel %vm1853, %v1831, %v978
      %v1865 = vsel %vm1853, %v1832, %v980
      %v1866 = vsel %vm1853, %v1833, %v982
      %v1867 = vsel %vm1853, %v1834, %v984
      %v1868 = vsel %vm1853, %v1835, %v986
      %v1869 = vsel %vm1853, %v1836, %v988
      %v1870 = vsel %vm1853, %v1837, %v990
      %v1871 = vsel %vm1853, %v1838, %v992
      %v1872 = vsel %vm1853, %v1839, %v994
      %v1873 = vsel %vm1853, %v1840, %v996
      %v1874 = vsel %vm1853, %v1841, %v998
      %v1875 = vsel %vm1853, %v1842, %v1000
      %v1876 = vsel %vm1853, %v1843, %v1002
      %v1877 = vsel %vm1853, %v1844, %v1004
      %v1878 = vsel %vm1853, %v1845, %v1006
      %v1879 = vsel %vm1853, %v1846, %v1008
      %v1880 = vsel %vm1853, %v1847, %v1010
      %v1881 = vsel %vm1853, %v1848, %v1012
      %v1882 = vsel %vm1853, %v1849, %v1014
      %v1883 = vsel %vm1853, %v1850, %v1016
      %v1884 = vsel %vm1853, %v1851, %v1018
      %v1885 = vsel %vm1853, %v1852, %v1020
      %vm1886 = vcmask 97280
      %v1887 = vsel %vm1886, %v1854, %v1086
      %v1888 = vsel %vm1886, %v1855, %v1088
      %v1889 = vsel %vm1886, %v1856, %v1090
      %v1890 = vsel %vm1886, %v1857, %v1092
      %v1891 = vsel %vm1886, %v1858, %v1094
      %v1892 = vsel %vm1886, %v1859, %v1096
      %v1893 = vsel %vm1886, %v1860, %v1098
      %v1894 = vsel %vm1886, %v1861, %v1100
      %v1895 = vsel %vm1886, %v1862, %v1102
      %v1896 = vsel %vm1886, %v1863, %v1104
      %v1897 = vsel %vm1886, %v1864, %v1106
      %v1898 = vsel %vm1886, %v1865, %v1108
      %v1899 = vsel %vm1886, %v1866, %v1110
      %v1900 = vsel %vm1886, %v1867, %v1112
      %v1901 = vsel %vm1886, %v1868, %v1114
      %v1902 = vsel %vm1886, %v1869, %v1116
      %v1903 = vsel %vm1886, %v1870, %v1118
      %v1904 = vsel %vm1886, %v1871, %v1120
      %v1905 = vsel %vm1886, %v1872, %v1122
      %v1906 = vsel %vm1886, %v1873, %v1124
      %v1907 = vsel %vm1886, %v1874, %v1126
      %v1908 = vsel %vm1886, %v1875, %v1128
      %v1909 = vsel %vm1886, %v1876, %v1130
      %v1910 = vsel %vm1886, %v1877, %v1132
      %v1911 = vsel %vm1886, %v1878, %v1134
      %v1912 = vsel %vm1886, %v1879, %v1136
      %v1913 = vsel %vm1886, %v1880, %v1138
      %v1914 = vsel %vm1886, %v1881, %v1140
      %v1915 = vsel %vm1886, %v1882, %v1142
      %v1916 = vsel %vm1886, %v1883, %v1144
      %v1917 = vsel %vm1886, %v1884, %v1146
      %v1918 = vsel %vm1886, %v1885, %v1148
      %v1919 = vsel %vm360, %v1887, %v1214
      %v1920 = vsel %vm360, %v1888, %v1216
      %v1921 = vsel %vm360, %v1889, %v1218
      %v1922 = vsel %vm360, %v1890, %v1220
      %v1923 = vsel %vm360, %v1891, %v1222
      %v1924 = vsel %vm360, %v1892, %v1224
      %v1925 = vsel %vm360, %v1893, %v1226
      %v1926 = vsel %vm360, %v1894, %v1228
      %v1927 = vsel %vm360, %v1895, %v1230
      %v1928 = vsel %vm360, %v1896, %v1232
      %v1929 = vsel %vm360, %v1897, %v1234
      %v1930 = vsel %vm360, %v1898, %v1236
      %v1931 = vsel %vm360, %v1899, %v1238
      %v1932 = vsel %vm360, %v1900, %v1240
      %v1933 = vsel %vm360, %v1901, %v1242
      %v1934 = vsel %vm360, %v1902, %v1244
      %v1935 = vsel %vm360, %v1903, %v1246
      %v1936 = vsel %vm360, %v1904, %v1248
      %v1937 = vsel %vm360, %v1905, %v1250
      %v1938 = vsel %vm360, %v1906, %v1252
      %v1939 = vsel %vm360, %v1907, %v1254
      %v1940 = vsel %vm360, %v1908, %v1256
      %v1941 = vsel %vm360, %v1909, %v1258
      %v1942 = vsel %vm360, %v1910, %v1260
      %v1943 = vsel %vm360, %v1911, %v1262
      %v1944 = vsel %vm360, %v1912, %v1264
      %v1945 = vsel %vm360, %v1913, %v1266
      %v1946 = vsel %vm360, %v1914, %v1268
      %v1947 = vsel %vm360, %v1915, %v1270
      %v1948 = vsel %vm360, %v1916, %v1272
      %v1949 = vsel %vm360, %v1917, %v1274
      %v1950 = vsel %vm360, %v1918, %v1276
      %vm1951 = vcmask 162816
      %v1952 = vsel %vm1951, %v1919, %v1342
      %v1953 = vsel %vm1951, %v1920, %v1344
      %v1954 = vsel %vm1951, %v1921, %v1346
      %v1955 = vsel %vm1951, %v1922, %v1348
      %v1956 = vsel %vm1951, %v1923, %v1350
      %v1957 = vsel %vm1951, %v1924, %v1352
      %v1958 = vsel %vm1951, %v1925, %v1354
      %v1959 = vsel %vm1951, %v1926, %v1356
      %v1960 = vsel %vm1951, %v1927, %v1358
      %v1961 = vsel %vm1951, %v1928, %v1360
      %v1962 = vsel %vm1951, %v1929, %v1362
      %v1963 = vsel %vm1951, %v1930, %v1364
      %v1964 = vsel %vm1951, %v1931, %v1366
      %v1965 = vsel %vm1951, %v1932, %v1368
      %v1966 = vsel %vm1951, %v1933, %v1370
      %v1967 = vsel %vm1951, %v1934, %v1372
      %v1968 = vsel %vm1951, %v1935, %v1374
      %v1969 = vsel %vm1951, %v1936, %v1376
      %v1970 = vsel %vm1951, %v1937, %v1378
      %v1971 = vsel %vm1951, %v1938, %v1380
      %v1972 = vsel %vm1951, %v1939, %v1382
      %v1973 = vsel %vm1951, %v1940, %v1384
      %v1974 = vsel %vm1951, %v1941, %v1386
      %v1975 = vsel %vm1951, %v1942, %v1388
      %v1976 = vsel %vm1951, %v1943, %v1390
      %v1977 = vsel %vm1951, %v1944, %v1392
      %v1978 = vsel %vm1951, %v1945, %v1394
      %v1979 = vsel %vm1951, %v1946, %v1396
      %v1980 = vsel %vm1951, %v1947, %v1398
      %v1981 = vsel %vm1951, %v1948, %v1400
      %v1982 = vsel %vm1951, %v1949, %v1402
      %v1983 = vsel %vm1951, %v1950, %v1404
      %vm1984 = vcmask 195584
      %v1985 = vsel %vm1984, %v1952, %v1470
      %v1986 = vsel %vm1984, %v1953, %v1472
      %v1987 = vsel %vm1984, %v1954, %v1474
      %v1988 = vsel %vm1984, %v1955, %v1476
      %v1989 = vsel %vm1984, %v1956, %v1478
      %v1990 = vsel %vm1984, %v1957, %v1480
      %v1991 = vsel %vm1984, %v1958, %v1482
      %v1992 = vsel %vm1984, %v1959, %v1484
      %v1993 = vsel %vm1984, %v1960, %v1486
      %v1994 = vsel %vm1984, %v1961, %v1488
      %v1995 = vsel %vm1984, %v1962, %v1490
      %v1996 = vsel %vm1984, %v1963, %v1492
      %v1997 = vsel %vm1984, %v1964, %v1494
      %v1998 = vsel %vm1984, %v1965, %v1496
      %v1999 = vsel %vm1984, %v1966, %v1498
      %v2000 = vsel %vm1984, %v1967, %v1500
      %v2001 = vsel %vm1984, %v1968, %v1502
      %v2002 = vsel %vm1984, %v1969, %v1504
      %v2003 = vsel %vm1984, %v1970, %v1506
      %v2004 = vsel %vm1984, %v1971, %v1508
      %v2005 = vsel %vm1984, %v1972, %v1510
      %v2006 = vsel %vm1984, %v1973, %v1512
      %v2007 = vsel %vm1984, %v1974, %v1514
      %v2008 = vsel %vm1984, %v1975, %v1516
      %v2009 = vsel %vm1984, %v1976, %v1518
      %v2010 = vsel %vm1984, %v1977, %v1520
      %v2011 = vsel %vm1984, %v1978, %v1522
      %v2012 = vsel %vm1984, %v1979, %v1524
      %v2013 = vsel %vm1984, %v1980, %v1526
      %v2014 = vsel %vm1984, %v1981, %v1528
      %v2015 = vsel %vm1984, %v1982, %v1530
      %v2016 = vsel %vm1984, %v1983, %v1532
      %vm2017 = vcmask 228352
      %v2018 = vsel %vm2017, %v1985, %v1598
      %v2019 = vsel %vm2017, %v1986, %v1600
      %v2020 = vsel %vm2017, %v1987, %v1602
      %v2021 = vsel %vm2017, %v1988, %v1604
      %v2022 = vsel %vm2017, %v1989, %v1606
      %v2023 = vsel %vm2017, %v1990, %v1608
      %v2024 = vsel %vm2017, %v1991, %v1610
      %v2025 = vsel %vm2017, %v1992, %v1612
      %v2026 = vsel %vm2017, %v1993, %v1614
      %v2027 = vsel %vm2017, %v1994, %v1616
      %v2028 = vsel %vm2017, %v1995, %v1618
      %v2029 = vsel %vm2017, %v1996, %v1620
      %v2030 = vsel %vm2017, %v1997, %v1622
      %v2031 = vsel %vm2017, %v1998, %v1624
      %v2032 = vsel %vm2017, %v1999, %v1626
      %v2033 = vsel %vm2017, %v2000, %v1628
      %v2034 = vsel %vm2017, %v2001, %v1630
      %v2035 = vsel %vm2017, %v2002, %v1632
      %v2036 = vsel %vm2017, %v2003, %v1634
      %v2037 = vsel %vm2017, %v2004, %v1636
      %v2038 = vsel %vm2017, %v2005, %v1638
      %v2039 = vsel %vm2017, %v2006, %v1640
      %v2040 = vsel %vm2017, %v2007, %v1642
      %v2041 = vsel %vm2017, %v2008, %v1644
      %v2042 = vsel %vm2017, %v2009, %v1646
      %v2043 = vsel %vm2017, %v2010, %v1648
      %v2044 = vsel %vm2017, %v2011, %v1650
      %v2045 = vsel %vm2017, %v2012, %v1652
      %v2046 = vsel %vm2017, %v2013, %v1654
      %v2047 = vsel %vm2017, %v2014, %v1656
      %v2048 = vsel %vm2017, %v2015, %v1658
      %v2049 = vsel %vm2017, %v2016, %v1660
      %vm2050 = vcmask 261120
      %v2051 = vsel %vm2050, %v2018, %v1726
      %v2052 = vsel %vm2050, %v2019, %v1728
      %v2053 = vsel %vm2050, %v2020, %v1730
      %v2054 = vsel %vm2050, %v2021, %v1732
      %v2055 = vsel %vm2050, %v2022, %v1734
      %v2056 = vsel %vm2050, %v2023, %v1736
      %v2057 = vsel %vm2050, %v2024, %v1738
      %v2058 = vsel %vm2050, %v2025, %v1740
      %v2059 = vsel %vm2050, %v2026, %v1742
      %v2060 = vsel %vm2050, %v2027, %v1744
      %v2061 = vsel %vm2050, %v2028, %v1746
      %v2062 = vsel %vm2050, %v2029, %v1748
      %v2063 = vsel %vm2050, %v2030, %v1750
      %v2064 = vsel %vm2050, %v2031, %v1752
      %v2065 = vsel %vm2050, %v2032, %v1754
      %v2066 = vsel %vm2050, %v2033, %v1756
      %v2067 = vsel %vm2050, %v2034, %v1758
      %v2068 = vsel %vm2050, %v2035, %v1760
      %v2069 = vsel %vm2050, %v2036, %v1762
      %v2070 = vsel %vm2050, %v2037, %v1764
      %v2071 = vsel %vm2050, %v2038, %v1766
      %v2072 = vsel %vm2050, %v2039, %v1768
      %v2073 = vsel %vm2050, %v2040, %v1770
      %v2074 = vsel %vm2050, %v2041, %v1772
      %v2075 = vsel %vm2050, %v2042, %v1774
      %v2076 = vsel %vm2050, %v2043, %v1776
      %v2077 = vsel %vm2050, %v2044, %v1778
      %v2078 = vsel %vm2050, %v2045, %v1780
      %v2079 = vsel %vm2050, %v2046, %v1782
      %v2080 = vsel %vm2050, %v2047, %v1784
      %v2081 = vsel %vm2050, %v2048, %v1786
      %v2082 = vsel %vm2050, %v2049, %v1788
      %v2083 = vld [vmem:[%s1] sm:$0xff]
      %v2084 = vld [vmem:[%s1 + $0x8] sm:$0xff]
      %v2085 = vld [vmem:[%s1 + $0x10] sm:$0xff]
      %v2086 = vld [vmem:[%s1 + $0x18] sm:$0xff]
      %v2087 = vld [vmem:[%s1 + $0x20] sm:$0xf]
      %vm2088 = vcmask 293888
      %v2090 = vsel %vm2088, %v2051, 0
      %v2093 = vsel %vm2088, %v2052, 0
      %v2096 = vsel %vm2088, %v2053, 0
      %v2099 = vsel %vm2088, %v2054, 0
      %v2102 = vsel %vm2088, %v2055, 0
      %v2105 = vsel %vm2088, %v2056, 0
      %v2108 = vsel %vm2088, %v2057, 0
      %v2111 = vsel %vm2088, %v2058, 0
      %v2114 = vsel %vm2088, %v2059, 0
      %v2117 = vsel %vm2088, %v2060, 0
      %v2120 = vsel %vm2088, %v2061, 0
      %v2123 = vsel %vm2088, %v2062, 0
      %v2126 = vsel %vm2088, %v2063, 0
      %v2129 = vsel %vm2088, %v2064, 0
      %v2132 = vsel %vm2088, %v2065, 0
      %v2135 = vsel %vm2088, %v2066, 0
      %v2138 = vsel %vm2088, %v2067, 0
      %v2141 = vsel %vm2088, %v2068, 0
      %v2144 = vsel %vm2088, %v2069, 0
      %v2147 = vsel %vm2088, %v2070, 0
      %v2150 = vsel %vm2088, %v2071, 0
      %v2153 = vsel %vm2088, %v2072, 0
      %v2156 = vsel %vm2088, %v2073, 0
      %v2159 = vsel %vm2088, %v2074, 0
      %v2162 = vsel %vm2088, %v2075, 0
      %v2165 = vsel %vm2088, %v2076, 0
      %v2168 = vsel %vm2088, %v2077, 0
      %v2171 = vsel %vm2088, %v2078, 0
      %v2174 = vsel %vm2088, %v2079, 0
      %v2177 = vsel %vm2088, %v2080, 0
      %v2180 = vsel %vm2088, %v2081, 0
      %v2183 = vsel %vm2088, %v2082, 0
      %vm2185 = vcmask 1043456
      %v2187 = vsel %vm2185, %v2087, 0
      %2189 = vmatprep.subr.mxu0 0.0
      %2190 = vmatpush1.msra.mxu0 0.0
      %2191 = vmatprep.subr.mxu0 0.0
      %2192 = vmatpush1.msra.mxu0 0.0
      %2193 = vmatprep.subr.mxu0 0.0
      %2194 = vmatpush1.msra.mxu0 0.0
      %2195 = vmatprep.subr.mxu0 0.0
      %2196 = vmatpush1.msra.mxu0 0.0
      %2197 = vmatprep.subr.mxu0 0.0
      %2198 = vmatpush1.msra.mxu0 0.0
      %2199 = vmatprep.subr.mxu0 0.0
      %2200 = vmatpush1.msra.mxu0 0.0
      %2201 = vmatprep.subr.mxu0 0.0
      %2202 = vmatpush1.msra.mxu0 0.0
      %2203 = vmatprep.subr.mxu0 0.0
      %2204 = vmatpush1.msra.mxu0 0.0
      %2205 = vmatprep.subr.mxu0 0.0
      %2206 = vmatpush1.msra.mxu0 0.0
      %2207 = vmatprep.subr.mxu0 0.0
      %2208 = vmatpush1.msra.mxu0 0.0
      %2209 = vmatprep.subr.mxu0 0.0
      %2210 = vmatpush1.msra.mxu0 0.0
      %2211 = vmatprep.subr.mxu0 0.0
      %2212 = vmatpush1.msra.mxu0 %v2187
      %2213 = vmatprep.subr.mxu0 0.0
      %2214 = vmatpush1.msra.mxu0 %v2086
      %2215 = vmatprep.subr.mxu0 0.0
      %2216 = vmatpush1.msra.mxu0 %v2085
      %2217 = vmatprep.subr.mxu0 0.0
      %2218 = vmatpush1.msra.mxu0 %v2084
      %2219 = vmatprep.subr.mxu0 0.0
      %2220 = vmatpush1.msra.mxu0 %v2083
      %2221 = vmatprep.subr.mxu0 0.0
      %2222 = vmatpush2.msra.mxu0 0.0
      %2223 = vmatprep.subr.mxu0 0.0
      %2224 = vmatpush2.msra.mxu0 0.0
      %2225 = vmatprep.subr.mxu0 0.0
      %2226 = vmatpush2.msra.mxu0 0.0
      %2227 = vmatprep.subr.mxu0 0.0
      %2228 = vmatpush2.msra.mxu0 0.0
      %2229 = vmatprep.subr.mxu0 0.0
      %2230 = vmatpush2.msra.mxu0 0.0
      %2231 = vmatprep.subr.mxu0 0.0
      %2232 = vmatpush2.msra.mxu0 0.0
      %2233 = vmatprep.subr.mxu0 0.0
      %2234 = vmatpush2.msra.mxu0 0.0
      %2235 = vmatprep.subr.mxu0 0.0
      %2236 = vmatpush2.msra.mxu0 0.0
      %2237 = vmatprep.subr.mxu0 0.0
      %2238 = vmatpush2.msra.mxu0 0.0
      %2239 = vmatprep.subr.mxu0 0.0
      %2240 = vmatpush2.msra.mxu0 0.0
      %2241 = vmatprep.subr.mxu0 0.0
      %2242 = vmatpush2.msra.mxu0 0.0
      %2243 = vmatprep.subr.mxu0 0.0
      %2244 = vmatpush2.msra.mxu0 0.0
      %2245 = vmatprep.subr.mxu0 0.0
      %2246 = vmatpush2.msra.mxu0 0.0
      %2247 = vmatprep.subr.mxu0 0.0
      %2248 = vmatpush2.msra.mxu0 0.0
      %2249 = vmatprep.subr.mxu0 0.0
      %2250 = vmatpush2.msra.mxu0 0.0
      %2251 = vmatprep.subr.mxu0 0.0
      %2252 = vmatpush2.msra.mxu0 0.0
      %2253 = vmatprep.mubr.f32.mxu0 0.0
      %2254 = vmatmul.mubr.f32.gmra.mxu0 %v2090
      %v2255 = vpop.f32.mrf.mxu0
      %v2256 = vadd.f32 0.0, %v2255
      %v2257 = vpop.f32.mrf.mxu0
      %2258 = vmatprep.mubr.f32.mxu0 0.0
      %2259 = vmatmul.mubr.f32.gmra.mxu0 %v2093
      %v2260 = vpop.f32.mrf.mxu0
      %v2261 = vadd.f32 0.0, %v2260
      %v2262 = vpop.f32.mrf.mxu0
      %2263 = vmatprep.mubr.f32.mxu0 0.0
      %2264 = vmatmul.mubr.f32.gmra.mxu0 %v2096
      %v2265 = vpop.f32.mrf.mxu0
      %v2266 = vadd.f32 0.0, %v2265
      %v2267 = vpop.f32.mrf.mxu0
      %2268 = vmatprep.mubr.f32.mxu0 0.0
      %2269 = vmatmul.mubr.f32.gmra.mxu0 %v2099
      %v2270 = vpop.f32.mrf.mxu0
      %v2271 = vadd.f32 0.0, %v2270
      %v2272 = vpop.f32.mrf.mxu0
      %2273 = vmatprep.mubr.f32.mxu0 0.0
      %2274 = vmatmul.mubr.f32.gmra.mxu0 %v2102
      %v2275 = vpop.f32.mrf.mxu0
      %v2276 = vadd.f32 0.0, %v2275
      %v2277 = vpop.f32.mrf.mxu0
      %2278 = vmatprep.mubr.f32.mxu0 0.0
      %2279 = vmatmul.mubr.f32.gmra.mxu0 %v2105
      %v2280 = vpop.f32.mrf.mxu0
      %v2281 = vadd.f32 0.0, %v2280
      %v2282 = vpop.f32.mrf.mxu0
      %2283 = vmatprep.mubr.f32.mxu0 0.0
      %2284 = vmatmul.mubr.f32.gmra.mxu0 %v2108
      %v2285 = vpop.f32.mrf.mxu0
      %v2286 = vadd.f32 0.0, %v2285
      %v2287 = vpop.f32.mrf.mxu0
      %2288 = vmatprep.mubr.f32.mxu0 0.0
      %2289 = vmatmul.mubr.f32.gmra.mxu0 %v2111
      %v2290 = vpop.f32.mrf.mxu0
      %v2291 = vadd.f32 0.0, %v2290
      %v2292 = vpop.f32.mrf.mxu0
      %2293 = vmatprep.mubr.f32.mxu0 0.0
      %2294 = vmatmul.mubr.f32.gmra.mxu0 %v2114
      %v2295 = vpop.f32.mrf.mxu0
      %v2296 = vadd.f32 0.0, %v2295
      %v2297 = vpop.f32.mrf.mxu0
      %2298 = vmatprep.mubr.f32.mxu0 0.0
      %2299 = vmatmul.mubr.f32.gmra.mxu0 %v2117
      %v2300 = vpop.f32.mrf.mxu0
      %v2301 = vadd.f32 0.0, %v2300
      %v2302 = vpop.f32.mrf.mxu0
      %2303 = vmatprep.mubr.f32.mxu0 0.0
      %2304 = vmatmul.mubr.f32.gmra.mxu0 %v2120
      %v2305 = vpop.f32.mrf.mxu0
      %v2306 = vadd.f32 0.0, %v2305
      %v2307 = vpop.f32.mrf.mxu0
      %2308 = vmatprep.mubr.f32.mxu0 0.0
      %2309 = vmatmul.mubr.f32.gmra.mxu0 %v2123
      %v2310 = vpop.f32.mrf.mxu0
      %v2311 = vadd.f32 0.0, %v2310
      %v2312 = vpop.f32.mrf.mxu0
      %2313 = vmatprep.mubr.f32.mxu0 0.0
      %2314 = vmatmul.mubr.f32.gmra.mxu0 %v2126
      %v2315 = vpop.f32.mrf.mxu0
      %v2316 = vadd.f32 0.0, %v2315
      %v2317 = vpop.f32.mrf.mxu0
      %2318 = vmatprep.mubr.f32.mxu0 0.0
      %2319 = vmatmul.mubr.f32.gmra.mxu0 %v2129
      %v2320 = vpop.f32.mrf.mxu0
      %v2321 = vadd.f32 0.0, %v2320
      %v2322 = vpop.f32.mrf.mxu0
      %2323 = vmatprep.mubr.f32.mxu0 0.0
      %2324 = vmatmul.mubr.f32.gmra.mxu0 %v2132
      %v2325 = vpop.f32.mrf.mxu0
      %v2326 = vadd.f32 0.0, %v2325
      %v2327 = vpop.f32.mrf.mxu0
      %2328 = vmatprep.mubr.f32.mxu0 0.0
      %2329 = vmatmul.mubr.f32.gmra.mxu0 %v2135
      %v2330 = vpop.f32.mrf.mxu0
      %v2331 = vadd.f32 0.0, %v2330
      %v2332 = vpop.f32.mrf.mxu0
      %2333 = vmatprep.mubr.f32.mxu0 0.0
      %2334 = vmatmul.mubr.f32.gmra.mxu0 %v2138
      %v2335 = vpop.f32.mrf.mxu0
      %v2336 = vadd.f32 0.0, %v2335
      %v2337 = vpop.f32.mrf.mxu0
      %2338 = vmatprep.mubr.f32.mxu0 0.0
      %2339 = vmatmul.mubr.f32.gmra.mxu0 %v2141
      %v2340 = vpop.f32.mrf.mxu0
      %v2341 = vadd.f32 0.0, %v2340
      %v2342 = vpop.f32.mrf.mxu0
      %2343 = vmatprep.mubr.f32.mxu0 0.0
      %2344 = vmatmul.mubr.f32.gmra.mxu0 %v2144
      %v2345 = vpop.f32.mrf.mxu0
      %v2346 = vadd.f32 0.0, %v2345
      %v2347 = vpop.f32.mrf.mxu0
      %2348 = vmatprep.mubr.f32.mxu0 0.0
      %2349 = vmatmul.mubr.f32.gmra.mxu0 %v2147
      %v2350 = vpop.f32.mrf.mxu0
      %v2351 = vadd.f32 0.0, %v2350
      %v2352 = vpop.f32.mrf.mxu0
      %2353 = vmatprep.mubr.f32.mxu0 0.0
      %2354 = vmatmul.mubr.f32.gmra.mxu0 %v2150
      %v2355 = vpop.f32.mrf.mxu0
      %v2356 = vadd.f32 0.0, %v2355
      %v2357 = vpop.f32.mrf.mxu0
      %2358 = vmatprep.mubr.f32.mxu0 0.0
      %2359 = vmatmul.mubr.f32.gmra.mxu0 %v2153
      %v2360 = vpop.f32.mrf.mxu0
      %v2361 = vadd.f32 0.0, %v2360
      %v2362 = vpop.f32.mrf.mxu0
      %2363 = vmatprep.mubr.f32.mxu0 0.0
      %2364 = vmatmul.mubr.f32.gmra.mxu0 %v2156
      %v2365 = vpop.f32.mrf.mxu0
      %v2366 = vadd.f32 0.0, %v2365
      %v2367 = vpop.f32.mrf.mxu0
      %2368 = vmatprep.mubr.f32.mxu0 0.0
      %2369 = vmatmul.mubr.f32.gmra.mxu0 %v2159
      %v2370 = vpop.f32.mrf.mxu0
      %v2371 = vadd.f32 0.0, %v2370
      %v2372 = vpop.f32.mrf.mxu0
      %2373 = vmatprep.mubr.f32.mxu0 0.0
      %2374 = vmatmul.mubr.f32.gmra.mxu0 %v2162
      %v2375 = vpop.f32.mrf.mxu0
      %v2376 = vadd.f32 0.0, %v2375
      %v2377 = vpop.f32.mrf.mxu0
      %2378 = vmatprep.mubr.f32.mxu0 0.0
      %2379 = vmatmul.mubr.f32.gmra.mxu0 %v2165
      %v2380 = vpop.f32.mrf.mxu0
      %v2381 = vadd.f32 0.0, %v2380
      %v2382 = vpop.f32.mrf.mxu0
      %2383 = vmatprep.mubr.f32.mxu0 0.0
      %2384 = vmatmul.mubr.f32.gmra.mxu0 %v2168
      %v2385 = vpop.f32.mrf.mxu0
      %v2386 = vadd.f32 0.0, %v2385
      %v2387 = vpop.f32.mrf.mxu0
      %2388 = vmatprep.mubr.f32.mxu0 0.0
      %2389 = vmatmul.mubr.f32.gmra.mxu0 %v2171
      %v2390 = vpop.f32.mrf.mxu0
      %v2391 = vadd.f32 0.0, %v2390
      %v2392 = vpop.f32.mrf.mxu0
      %2393 = vmatprep.mubr.f32.mxu0 0.0
      %2394 = vmatmul.mubr.f32.gmra.mxu0 %v2174
      %v2395 = vpop.f32.mrf.mxu0
      %v2396 = vadd.f32 0.0, %v2395
      %v2397 = vpop.f32.mrf.mxu0
      %2398 = vmatprep.mubr.f32.mxu0 0.0
      %2399 = vmatmul.mubr.f32.gmra.mxu0 %v2177
      %v2400 = vpop.f32.mrf.mxu0
      %v2401 = vadd.f32 0.0, %v2400
      %v2402 = vpop.f32.mrf.mxu0
      %2403 = vmatprep.mubr.f32.mxu0 0.0
      %2404 = vmatmul.mubr.f32.gmra.mxu0 %v2180
      %v2405 = vpop.f32.mrf.mxu0
      %v2406 = vadd.f32 0.0, %v2405
      %v2407 = vpop.f32.mrf.mxu0
      %2408 = vmatprep.mubr.f32.mxu0 0.0
      %2409 = vmatmul.mubr.f32.gmra.mxu0 %v2183
      %v2410 = vpop.f32.mrf.mxu0
      %v2411 = vadd.f32 0.0, %v2410
      %v2412 = vpop.f32.mrf.mxu0
      %2413 = vdwg.mxu0
      %v2414 = vld [vmem:[%s2] sm:$0x1]
      %v2416 = vlaneseq
      %v2417 = vshrl.u32 %v2416, 7
      %v2418 = vsub.s32 0, %v2417
      %v2419 = vrot.slane %v2414, %v2418
      %v2421 = vmul.f32 %v2256, %v2419
      %v2422 = vmul.f32 %v2261, %v2419
      %v2423 = vmul.f32 %v2266, %v2419
      %v2424 = vmul.f32 %v2271, %v2419
      %v2425 = vmul.f32 %v2276, %v2419
      %v2426 = vmul.f32 %v2281, %v2419
      %v2427 = vmul.f32 %v2286, %v2419
      %v2428 = vmul.f32 %v2291, %v2419
      %v2429 = vmul.f32 %v2296, %v2419
      %v2430 = vmul.f32 %v2301, %v2419
      %v2431 = vmul.f32 %v2306, %v2419
      %v2432 = vmul.f32 %v2311, %v2419
      %v2433 = vmul.f32 %v2316, %v2419
      %v2434 = vmul.f32 %v2321, %v2419
      %v2435 = vmul.f32 %v2326, %v2419
      %v2436 = vmul.f32 %v2331, %v2419
      %v2437 = vmul.f32 %v2336, %v2419
      %v2438 = vmul.f32 %v2341, %v2419
      %v2439 = vmul.f32 %v2346, %v2419
      %v2440 = vmul.f32 %v2351, %v2419
      %v2441 = vmul.f32 %v2356, %v2419
      %v2442 = vmul.f32 %v2361, %v2419
      %v2443 = vmul.f32 %v2366, %v2419
      %v2444 = vmul.f32 %v2371, %v2419
      %v2445 = vmul.f32 %v2376, %v2419
      %v2446 = vmul.f32 %v2381, %v2419
      %v2447 = vmul.f32 %v2386, %v2419
      %v2448 = vmul.f32 %v2391, %v2419
      %v2449 = vmul.f32 %v2396, %v2419
      %v2450 = vmul.f32 %v2401, %v2419
      %v2451 = vmul.f32 %v2406, %v2419
      %v2452 = vmul.f32 %v2411, %v2419
      %v2453 = vld [vmem:[%s3] sm:$0x1]
      %v2455 = vlaneseq
      %v2456 = vshrl.u32 %v2455, 7
      %v2457 = vsub.s32 0, %v2456
      %v2458 = vrot.slane %v2453, %v2457
      %v2460 = vadd.f32 %v2421, %v2458
      %v2461 = vadd.f32 %v2422, %v2458
      %v2462 = vadd.f32 %v2423, %v2458
      %v2463 = vadd.f32 %v2424, %v2458
      %v2464 = vadd.f32 %v2425, %v2458
      %v2465 = vadd.f32 %v2426, %v2458
      %v2466 = vadd.f32 %v2427, %v2458
      %v2467 = vadd.f32 %v2428, %v2458
      %v2468 = vadd.f32 %v2429, %v2458
      %v2469 = vadd.f32 %v2430, %v2458
      %v2470 = vadd.f32 %v2431, %v2458
      %v2471 = vadd.f32 %v2432, %v2458
      %v2472 = vadd.f32 %v2433, %v2458
      %v2473 = vadd.f32 %v2434, %v2458
      %v2474 = vadd.f32 %v2435, %v2458
      %v2475 = vadd.f32 %v2436, %v2458
      %v2476 = vadd.f32 %v2437, %v2458
      %v2477 = vadd.f32 %v2438, %v2458
      %v2478 = vadd.f32 %v2439, %v2458
      %v2479 = vadd.f32 %v2440, %v2458
      %v2480 = vadd.f32 %v2441, %v2458
      %v2481 = vadd.f32 %v2442, %v2458
      %v2482 = vadd.f32 %v2443, %v2458
      %v2483 = vadd.f32 %v2444, %v2458
      %v2484 = vadd.f32 %v2445, %v2458
      %v2485 = vadd.f32 %v2446, %v2458
      %v2486 = vadd.f32 %v2447, %v2458
      %v2487 = vadd.f32 %v2448, %v2458
      %v2488 = vadd.f32 %v2449, %v2458
      %v2489 = vadd.f32 %v2450, %v2458
      %v2490 = vadd.f32 %v2451, %v2458
      %v2491 = vadd.f32 %v2452, %v2458
      %v2492 = vmax.f32 %v2460, 0.0
      %v2493 = vmax.f32 %v2461, 0.0
      %v2494 = vmax.f32 %v2462, 0.0
      %v2495 = vmax.f32 %v2463, 0.0
      %v2496 = vmax.f32 %v2464, 0.0
      %v2497 = vmax.f32 %v2465, 0.0
      %v2498 = vmax.f32 %v2466, 0.0
      %v2499 = vmax.f32 %v2467, 0.0
      %v2500 = vmax.f32 %v2468, 0.0
      %v2501 = vmax.f32 %v2469, 0.0
      %v2502 = vmax.f32 %v2470, 0.0
      %v2503 = vmax.f32 %v2471, 0.0
      %v2504 = vmax.f32 %v2472, 0.0
      %v2505 = vmax.f32 %v2473, 0.0
      %v2506 = vmax.f32 %v2474, 0.0
      %v2507 = vmax.f32 %v2475, 0.0
      %v2508 = vmax.f32 %v2476, 0.0
      %v2509 = vmax.f32 %v2477, 0.0
      %v2510 = vmax.f32 %v2478, 0.0
      %v2511 = vmax.f32 %v2479, 0.0
      %v2512 = vmax.f32 %v2480, 0.0
      %v2513 = vmax.f32 %v2481, 0.0
      %v2514 = vmax.f32 %v2482, 0.0
      %v2515 = vmax.f32 %v2483, 0.0
      %v2516 = vmax.f32 %v2484, 0.0
      %v2517 = vmax.f32 %v2485, 0.0
      %v2518 = vmax.f32 %v2486, 0.0
      %v2519 = vmax.f32 %v2487, 0.0
      %v2520 = vmax.f32 %v2488, 0.0
      %v2521 = vmax.f32 %v2489, 0.0
      %v2522 = vmax.f32 %v2490, 0.0
      %v2523 = vmax.f32 %v2491, 0.0
      %2524 = vst.msk [vmem:[#allocation3] sm:$0xff] %vm360, 0.0
      %2525 = vst.msk [vmem:[#allocation3 + $0x8] sm:$0xff] %vm360, 0.0
      %2526 = vst.msk [vmem:[#allocation3 + $0x10] sm:$0x3] %vm363, 0.0
      %s2527 = scalar_lea.vmem [#allocation3], 408
      %2528 = vst.msk [vmem:[%s2527] sm:$0xff] %vm360, 0.0
      %2529 = vst.msk [vmem:[%s2527 + $0x8] sm:$0xff] %vm360, 0.0
      %2530 = vst.msk [vmem:[%s2527 + $0x10] sm:$0x3] %vm363, 0.0
      %2531 = vst.msk [vmem:[#allocation3] sm:$0x1] %vm369, 0.0
      %2532 = vst.msk [vmem:[#allocation3 + $0x18] sm:$0x1] %vm369, 0.0
      %2533 = vst.msk [vmem:[#allocation3 + $0x30] sm:$0x1] %vm369, 0.0
      %2534 = vst.msk [vmem:[#allocation3 + $0x48] sm:$0x1] %vm369, 0.0
      %2535 = vst.msk [vmem:[#allocation3 + $0x60] sm:$0x1] %vm369, 0.0
      %2536 = vst.msk [vmem:[#allocation3 + $0x78] sm:$0x1] %vm369, 0.0
      %2537 = vst.msk [vmem:[#allocation3 + $0x90] sm:$0x1] %vm369, 0.0
      %2538 = vst.msk [vmem:[#allocation3 + $0xa8] sm:$0x1] %vm369, 0.0
      %2539 = vst.msk [vmem:[#allocation3 + $0xc0] sm:$0x1] %vm369, 0.0
      %2540 = vst.msk [vmem:[#allocation3 + $0xd8] sm:$0x1] %vm369, 0.0
      %2541 = vst.msk [vmem:[#allocation3 + $0xf0] sm:$0x1] %vm369, 0.0
      %2542 = vst.msk [vmem:[#allocation3 + $0x108] sm:$0x1] %vm369, 0.0
      %2543 = vst.msk [vmem:[#allocation3 + $0x120] sm:$0x1] %vm369, 0.0
      %2544 = vst.msk [vmem:[#allocation3 + $0x138] sm:$0x1] %vm369, 0.0
      %2545 = vst.msk [vmem:[#allocation3 + $0x150] sm:$0x1] %vm369, 0.0
      %2546 = vst.msk [vmem:[#allocation3 + $0x168] sm:$0x1] %vm369, 0.0
      %2547 = vst.msk [vmem:[#allocation3 + $0x180] sm:$0x1] %vm369, 0.0
      %2548 = vst.msk [vmem:[#allocation3 + $0x198] sm:$0x1] %vm369, 0.0
      %2549 = vst.msk [vmem:[#allocation3 + $0x11] sm:$0x1] %vm369, 0.0
      %2550 = vst.msk [vmem:[#allocation3 + $0x29] sm:$0x1] %vm369, 0.0
      %2551 = vst.msk [vmem:[#allocation3 + $0x41] sm:$0x1] %vm369, 0.0
      %2552 = vst.msk [vmem:[#allocation3 + $0x59] sm:$0x1] %vm369, 0.0
      %2553 = vst.msk [vmem:[#allocation3 + $0x71] sm:$0x1] %vm369, 0.0
      %2554 = vst.msk [vmem:[#allocation3 + $0x89] sm:$0x1] %vm369, 0.0
      %2555 = vst.msk [vmem:[#allocation3 + $0xa1] sm:$0x1] %vm369, 0.0
      %2556 = vst.msk [vmem:[#allocation3 + $0xb9] sm:$0x1] %vm369, 0.0
      %2557 = vst.msk [vmem:[#allocation3 + $0xd1] sm:$0x1] %vm369, 0.0
      %2558 = vst.msk [vmem:[#allocation3 + $0xe9] sm:$0x1] %vm369, 0.0
      %2559 = vst.msk [vmem:[#allocation3 + $0x101] sm:$0x1] %vm369, 0.0
      %2560 = vst.msk [vmem:[#allocation3 + $0x119] sm:$0x1] %vm369, 0.0
      %2561 = vst.msk [vmem:[#allocation3 + $0x131] sm:$0x1] %vm369, 0.0
      %2562 = vst.msk [vmem:[#allocation3 + $0x149] sm:$0x1] %vm369, 0.0
      %2563 = vst.msk [vmem:[#allocation3 + $0x161] sm:$0x1] %vm369, 0.0
      %2564 = vst.msk [vmem:[#allocation3 + $0x179] sm:$0x1] %vm369, 0.0
      %2565 = vst.msk [vmem:[#allocation3 + $0x191] sm:$0x1] %vm369, 0.0
      %2566 = vst.msk [vmem:[#allocation3 + $0x1a9] sm:$0x1] %vm369, 0.0
      %s2567 = scalar_lea.vmem [#allocation3], 24
      %2568 = vst.msk [vmem:[%s2567 + $0x1] sm:$0xff] %vm1853, %v2492
      %2569 = vst.msk [vmem:[%s2567 + $0x9] sm:$0xff] %vm1853, %v2493
      %2570 = vst.msk [vmem:[%s2567 + $0x19] sm:$0xff] %vm1853, %v2494
      %2571 = vst.msk [vmem:[%s2567 + $0x21] sm:$0xff] %vm1853, %v2495
      %2572 = vst.msk [vmem:[%s2567 + $0x31] sm:$0xff] %vm1853, %v2496
      %2573 = vst.msk [vmem:[%s2567 + $0x39] sm:$0xff] %vm1853, %v2497
      %2574 = vst.msk [vmem:[%s2567 + $0x49] sm:$0xff] %vm1853, %v2498
      %2575 = vst.msk [vmem:[%s2567 + $0x51] sm:$0xff] %vm1853, %v2499
      %2576 = vst.msk [vmem:[%s2567 + $0x61] sm:$0xff] %vm1853, %v2500
      %2577 = vst.msk [vmem:[%s2567 + $0x69] sm:$0xff] %vm1853, %v2501
      %2578 = vst.msk [vmem:[%s2567 + $0x79] sm:$0xff] %vm1853, %v2502
      %2579 = vst.msk [vmem:[%s2567 + $0x81] sm:$0xff] %vm1853, %v2503
      %2580 = vst.msk [vmem:[%s2567 + $0x91] sm:$0xff] %vm1853, %v2504
      %2581 = vst.msk [vmem:[%s2567 + $0x99] sm:$0xff] %vm1853, %v2505
      %2582 = vst.msk [vmem:[%s2567 + $0xa9] sm:$0xff] %vm1853, %v2506
      %2583 = vst.msk [vmem:[%s2567 + $0xb1] sm:$0xff] %vm1853, %v2507
      %2584 = vst.msk [vmem:[%s2567 + $0xc1] sm:$0xff] %vm1853, %v2508
      %2585 = vst.msk [vmem:[%s2567 + $0xc9] sm:$0xff] %vm1853, %v2509
      %2586 = vst.msk [vmem:[%s2567 + $0xd9] sm:$0xff] %vm1853, %v2510
      %2587 = vst.msk [vmem:[%s2567 + $0xe1] sm:$0xff] %vm1853, %v2511
      %2588 = vst.msk [vmem:[%s2567 + $0xf1] sm:$0xff] %vm1853, %v2512
      %2589 = vst.msk [vmem:[%s2567 + $0xf9] sm:$0xff] %vm1853, %v2513
      %2590 = vst.msk [vmem:[%s2567 + $0x109] sm:$0xff] %vm1853, %v2514
      %2591 = vst.msk [vmem:[%s2567 + $0x111] sm:$0xff] %vm1853, %v2515
      %2592 = vst.msk [vmem:[%s2567 + $0x121] sm:$0xff] %vm1853, %v2516
      %2593 = vst.msk [vmem:[%s2567 + $0x129] sm:$0xff] %vm1853, %v2517
      %2594 = vst.msk [vmem:[%s2567 + $0x139] sm:$0xff] %vm1853, %v2518
      %2595 = vst.msk [vmem:[%s2567 + $0x141] sm:$0xff] %vm1853, %v2519
      %2596 = vst.msk [vmem:[%s2567 + $0x151] sm:$0xff] %vm1853, %v2520
      %2597 = vst.msk [vmem:[%s2567 + $0x159] sm:$0xff] %vm1853, %v2521
      %2598 = vst.msk [vmem:[%s2567 + $0x169] sm:$0xff] %vm1853, %v2522
      %2599 = vst.msk [vmem:[%s2567 + $0x171] sm:$0xff] %vm1853, %v2523
      %v2600 = vld [vmem:[#allocation3] sm:$0xff]
      %v2601 = vld [vmem:[#allocation3 + $0x8] sm:$0xff]
      %v2602 = vld [vmem:[#allocation3 + $0x18] sm:$0xff]
      %v2603 = vld [vmem:[#allocation3 + $0x20] sm:$0xff]
      %v2604 = vld [vmem:[#allocation3 + $0x30] sm:$0xff]
      %v2605 = vld [vmem:[#allocation3 + $0x38] sm:$0xff]
      %v2606 = vld [vmem:[#allocation3 + $0x48] sm:$0xff]
      %v2607 = vld [vmem:[#allocation3 + $0x50] sm:$0xff]
      %v2608 = vld [vmem:[#allocation3 + $0x60] sm:$0xff]
      %v2609 = vld [vmem:[#allocation3 + $0x68] sm:$0xff]
      %v2610 = vld [vmem:[#allocation3 + $0x78] sm:$0xff]
      %v2611 = vld [vmem:[#allocation3 + $0x80] sm:$0xff]
      %v2612 = vld [vmem:[#allocation3 + $0x90] sm:$0xff]
      %v2613 = vld [vmem:[#allocation3 + $0x98] sm:$0xff]
      %v2614 = vld [vmem:[#allocation3 + $0xa8] sm:$0xff]
      %v2615 = vld [vmem:[#allocation3 + $0xb0] sm:$0xff]
      %v2616 = vld [vmem:[#allocation3 + $0xc0] sm:$0xff]
      %v2617 = vld [vmem:[#allocation3 + $0xc8] sm:$0xff]
      %v2618 = vld [vmem:[#allocation3 + $0xd8] sm:$0xff]
      %v2619 = vld [vmem:[#allocation3 + $0xe0] sm:$0xff]
      %v2620 = vld [vmem:[#allocation3 + $0xf0] sm:$0xff]
      %v2621 = vld [vmem:[#allocation3 + $0xf8] sm:$0xff]
      %v2622 = vld [vmem:[#allocation3 + $0x108] sm:$0xff]
      %v2623 = vld [vmem:[#allocation3 + $0x110] sm:$0xff]
      %v2624 = vld [vmem:[#allocation3 + $0x120] sm:$0xff]
      %v2625 = vld [vmem:[#allocation3 + $0x128] sm:$0xff]
      %v2626 = vld [vmem:[#allocation3 + $0x138] sm:$0xff]
      %v2627 = vld [vmem:[#allocation3 + $0x140] sm:$0xff]
      %v2628 = vld [vmem:[#allocation3 + $0x150] sm:$0xff]
      %v2629 = vld [vmem:[#allocation3 + $0x158] sm:$0xff]
      %v2630 = vld [vmem:[#allocation3 + $0x168] sm:$0xff]
      %v2631 = vld [vmem:[#allocation3 + $0x170] sm:$0xff]
      %v2632 = vld [vmem:[#allocation3 + $0x1] sm:$0xff]
      %v2633 = vld [vmem:[#allocation3 + $0x9] sm:$0xff]
      %v2634 = vld [vmem:[#allocation3 + $0x19] sm:$0xff]
      %v2635 = vld [vmem:[#allocation3 + $0x21] sm:$0xff]
      %v2636 = vld [vmem:[#allocation3 + $0x31] sm:$0xff]
      %v2637 = vld [vmem:[#allocation3 + $0x39] sm:$0xff]
      %v2638 = vld [vmem:[#allocation3 + $0x49] sm:$0xff]
      %v2639 = vld [vmem:[#allocation3 + $0x51] sm:$0xff]
      %v2640 = vld [vmem:[#allocation3 + $0x61] sm:$0xff]
      %v2641 = vld [vmem:[#allocation3 + $0x69] sm:$0xff]
      %v2642 = vld [vmem:[#allocation3 + $0x79] sm:$0xff]
      %v2643 = vld [vmem:[#allocation3 + $0x81] sm:$0xff]
      %v2644 = vld [vmem:[#allocation3 + $0x91] sm:$0xff]
      %v2645 = vld [vmem:[#allocation3 + $0x99] sm:$0xff]
      %v2646 = vld [vmem:[#allocation3 + $0xa9] sm:$0xff]
      %v2647 = vld [vmem:[#allocation3 + $0xb1] sm:$0xff]
      %v2648 = vld [vmem:[#allocation3 + $0xc1] sm:$0xff]
      %v2649 = vld [vmem:[#allocation3 + $0xc9] sm:$0xff]
      %v2650 = vld [vmem:[#allocation3 + $0xd9] sm:$0xff]
      %v2651 = vld [vmem:[#allocation3 + $0xe1] sm:$0xff]
      %v2652 = vld [vmem:[#allocation3 + $0xf1] sm:$0xff]
      %v2653 = vld [vmem:[#allocation3 + $0xf9] sm:$0xff]
      %v2654 = vld [vmem:[#allocation3 + $0x109] sm:$0xff]
      %v2655 = vld [vmem:[#allocation3 + $0x111] sm:$0xff]
      %v2656 = vld [vmem:[#allocation3 + $0x121] sm:$0xff]
      %v2657 = vld [vmem:[#allocation3 + $0x129] sm:$0xff]
      %v2658 = vld [vmem:[#allocation3 + $0x139] sm:$0xff]
      %v2659 = vld [vmem:[#allocation3 + $0x141] sm:$0xff]
      %v2660 = vld [vmem:[#allocation3 + $0x151] sm:$0xff]
      %v2661 = vld [vmem:[#allocation3 + $0x159] sm:$0xff]
      %v2662 = vld [vmem:[#allocation3 + $0x169] sm:$0xff]
      %v2663 = vld [vmem:[#allocation3 + $0x171] sm:$0xff]
      %v2664 = vld [vmem:[#allocation3 + $0x2] sm:$0xff]
      %v2665 = vld [vmem:[#allocation3 + $0xa] sm:$0xff]
      %v2666 = vld [vmem:[#allocation3 + $0x1a] sm:$0xff]
      %v2667 = vld [vmem:[#allocation3 + $0x22] sm:$0xff]
      %v2668 = vld [vmem:[#allocation3 + $0x32] sm:$0xff]
      %v2669 = vld [vmem:[#allocation3 + $0x3a] sm:$0xff]
      %v2670 = vld [vmem:[#allocation3 + $0x4a] sm:$0xff]
      %v2671 = vld [vmem:[#allocation3 + $0x52] sm:$0xff]
      %v2672 = vld [vmem:[#allocation3 + $0x62] sm:$0xff]
      %v2673 = vld [vmem:[#allocation3 + $0x6a] sm:$0xff]
      %v2674 = vld [vmem:[#allocation3 + $0x7a] sm:$0xff]
      %v2675 = vld [vmem:[#allocation3 + $0x82] sm:$0xff]
      %v2676 = vld [vmem:[#allocation3 + $0x92] sm:$0xff]
      %v2677 = vld [vmem:[#allocation3 + $0x9a] sm:$0xff]
      %v2678 = vld [vmem:[#allocation3 + $0xaa] sm:$0xff]
      %v2679 = vld [vmem:[#allocation3 + $0xb2] sm:$0xff]
      %v2680 = vld [vmem:[#allocation3 + $0xc2] sm:$0xff]
      %v2681 = vld [vmem:[#allocation3 + $0xca] sm:$0xff]
      %v2682 = vld [vmem:[#allocation3 + $0xda] sm:$0xff]
      %v2683 = vld [vmem:[#allocation3 + $0xe2] sm:$0xff]
      %v2684 = vld [vmem:[#allocation3 + $0xf2] sm:$0xff]
      %v2685 = vld [vmem:[#allocation3 + $0xfa] sm:$0xff]
      %v2686 = vld [vmem:[#allocation3 + $0x10a] sm:$0xff]
      %v2687 = vld [vmem:[#allocation3 + $0x112] sm:$0xff]
      %v2688 = vld [vmem:[#allocation3 + $0x122] sm:$0xff]
      %v2689 = vld [vmem:[#allocation3 + $0x12a] sm:$0xff]
      %v2690 = vld [vmem:[#allocation3 + $0x13a] sm:$0xff]
      %v2691 = vld [vmem:[#allocation3 + $0x142] sm:$0xff]
      %v2692 = vld [vmem:[#allocation3 + $0x152] sm:$0xff]
      %v2693 = vld [vmem:[#allocation3 + $0x15a] sm:$0xff]
      %v2694 = vld [vmem:[#allocation3 + $0x16a] sm:$0xff]
      %v2695 = vld [vmem:[#allocation3 + $0x172] sm:$0xff]
      %v2696 = vld [vmem:[%s2567] sm:$0xff]
      %v2697 = vld [vmem:[%s2567 + $0x8] sm:$0xff]
      %v2698 = vld [vmem:[%s2567 + $0x18] sm:$0xff]
      %v2699 = vld [vmem:[%s2567 + $0x20] sm:$0xff]
      %v2700 = vld [vmem:[%s2567 + $0x30] sm:$0xff]
      %v2701 = vld [vmem:[%s2567 + $0x38] sm:$0xff]
      %v2702 = vld [vmem:[%s2567 + $0x48] sm:$0xff]
      %v2703 = vld [vmem:[%s2567 + $0x50] sm:$0xff]
      %v2704 = vld [vmem:[%s2567 + $0x60] sm:$0xff]
      %v2705 = vld [vmem:[%s2567 + $0x68] sm:$0xff]
      %v2706 = vld [vmem:[%s2567 + $0x78] sm:$0xff]
      %v2707 = vld [vmem:[%s2567 + $0x80] sm:$0xff]
      %v2708 = vld [vmem:[%s2567 + $0x90] sm:$0xff]
      %v2709 = vld [vmem:[%s2567 + $0x98] sm:$0xff]
      %v2710 = vld [vmem:[%s2567 + $0xa8] sm:$0xff]
      %v2711 = vld [vmem:[%s2567 + $0xb0] sm:$0xff]
      %v2712 = vld [vmem:[%s2567 + $0xc0] sm:$0xff]
      %v2713 = vld [vmem:[%s2567 + $0xc8] sm:$0xff]
      %v2714 = vld [vmem:[%s2567 + $0xd8] sm:$0xff]
      %v2715 = vld [vmem:[%s2567 + $0xe0] sm:$0xff]
      %v2716 = vld [vmem:[%s2567 + $0xf0] sm:$0xff]
      %v2717 = vld [vmem:[%s2567 + $0xf8] sm:$0xff]
      %v2718 = vld [vmem:[%s2567 + $0x108] sm:$0xff]
      %v2719 = vld [vmem:[%s2567 + $0x110] sm:$0xff]
      %v2720 = vld [vmem:[%s2567 + $0x120] sm:$0xff]
      %v2721 = vld [vmem:[%s2567 + $0x128] sm:$0xff]
      %v2722 = vld [vmem:[%s2567 + $0x138] sm:$0xff]
      %v2723 = vld [vmem:[%s2567 + $0x140] sm:$0xff]
      %v2724 = vld [vmem:[%s2567 + $0x150] sm:$0xff]
      %v2725 = vld [vmem:[%s2567 + $0x158] sm:$0xff]
      %v2726 = vld [vmem:[%s2567 + $0x168] sm:$0xff]
      %v2727 = vld [vmem:[%s2567 + $0x170] sm:$0xff]
      %v2728 = vld [vmem:[%s2567 + $0x1] sm:$0xff]
      %v2729 = vld [vmem:[%s2567 + $0x9] sm:$0xff]
      %v2730 = vld [vmem:[%s2567 + $0x19] sm:$0xff]
      %v2731 = vld [vmem:[%s2567 + $0x21] sm:$0xff]
      %v2732 = vld [vmem:[%s2567 + $0x31] sm:$0xff]
      %v2733 = vld [vmem:[%s2567 + $0x39] sm:$0xff]
      %v2734 = vld [vmem:[%s2567 + $0x49] sm:$0xff]
      %v2735 = vld [vmem:[%s2567 + $0x51] sm:$0xff]
      %v2736 = vld [vmem:[%s2567 + $0x61] sm:$0xff]
      %v2737 = vld [vmem:[%s2567 + $0x69] sm:$0xff]
      %v2738 = vld [vmem:[%s2567 + $0x79] sm:$0xff]
      %v2739 = vld [vmem:[%s2567 + $0x81] sm:$0xff]
      %v2740 = vld [vmem:[%s2567 + $0x91] sm:$0xff]
      %v2741 = vld [vmem:[%s2567 + $0x99] sm:$0xff]
      %v2742 = vld [vmem:[%s2567 + $0xa9] sm:$0xff]
      %v2743 = vld [vmem:[%s2567 + $0xb1] sm:$0xff]
      %v2744 = vld [vmem:[%s2567 + $0xc1] sm:$0xff]
      %v2745 = vld [vmem:[%s2567 + $0xc9] sm:$0xff]
      %v2746 = vld [vmem:[%s2567 + $0xd9] sm:$0xff]
      %v2747 = vld [vmem:[%s2567 + $0xe1] sm:$0xff]
      %v2748 = vld [vmem:[%s2567 + $0xf1] sm:$0xff]
      %v2749 = vld [vmem:[%s2567 + $0xf9] sm:$0xff]
      %v2750 = vld [vmem:[%s2567 + $0x109] sm:$0xff]
      %v2751 = vld [vmem:[%s2567 + $0x111] sm:$0xff]
      %v2752 = vld [vmem:[%s2567 + $0x121] sm:$0xff]
      %v2753 = vld [vmem:[%s2567 + $0x129] sm:$0xff]
      %v2754 = vld [vmem:[%s2567 + $0x139] sm:$0xff]
      %v2755 = vld [vmem:[%s2567 + $0x141] sm:$0xff]
      %v2756 = vld [vmem:[%s2567 + $0x151] sm:$0xff]
      %v2757 = vld [vmem:[%s2567 + $0x159] sm:$0xff]
      %v2758 = vld [vmem:[%s2567 + $0x169] sm:$0xff]
      %v2759 = vld [vmem:[%s2567 + $0x171] sm:$0xff]
      %v2760 = vld [vmem:[%s2567 + $0x2] sm:$0xff]
      %v2761 = vld [vmem:[%s2567 + $0xa] sm:$0xff]
      %v2762 = vld [vmem:[%s2567 + $0x1a] sm:$0xff]
      %v2763 = vld [vmem:[%s2567 + $0x22] sm:$0xff]
      %v2764 = vld [vmem:[%s2567 + $0x32] sm:$0xff]
      %v2765 = vld [vmem:[%s2567 + $0x3a] sm:$0xff]
      %v2766 = vld [vmem:[%s2567 + $0x4a] sm:$0xff]
      %v2767 = vld [vmem:[%s2567 + $0x52] sm:$0xff]
      %v2768 = vld [vmem:[%s2567 + $0x62] sm:$0xff]
      %v2769 = vld [vmem:[%s2567 + $0x6a] sm:$0xff]
      %v2770 = vld [vmem:[%s2567 + $0x7a] sm:$0xff]
      %v2771 = vld [vmem:[%s2567 + $0x82] sm:$0xff]
      %v2772 = vld [vmem:[%s2567 + $0x92] sm:$0xff]
      %v2773 = vld [vmem:[%s2567 + $0x9a] sm:$0xff]
      %v2774 = vld [vmem:[%s2567 + $0xaa] sm:$0xff]
      %v2775 = vld [vmem:[%s2567 + $0xb2] sm:$0xff]
      %v2776 = vld [vmem:[%s2567 + $0xc2] sm:$0xff]
      %v2777 = vld [vmem:[%s2567 + $0xca] sm:$0xff]
      %v2778 = vld [vmem:[%s2567 + $0xda] sm:$0xff]
      %v2779 = vld [vmem:[%s2567 + $0xe2] sm:$0xff]
      %v2780 = vld [vmem:[%s2567 + $0xf2] sm:$0xff]
      %v2781 = vld [vmem:[%s2567 + $0xfa] sm:$0xff]
      %v2782 = vld [vmem:[%s2567 + $0x10a] sm:$0xff]
      %v2783 = vld [vmem:[%s2567 + $0x112] sm:$0xff]
      %v2784 = vld [vmem:[%s2567 + $0x122] sm:$0xff]
      %v2785 = vld [vmem:[%s2567 + $0x12a] sm:$0xff]
      %v2786 = vld [vmem:[%s2567 + $0x13a] sm:$0xff]
      %v2787 = vld [vmem:[%s2567 + $0x142] sm:$0xff]
      %v2788 = vld [vmem:[%s2567 + $0x152] sm:$0xff]
      %v2789 = vld [vmem:[%s2567 + $0x15a] sm:$0xff]
      %v2790 = vld [vmem:[%s2567 + $0x16a] sm:$0xff]
      %v2791 = vld [vmem:[%s2567 + $0x172] sm:$0xff]
      %s2792 = scalar_lea.vmem [#allocation3], 48
      %v2793 = vld [vmem:[%s2792] sm:$0xff]
      %v2794 = vld [vmem:[%s2792 + $0x8] sm:$0xff]
      %v2795 = vld [vmem:[%s2792 + $0x18] sm:$0xff]
      %v2796 = vld [vmem:[%s2792 + $0x20] sm:$0xff]
      %v2797 = vld [vmem:[%s2792 + $0x30] sm:$0xff]
      %v2798 = vld [vmem:[%s2792 + $0x38] sm:$0xff]
      %v2799 = vld [vmem:[%s2792 + $0x48] sm:$0xff]
      %v2800 = vld [vmem:[%s2792 + $0x50] sm:$0xff]
      %v2801 = vld [vmem:[%s2792 + $0x60] sm:$0xff]
      %v2802 = vld [vmem:[%s2792 + $0x68] sm:$0xff]
      %v2803 = vld [vmem:[%s2792 + $0x78] sm:$0xff]
      %v2804 = vld [vmem:[%s2792 + $0x80] sm:$0xff]
      %v2805 = vld [vmem:[%s2792 + $0x90] sm:$0xff]
      %v2806 = vld [vmem:[%s2792 + $0x98] sm:$0xff]
      %v2807 = vld [vmem:[%s2792 + $0xa8] sm:$0xff]
      %v2808 = vld [vmem:[%s2792 + $0xb0] sm:$0xff]
      %v2809 = vld [vmem:[%s2792 + $0xc0] sm:$0xff]
      %v2810 = vld [vmem:[%s2792 + $0xc8] sm:$0xff]
      %v2811 = vld [vmem:[%s2792 + $0xd8] sm:$0xff]
      %v2812 = vld [vmem:[%s2792 + $0xe0] sm:$0xff]
      %v2813 = vld [vmem:[%s2792 + $0xf0] sm:$0xff]
      %v2814 = vld [vmem:[%s2792 + $0xf8] sm:$0xff]
      %v2815 = vld [vmem:[%s2792 + $0x108] sm:$0xff]
      %v2816 = vld [vmem:[%s2792 + $0x110] sm:$0xff]
      %v2817 = vld [vmem:[%s2792 + $0x120] sm:$0xff]
      %v2818 = vld [vmem:[%s2792 + $0x128] sm:$0xff]
      %v2819 = vld [vmem:[%s2792 + $0x138] sm:$0xff]
      %v2820 = vld [vmem:[%s2792 + $0x140] sm:$0xff]
      %v2821 = vld [vmem:[%s2792 + $0x150] sm:$0xff]
      %v2822 = vld [vmem:[%s2792 + $0x158] sm:$0xff]
      %v2823 = vld [vmem:[%s2792 + $0x168] sm:$0xff]
      %v2824 = vld [vmem:[%s2792 + $0x170] sm:$0xff]
      %v2825 = vld [vmem:[%s2792 + $0x1] sm:$0xff]
      %v2826 = vld [vmem:[%s2792 + $0x9] sm:$0xff]
      %v2827 = vld [vmem:[%s2792 + $0x19] sm:$0xff]
      %v2828 = vld [vmem:[%s2792 + $0x21] sm:$0xff]
      %v2829 = vld [vmem:[%s2792 + $0x31] sm:$0xff]
      %v2830 = vld [vmem:[%s2792 + $0x39] sm:$0xff]
      %v2831 = vld [vmem:[%s2792 + $0x49] sm:$0xff]
      %v2832 = vld [vmem:[%s2792 + $0x51] sm:$0xff]
      %v2833 = vld [vmem:[%s2792 + $0x61] sm:$0xff]
      %v2834 = vld [vmem:[%s2792 + $0x69] sm:$0xff]
      %v2835 = vld [vmem:[%s2792 + $0x79] sm:$0xff]
      %v2836 = vld [vmem:[%s2792 + $0x81] sm:$0xff]
      %v2837 = vld [vmem:[%s2792 + $0x91] sm:$0xff]
      %v2838 = vld [vmem:[%s2792 + $0x99] sm:$0xff]
      %v2839 = vld [vmem:[%s2792 + $0xa9] sm:$0xff]
      %v2840 = vld [vmem:[%s2792 + $0xb1] sm:$0xff]
      %v2841 = vld [vmem:[%s2792 + $0xc1] sm:$0xff]
      %v2842 = vld [vmem:[%s2792 + $0xc9] sm:$0xff]
      %v2843 = vld [vmem:[%s2792 + $0xd9] sm:$0xff]
      %v2844 = vld [vmem:[%s2792 + $0xe1] sm:$0xff]
      %v2845 = vld [vmem:[%s2792 + $0xf1] sm:$0xff]
      %v2846 = vld [vmem:[%s2792 + $0xf9] sm:$0xff]
      %v2847 = vld [vmem:[%s2792 + $0x109] sm:$0xff]
      %v2848 = vld [vmem:[%s2792 + $0x111] sm:$0xff]
      %v2849 = vld [vmem:[%s2792 + $0x121] sm:$0xff]
      %v2850 = vld [vmem:[%s2792 + $0x129] sm:$0xff]
      %v2851 = vld [vmem:[%s2792 + $0x139] sm:$0xff]
      %v2852 = vld [vmem:[%s2792 + $0x141] sm:$0xff]
      %v2853 = vld [vmem:[%s2792 + $0x151] sm:$0xff]
      %v2854 = vld [vmem:[%s2792 + $0x159] sm:$0xff]
      %v2855 = vld [vmem:[%s2792 + $0x169] sm:$0xff]
      %v2856 = vld [vmem:[%s2792 + $0x171] sm:$0xff]
      %v2857 = vld [vmem:[%s2792 + $0x2] sm:$0xff]
      %v2858 = vld [vmem:[%s2792 + $0xa] sm:$0xff]
      %v2859 = vld [vmem:[%s2792 + $0x1a] sm:$0xff]
      %v2860 = vld [vmem:[%s2792 + $0x22] sm:$0xff]
      %v2861 = vld [vmem:[%s2792 + $0x32] sm:$0xff]
      %v2862 = vld [vmem:[%s2792 + $0x3a] sm:$0xff]
      %v2863 = vld [vmem:[%s2792 + $0x4a] sm:$0xff]
      %v2864 = vld [vmem:[%s2792 + $0x52] sm:$0xff]
      %v2865 = vld [vmem:[%s2792 + $0x62] sm:$0xff]
      %v2866 = vld [vmem:[%s2792 + $0x6a] sm:$0xff]
      %v2867 = vld [vmem:[%s2792 + $0x7a] sm:$0xff]
      %v2868 = vld [vmem:[%s2792 + $0x82] sm:$0xff]
      %v2869 = vld [vmem:[%s2792 + $0x92] sm:$0xff]
      %v2870 = vld [vmem:[%s2792 + $0x9a] sm:$0xff]
      %v2871 = vld [vmem:[%s2792 + $0xaa] sm:$0xff]
      %v2872 = vld [vmem:[%s2792 + $0xb2] sm:$0xff]
      %v2873 = vld [vmem:[%s2792 + $0xc2] sm:$0xff]
      %v2874 = vld [vmem:[%s2792 + $0xca] sm:$0xff]
      %v2875 = vld [vmem:[%s2792 + $0xda] sm:$0xff]
      %v2876 = vld [vmem:[%s2792 + $0xe2] sm:$0xff]
      %v2877 = vld [vmem:[%s2792 + $0xf2] sm:$0xff]
      %v2878 = vld [vmem:[%s2792 + $0xfa] sm:$0xff]
      %v2879 = vld [vmem:[%s2792 + $0x10a] sm:$0xff]
      %v2880 = vld [vmem:[%s2792 + $0x112] sm:$0xff]
      %v2881 = vld [vmem:[%s2792 + $0x122] sm:$0xff]
      %v2882 = vld [vmem:[%s2792 + $0x12a] sm:$0xff]
      %v2883 = vld [vmem:[%s2792 + $0x13a] sm:$0xff]
      %v2884 = vld [vmem:[%s2792 + $0x142] sm:$0xff]
      %v2885 = vld [vmem:[%s2792 + $0x152] sm:$0xff]
      %v2886 = vld [vmem:[%s2792 + $0x15a] sm:$0xff]
      %v2887 = vld [vmem:[%s2792 + $0x16a] sm:$0xff]
      %v2888 = vld [vmem:[%s2792 + $0x172] sm:$0xff]
      %2921 = vrot.lane.b32.xlu0 %v2632, 8
      %v2922 = vpop.permute.xlu0 %2921
      %2923 = vrot.lane.b32.xlu0 %v2633, 8
      %v2924 = vpop.permute.xlu0 %2923
      %2925 = vrot.lane.b32.xlu0 %v2634, 8
      %v2926 = vpop.permute.xlu0 %2925
      %2927 = vrot.lane.b32.xlu0 %v2635, 8
      %v2928 = vpop.permute.xlu0 %2927
      %2929 = vrot.lane.b32.xlu0 %v2636, 8
      %v2930 = vpop.permute.xlu0 %2929
      %2931 = vrot.lane.b32.xlu0 %v2637, 8
      %v2932 = vpop.permute.xlu0 %2931
      %2933 = vrot.lane.b32.xlu0 %v2638, 8
      %v2934 = vpop.permute.xlu0 %2933
      %2935 = vrot.lane.b32.xlu0 %v2639, 8
      %v2936 = vpop.permute.xlu0 %2935
      %2937 = vrot.lane.b32.xlu0 %v2640, 8
      %v2938 = vpop.permute.xlu0 %2937
      %2939 = vrot.lane.b32.xlu0 %v2641, 8
      %v2940 = vpop.permute.xlu0 %2939
      %2941 = vrot.lane.b32.xlu0 %v2642, 8
      %v2942 = vpop.permute.xlu0 %2941
      %2943 = vrot.lane.b32.xlu0 %v2643, 8
      %v2944 = vpop.permute.xlu0 %2943
      %2945 = vrot.lane.b32.xlu0 %v2644, 8
      %v2946 = vpop.permute.xlu0 %2945
      %2947 = vrot.lane.b32.xlu0 %v2645, 8
      %v2948 = vpop.permute.xlu0 %2947
      %2949 = vrot.lane.b32.xlu0 %v2646, 8
      %v2950 = vpop.permute.xlu0 %2949
      %2951 = vrot.lane.b32.xlu0 %v2647, 8
      %v2952 = vpop.permute.xlu0 %2951
      %2953 = vrot.lane.b32.xlu0 %v2648, 8
      %v2954 = vpop.permute.xlu0 %2953
      %2955 = vrot.lane.b32.xlu0 %v2649, 8
      %v2956 = vpop.permute.xlu0 %2955
      %2957 = vrot.lane.b32.xlu0 %v2650, 8
      %v2958 = vpop.permute.xlu0 %2957
      %2959 = vrot.lane.b32.xlu0 %v2651, 8
      %v2960 = vpop.permute.xlu0 %2959
      %2961 = vrot.lane.b32.xlu0 %v2652, 8
      %v2962 = vpop.permute.xlu0 %2961
      %2963 = vrot.lane.b32.xlu0 %v2653, 8
      %v2964 = vpop.permute.xlu0 %2963
      %2965 = vrot.lane.b32.xlu0 %v2654, 8
      %v2966 = vpop.permute.xlu0 %2965
      %2967 = vrot.lane.b32.xlu0 %v2655, 8
      %v2968 = vpop.permute.xlu0 %2967
      %2969 = vrot.lane.b32.xlu0 %v2656, 8
      %v2970 = vpop.permute.xlu0 %2969
      %2971 = vrot.lane.b32.xlu0 %v2657, 8
      %v2972 = vpop.permute.xlu0 %2971
      %2973 = vrot.lane.b32.xlu0 %v2658, 8
      %v2974 = vpop.permute.xlu0 %2973
      %2975 = vrot.lane.b32.xlu0 %v2659, 8
      %v2976 = vpop.permute.xlu0 %2975
      %2977 = vrot.lane.b32.xlu0 %v2660, 8
      %v2978 = vpop.permute.xlu0 %2977
      %2979 = vrot.lane.b32.xlu0 %v2661, 8
      %v2980 = vpop.permute.xlu0 %2979
      %2981 = vrot.lane.b32.xlu0 %v2662, 8
      %v2982 = vpop.permute.xlu0 %2981
      %2983 = vrot.lane.b32.xlu0 %v2663, 8
      %v2984 = vpop.permute.xlu0 %2983
      %3049 = vrot.lane.b32.xlu0 %v2664, 16
      %v3050 = vpop.permute.xlu0 %3049
      %3051 = vrot.lane.b32.xlu0 %v2665, 16
      %v3052 = vpop.permute.xlu0 %3051
      %3053 = vrot.lane.b32.xlu0 %v2666, 16
      %v3054 = vpop.permute.xlu0 %3053
      %3055 = vrot.lane.b32.xlu0 %v2667, 16
      %v3056 = vpop.permute.xlu0 %3055
      %3057 = vrot.lane.b32.xlu0 %v2668, 16
      %v3058 = vpop.permute.xlu0 %3057
      %3059 = vrot.lane.b32.xlu0 %v2669, 16
      %v3060 = vpop.permute.xlu0 %3059
      %3061 = vrot.lane.b32.xlu0 %v2670, 16
      %v3062 = vpop.permute.xlu0 %3061
      %3063 = vrot.lane.b32.xlu0 %v2671, 16
      %v3064 = vpop.permute.xlu0 %3063
      %3065 = vrot.lane.b32.xlu0 %v2672, 16
      %v3066 = vpop.permute.xlu0 %3065
      %3067 = vrot.lane.b32.xlu0 %v2673, 16
      %v3068 = vpop.permute.xlu0 %3067
      %3069 = vrot.lane.b32.xlu0 %v2674, 16
      %v3070 = vpop.permute.xlu0 %3069
      %3071 = vrot.lane.b32.xlu0 %v2675, 16
      %v3072 = vpop.permute.xlu0 %3071
      %3073 = vrot.lane.b32.xlu0 %v2676, 16
      %v3074 = vpop.permute.xlu0 %3073
      %3075 = vrot.lane.b32.xlu0 %v2677, 16
      %v3076 = vpop.permute.xlu0 %3075
      %3077 = vrot.lane.b32.xlu0 %v2678, 16
      %v3078 = vpop.permute.xlu0 %3077
      %3079 = vrot.lane.b32.xlu0 %v2679, 16
      %v3080 = vpop.permute.xlu0 %3079
      %3081 = vrot.lane.b32.xlu0 %v2680, 16
      %v3082 = vpop.permute.xlu0 %3081
      %3083 = vrot.lane.b32.xlu0 %v2681, 16
      %v3084 = vpop.permute.xlu0 %3083
      %3085 = vrot.lane.b32.xlu0 %v2682, 16
      %v3086 = vpop.permute.xlu0 %3085
      %3087 = vrot.lane.b32.xlu0 %v2683, 16
      %v3088 = vpop.permute.xlu0 %3087
      %3089 = vrot.lane.b32.xlu0 %v2684, 16
      %v3090 = vpop.permute.xlu0 %3089
      %3091 = vrot.lane.b32.xlu0 %v2685, 16
      %v3092 = vpop.permute.xlu0 %3091
      %3093 = vrot.lane.b32.xlu0 %v2686, 16
      %v3094 = vpop.permute.xlu0 %3093
      %3095 = vrot.lane.b32.xlu0 %v2687, 16
      %v3096 = vpop.permute.xlu0 %3095
      %3097 = vrot.lane.b32.xlu0 %v2688, 16
      %v3098 = vpop.permute.xlu0 %3097
      %3099 = vrot.lane.b32.xlu0 %v2689, 16
      %v3100 = vpop.permute.xlu0 %3099
      %3101 = vrot.lane.b32.xlu0 %v2690, 16
      %v3102 = vpop.permute.xlu0 %3101
      %3103 = vrot.lane.b32.xlu0 %v2691, 16
      %v3104 = vpop.permute.xlu0 %3103
      %3105 = vrot.lane.b32.xlu0 %v2692, 16
      %v3106 = vpop.permute.xlu0 %3105
      %3107 = vrot.lane.b32.xlu0 %v2693, 16
      %v3108 = vpop.permute.xlu0 %3107
      %3109 = vrot.lane.b32.xlu0 %v2694, 16
      %v3110 = vpop.permute.xlu0 %3109
      %3111 = vrot.lane.b32.xlu0 %v2695, 16
      %v3112 = vpop.permute.xlu0 %3111
      %3177 = vrot.lane.b32.xlu0 %v2696, 24
      %v3178 = vpop.permute.xlu0 %3177
      %3179 = vrot.lane.b32.xlu0 %v2697, 24
      %v3180 = vpop.permute.xlu0 %3179
      %3181 = vrot.lane.b32.xlu0 %v2698, 24
      %v3182 = vpop.permute.xlu0 %3181
      %3183 = vrot.lane.b32.xlu0 %v2699, 24
      %v3184 = vpop.permute.xlu0 %3183
      %3185 = vrot.lane.b32.xlu0 %v2700, 24
      %v3186 = vpop.permute.xlu0 %3185
      %3187 = vrot.lane.b32.xlu0 %v2701, 24
      %v3188 = vpop.permute.xlu0 %3187
      %3189 = vrot.lane.b32.xlu0 %v2702, 24
      %v3190 = vpop.permute.xlu0 %3189
      %3191 = vrot.lane.b32.xlu0 %v2703, 24
      %v3192 = vpop.permute.xlu0 %3191
      %3193 = vrot.lane.b32.xlu0 %v2704, 24
      %v3194 = vpop.permute.xlu0 %3193
      %3195 = vrot.lane.b32.xlu0 %v2705, 24
      %v3196 = vpop.permute.xlu0 %3195
      %3197 = vrot.lane.b32.xlu0 %v2706, 24
      %v3198 = vpop.permute.xlu0 %3197
      %3199 = vrot.lane.b32.xlu0 %v2707, 24
      %v3200 = vpop.permute.xlu0 %3199
      %3201 = vrot.lane.b32.xlu0 %v2708, 24
      %v3202 = vpop.permute.xlu0 %3201
      %3203 = vrot.lane.b32.xlu0 %v2709, 24
      %v3204 = vpop.permute.xlu0 %3203
      %3205 = vrot.lane.b32.xlu0 %v2710, 24
      %v3206 = vpop.permute.xlu0 %3205
      %3207 = vrot.lane.b32.xlu0 %v2711, 24
      %v3208 = vpop.permute.xlu0 %3207
      %3209 = vrot.lane.b32.xlu0 %v2712, 24
      %v3210 = vpop.permute.xlu0 %3209
      %3211 = vrot.lane.b32.xlu0 %v2713, 24
      %v3212 = vpop.permute.xlu0 %3211
      %3213 = vrot.lane.b32.xlu0 %v2714, 24
      %v3214 = vpop.permute.xlu0 %3213
      %3215 = vrot.lane.b32.xlu0 %v2715, 24
      %v3216 = vpop.permute.xlu0 %3215
      %3217 = vrot.lane.b32.xlu0 %v2716, 24
      %v3218 = vpop.permute.xlu0 %3217
      %3219 = vrot.lane.b32.xlu0 %v2717, 24
      %v3220 = vpop.permute.xlu0 %3219
      %3221 = vrot.lane.b32.xlu0 %v2718, 24
      %v3222 = vpop.permute.xlu0 %3221
      %3223 = vrot.lane.b32.xlu0 %v2719, 24
      %v3224 = vpop.permute.xlu0 %3223
      %3225 = vrot.lane.b32.xlu0 %v2720, 24
      %v3226 = vpop.permute.xlu0 %3225
      %3227 = vrot.lane.b32.xlu0 %v2721, 24
      %v3228 = vpop.permute.xlu0 %3227
      %3229 = vrot.lane.b32.xlu0 %v2722, 24
      %v3230 = vpop.permute.xlu0 %3229
      %3231 = vrot.lane.b32.xlu0 %v2723, 24
      %v3232 = vpop.permute.xlu0 %3231
      %3233 = vrot.lane.b32.xlu0 %v2724, 24
      %v3234 = vpop.permute.xlu0 %3233
      %3235 = vrot.lane.b32.xlu0 %v2725, 24
      %v3236 = vpop.permute.xlu0 %3235
      %3237 = vrot.lane.b32.xlu0 %v2726, 24
      %v3238 = vpop.permute.xlu0 %3237
      %3239 = vrot.lane.b32.xlu0 %v2727, 24
      %v3240 = vpop.permute.xlu0 %3239
      %3305 = vrot.lane.b32.xlu0 %v2728, 32
      %v3306 = vpop.permute.xlu0 %3305
      %3307 = vrot.lane.b32.xlu0 %v2729, 32
      %v3308 = vpop.permute.xlu0 %3307
      %3309 = vrot.lane.b32.xlu0 %v2730, 32
      %v3310 = vpop.permute.xlu0 %3309
      %3311 = vrot.lane.b32.xlu0 %v2731, 32
      %v3312 = vpop.permute.xlu0 %3311
      %3313 = vrot.lane.b32.xlu0 %v2732, 32
      %v3314 = vpop.permute.xlu0 %3313
      %3315 = vrot.lane.b32.xlu0 %v2733, 32
      %v3316 = vpop.permute.xlu0 %3315
      %3317 = vrot.lane.b32.xlu0 %v2734, 32
      %v3318 = vpop.permute.xlu0 %3317
      %3319 = vrot.lane.b32.xlu0 %v2735, 32
      %v3320 = vpop.permute.xlu0 %3319
      %3321 = vrot.lane.b32.xlu0 %v2736, 32
      %v3322 = vpop.permute.xlu0 %3321
      %3323 = vrot.lane.b32.xlu0 %v2737, 32
      %v3324 = vpop.permute.xlu0 %3323
      %3325 = vrot.lane.b32.xlu0 %v2738, 32
      %v3326 = vpop.permute.xlu0 %3325
      %3327 = vrot.lane.b32.xlu0 %v2739, 32
      %v3328 = vpop.permute.xlu0 %3327
      %3329 = vrot.lane.b32.xlu0 %v2740, 32
      %v3330 = vpop.permute.xlu0 %3329
      %3331 = vrot.lane.b32.xlu0 %v2741, 32
      %v3332 = vpop.permute.xlu0 %3331
      %3333 = vrot.lane.b32.xlu0 %v2742, 32
      %v3334 = vpop.permute.xlu0 %3333
      %3335 = vrot.lane.b32.xlu0 %v2743, 32
      %v3336 = vpop.permute.xlu0 %3335
      %3337 = vrot.lane.b32.xlu0 %v2744, 32
      %v3338 = vpop.permute.xlu0 %3337
      %3339 = vrot.lane.b32.xlu0 %v2745, 32
      %v3340 = vpop.permute.xlu0 %3339
      %3341 = vrot.lane.b32.xlu0 %v2746, 32
      %v3342 = vpop.permute.xlu0 %3341
      %3343 = vrot.lane.b32.xlu0 %v2747, 32
      %v3344 = vpop.permute.xlu0 %3343
      %3345 = vrot.lane.b32.xlu0 %v2748, 32
      %v3346 = vpop.permute.xlu0 %3345
      %3347 = vrot.lane.b32.xlu0 %v2749, 32
      %v3348 = vpop.permute.xlu0 %3347
      %3349 = vrot.lane.b32.xlu0 %v2750, 32
      %v3350 = vpop.permute.xlu0 %3349
      %3351 = vrot.lane.b32.xlu0 %v2751, 32
      %v3352 = vpop.permute.xlu0 %3351
      %3353 = vrot.lane.b32.xlu0 %v2752, 32
      %v3354 = vpop.permute.xlu0 %3353
      %3355 = vrot.lane.b32.xlu0 %v2753, 32
      %v3356 = vpop.permute.xlu0 %3355
      %3357 = vrot.lane.b32.xlu0 %v2754, 32
      %v3358 = vpop.permute.xlu0 %3357
      %3359 = vrot.lane.b32.xlu0 %v2755, 32
      %v3360 = vpop.permute.xlu0 %3359
      %3361 = vrot.lane.b32.xlu0 %v2756, 32
      %v3362 = vpop.permute.xlu0 %3361
      %3363 = vrot.lane.b32.xlu0 %v2757, 32
      %v3364 = vpop.permute.xlu0 %3363
      %3365 = vrot.lane.b32.xlu0 %v2758, 32
      %v3366 = vpop.permute.xlu0 %3365
      %3367 = vrot.lane.b32.xlu0 %v2759, 32
      %v3368 = vpop.permute.xlu0 %3367
      %3433 = vrot.lane.b32.xlu0 %v2760, 40
      %v3434 = vpop.permute.xlu0 %3433
      %3435 = vrot.lane.b32.xlu0 %v2761, 40
      %v3436 = vpop.permute.xlu0 %3435
      %3437 = vrot.lane.b32.xlu0 %v2762, 40
      %v3438 = vpop.permute.xlu0 %3437
      %3439 = vrot.lane.b32.xlu0 %v2763, 40
      %v3440 = vpop.permute.xlu0 %3439
      %3441 = vrot.lane.b32.xlu0 %v2764, 40
      %v3442 = vpop.permute.xlu0 %3441
      %3443 = vrot.lane.b32.xlu0 %v2765, 40
      %v3444 = vpop.permute.xlu0 %3443
      %3445 = vrot.lane.b32.xlu0 %v2766, 40
      %v3446 = vpop.permute.xlu0 %3445
      %3447 = vrot.lane.b32.xlu0 %v2767, 40
      %v3448 = vpop.permute.xlu0 %3447
      %3449 = vrot.lane.b32.xlu0 %v2768, 40
      %v3450 = vpop.permute.xlu0 %3449
      %3451 = vrot.lane.b32.xlu0 %v2769, 40
      %v3452 = vpop.permute.xlu0 %3451
      %3453 = vrot.lane.b32.xlu0 %v2770, 40
      %v3454 = vpop.permute.xlu0 %3453
      %3455 = vrot.lane.b32.xlu0 %v2771, 40
      %v3456 = vpop.permute.xlu0 %3455
      %3457 = vrot.lane.b32.xlu0 %v2772, 40
      %v3458 = vpop.permute.xlu0 %3457
      %3459 = vrot.lane.b32.xlu0 %v2773, 40
      %v3460 = vpop.permute.xlu0 %3459
      %3461 = vrot.lane.b32.xlu0 %v2774, 40
      %v3462 = vpop.permute.xlu0 %3461
      %3463 = vrot.lane.b32.xlu0 %v2775, 40
      %v3464 = vpop.permute.xlu0 %3463
      %3465 = vrot.lane.b32.xlu0 %v2776, 40
      %v3466 = vpop.permute.xlu0 %3465
      %3467 = vrot.lane.b32.xlu0 %v2777, 40
      %v3468 = vpop.permute.xlu0 %3467
      %3469 = vrot.lane.b32.xlu0 %v2778, 40
      %v3470 = vpop.permute.xlu0 %3469
      %3471 = vrot.lane.b32.xlu0 %v2779, 40
      %v3472 = vpop.permute.xlu0 %3471
      %3473 = vrot.lane.b32.xlu0 %v2780, 40
      %v3474 = vpop.permute.xlu0 %3473
      %3475 = vrot.lane.b32.xlu0 %v2781, 40
      %v3476 = vpop.permute.xlu0 %3475
      %3477 = vrot.lane.b32.xlu0 %v2782, 40
      %v3478 = vpop.permute.xlu0 %3477
      %3479 = vrot.lane.b32.xlu0 %v2783, 40
      %v3480 = vpop.permute.xlu0 %3479
      %3481 = vrot.lane.b32.xlu0 %v2784, 40
      %v3482 = vpop.permute.xlu0 %3481
      %3483 = vrot.lane.b32.xlu0 %v2785, 40
      %v3484 = vpop.permute.xlu0 %3483
      %3485 = vrot.lane.b32.xlu0 %v2786, 40
      %v3486 = vpop.permute.xlu0 %3485
      %3487 = vrot.lane.b32.xlu0 %v2787, 40
      %v3488 = vpop.permute.xlu0 %3487
      %3489 = vrot.lane.b32.xlu0 %v2788, 40
      %v3490 = vpop.permute.xlu0 %3489
      %3491 = vrot.lane.b32.xlu0 %v2789, 40
      %v3492 = vpop.permute.xlu0 %3491
      %3493 = vrot.lane.b32.xlu0 %v2790, 40
      %v3494 = vpop.permute.xlu0 %3493
      %3495 = vrot.lane.b32.xlu0 %v2791, 40
      %v3496 = vpop.permute.xlu0 %3495
      %3561 = vrot.lane.b32.xlu0 %v2793, 48
      %v3562 = vpop.permute.xlu0 %3561
      %3563 = vrot.lane.b32.xlu0 %v2794, 48
      %v3564 = vpop.permute.xlu0 %3563
      %3565 = vrot.lane.b32.xlu0 %v2795, 48
      %v3566 = vpop.permute.xlu0 %3565
      %3567 = vrot.lane.b32.xlu0 %v2796, 48
      %v3568 = vpop.permute.xlu0 %3567
      %3569 = vrot.lane.b32.xlu0 %v2797, 48
      %v3570 = vpop.permute.xlu0 %3569
      %3571 = vrot.lane.b32.xlu0 %v2798, 48
      %v3572 = vpop.permute.xlu0 %3571
      %3573 = vrot.lane.b32.xlu0 %v2799, 48
      %v3574 = vpop.permute.xlu0 %3573
      %3575 = vrot.lane.b32.xlu0 %v2800, 48
      %v3576 = vpop.permute.xlu0 %3575
      %3577 = vrot.lane.b32.xlu0 %v2801, 48
      %v3578 = vpop.permute.xlu0 %3577
      %3579 = vrot.lane.b32.xlu0 %v2802, 48
      %v3580 = vpop.permute.xlu0 %3579
      %3581 = vrot.lane.b32.xlu0 %v2803, 48
      %v3582 = vpop.permute.xlu0 %3581
      %3583 = vrot.lane.b32.xlu0 %v2804, 48
      %v3584 = vpop.permute.xlu0 %3583
      %3585 = vrot.lane.b32.xlu0 %v2805, 48
      %v3586 = vpop.permute.xlu0 %3585
      %3587 = vrot.lane.b32.xlu0 %v2806, 48
      %v3588 = vpop.permute.xlu0 %3587
      %3589 = vrot.lane.b32.xlu0 %v2807, 48
      %v3590 = vpop.permute.xlu0 %3589
      %3591 = vrot.lane.b32.xlu0 %v2808, 48
      %v3592 = vpop.permute.xlu0 %3591
      %3593 = vrot.lane.b32.xlu0 %v2809, 48
      %v3594 = vpop.permute.xlu0 %3593
      %3595 = vrot.lane.b32.xlu0 %v2810, 48
      %v3596 = vpop.permute.xlu0 %3595
      %3597 = vrot.lane.b32.xlu0 %v2811, 48
      %v3598 = vpop.permute.xlu0 %3597
      %3599 = vrot.lane.b32.xlu0 %v2812, 48
      %v3600 = vpop.permute.xlu0 %3599
      %3601 = vrot.lane.b32.xlu0 %v2813, 48
      %v3602 = vpop.permute.xlu0 %3601
      %3603 = vrot.lane.b32.xlu0 %v2814, 48
      %v3604 = vpop.permute.xlu0 %3603
      %3605 = vrot.lane.b32.xlu0 %v2815, 48
      %v3606 = vpop.permute.xlu0 %3605
      %3607 = vrot.lane.b32.xlu0 %v2816, 48
      %v3608 = vpop.permute.xlu0 %3607
      %3609 = vrot.lane.b32.xlu0 %v2817, 48
      %v3610 = vpop.permute.xlu0 %3609
      %3611 = vrot.lane.b32.xlu0 %v2818, 48
      %v3612 = vpop.permute.xlu0 %3611
      %3613 = vrot.lane.b32.xlu0 %v2819, 48
      %v3614 = vpop.permute.xlu0 %3613
      %3615 = vrot.lane.b32.xlu0 %v2820, 48
      %v3616 = vpop.permute.xlu0 %3615
      %3617 = vrot.lane.b32.xlu0 %v2821, 48
      %v3618 = vpop.permute.xlu0 %3617
      %3619 = vrot.lane.b32.xlu0 %v2822, 48
      %v3620 = vpop.permute.xlu0 %3619
      %3621 = vrot.lane.b32.xlu0 %v2823, 48
      %v3622 = vpop.permute.xlu0 %3621
      %3623 = vrot.lane.b32.xlu0 %v2824, 48
      %v3624 = vpop.permute.xlu0 %3623
      %3689 = vrot.lane.b32.xlu0 %v2825, 56
      %v3690 = vpop.permute.xlu0 %3689
      %3691 = vrot.lane.b32.xlu0 %v2826, 56
      %v3692 = vpop.permute.xlu0 %3691
      %3693 = vrot.lane.b32.xlu0 %v2827, 56
      %v3694 = vpop.permute.xlu0 %3693
      %3695 = vrot.lane.b32.xlu0 %v2828, 56
      %v3696 = vpop.permute.xlu0 %3695
      %3697 = vrot.lane.b32.xlu0 %v2829, 56
      %v3698 = vpop.permute.xlu0 %3697
      %3699 = vrot.lane.b32.xlu0 %v2830, 56
      %v3700 = vpop.permute.xlu0 %3699
      %3701 = vrot.lane.b32.xlu0 %v2831, 56
      %v3702 = vpop.permute.xlu0 %3701
      %3703 = vrot.lane.b32.xlu0 %v2832, 56
      %v3704 = vpop.permute.xlu0 %3703
      %3705 = vrot.lane.b32.xlu0 %v2833, 56
      %v3706 = vpop.permute.xlu0 %3705
      %3707 = vrot.lane.b32.xlu0 %v2834, 56
      %v3708 = vpop.permute.xlu0 %3707
      %3709 = vrot.lane.b32.xlu0 %v2835, 56
      %v3710 = vpop.permute.xlu0 %3709
      %3711 = vrot.lane.b32.xlu0 %v2836, 56
      %v3712 = vpop.permute.xlu0 %3711
      %3713 = vrot.lane.b32.xlu0 %v2837, 56
      %v3714 = vpop.permute.xlu0 %3713
      %3715 = vrot.lane.b32.xlu0 %v2838, 56
      %v3716 = vpop.permute.xlu0 %3715
      %3717 = vrot.lane.b32.xlu0 %v2839, 56
      %v3718 = vpop.permute.xlu0 %3717
      %3719 = vrot.lane.b32.xlu0 %v2840, 56
      %v3720 = vpop.permute.xlu0 %3719
      %3721 = vrot.lane.b32.xlu0 %v2841, 56
      %v3722 = vpop.permute.xlu0 %3721
      %3723 = vrot.lane.b32.xlu0 %v2842, 56
      %v3724 = vpop.permute.xlu0 %3723
      %3725 = vrot.lane.b32.xlu0 %v2843, 56
      %v3726 = vpop.permute.xlu0 %3725
      %3727 = vrot.lane.b32.xlu0 %v2844, 56
      %v3728 = vpop.permute.xlu0 %3727
      %3729 = vrot.lane.b32.xlu0 %v2845, 56
      %v3730 = vpop.permute.xlu0 %3729
      %3731 = vrot.lane.b32.xlu0 %v2846, 56
      %v3732 = vpop.permute.xlu0 %3731
      %3733 = vrot.lane.b32.xlu0 %v2847, 56
      %v3734 = vpop.permute.xlu0 %3733
      %3735 = vrot.lane.b32.xlu0 %v2848, 56
      %v3736 = vpop.permute.xlu0 %3735
      %3737 = vrot.lane.b32.xlu0 %v2849, 56
      %v3738 = vpop.permute.xlu0 %3737
      %3739 = vrot.lane.b32.xlu0 %v2850, 56
      %v3740 = vpop.permute.xlu0 %3739
      %3741 = vrot.lane.b32.xlu0 %v2851, 56
      %v3742 = vpop.permute.xlu0 %3741
      %3743 = vrot.lane.b32.xlu0 %v2852, 56
      %v3744 = vpop.permute.xlu0 %3743
      %3745 = vrot.lane.b32.xlu0 %v2853, 56
      %v3746 = vpop.permute.xlu0 %3745
      %3747 = vrot.lane.b32.xlu0 %v2854, 56
      %v3748 = vpop.permute.xlu0 %3747
      %3749 = vrot.lane.b32.xlu0 %v2855, 56
      %v3750 = vpop.permute.xlu0 %3749
      %3751 = vrot.lane.b32.xlu0 %v2856, 56
      %v3752 = vpop.permute.xlu0 %3751
      %3817 = vrot.lane.b32.xlu0 %v2857, 64
      %v3818 = vpop.permute.xlu0 %3817
      %3819 = vrot.lane.b32.xlu0 %v2858, 64
      %v3820 = vpop.permute.xlu0 %3819
      %3821 = vrot.lane.b32.xlu0 %v2859, 64
      %v3822 = vpop.permute.xlu0 %3821
      %3823 = vrot.lane.b32.xlu0 %v2860, 64
      %v3824 = vpop.permute.xlu0 %3823
      %3825 = vrot.lane.b32.xlu0 %v2861, 64
      %v3826 = vpop.permute.xlu0 %3825
      %3827 = vrot.lane.b32.xlu0 %v2862, 64
      %v3828 = vpop.permute.xlu0 %3827
      %3829 = vrot.lane.b32.xlu0 %v2863, 64
      %v3830 = vpop.permute.xlu0 %3829
      %3831 = vrot.lane.b32.xlu0 %v2864, 64
      %v3832 = vpop.permute.xlu0 %3831
      %3833 = vrot.lane.b32.xlu0 %v2865, 64
      %v3834 = vpop.permute.xlu0 %3833
      %3835 = vrot.lane.b32.xlu0 %v2866, 64
      %v3836 = vpop.permute.xlu0 %3835
      %3837 = vrot.lane.b32.xlu0 %v2867, 64
      %v3838 = vpop.permute.xlu0 %3837
      %3839 = vrot.lane.b32.xlu0 %v2868, 64
      %v3840 = vpop.permute.xlu0 %3839
      %3841 = vrot.lane.b32.xlu0 %v2869, 64
      %v3842 = vpop.permute.xlu0 %3841
      %3843 = vrot.lane.b32.xlu0 %v2870, 64
      %v3844 = vpop.permute.xlu0 %3843
      %3845 = vrot.lane.b32.xlu0 %v2871, 64
      %v3846 = vpop.permute.xlu0 %3845
      %3847 = vrot.lane.b32.xlu0 %v2872, 64
      %v3848 = vpop.permute.xlu0 %3847
      %3849 = vrot.lane.b32.xlu0 %v2873, 64
      %v3850 = vpop.permute.xlu0 %3849
      %3851 = vrot.lane.b32.xlu0 %v2874, 64
      %v3852 = vpop.permute.xlu0 %3851
      %3853 = vrot.lane.b32.xlu0 %v2875, 64
      %v3854 = vpop.permute.xlu0 %3853
      %3855 = vrot.lane.b32.xlu0 %v2876, 64
      %v3856 = vpop.permute.xlu0 %3855
      %3857 = vrot.lane.b32.xlu0 %v2877, 64
      %v3858 = vpop.permute.xlu0 %3857
      %3859 = vrot.lane.b32.xlu0 %v2878, 64
      %v3860 = vpop.permute.xlu0 %3859
      %3861 = vrot.lane.b32.xlu0 %v2879, 64
      %v3862 = vpop.permute.xlu0 %3861
      %3863 = vrot.lane.b32.xlu0 %v2880, 64
      %v3864 = vpop.permute.xlu0 %3863
      %3865 = vrot.lane.b32.xlu0 %v2881, 64
      %v3866 = vpop.permute.xlu0 %3865
      %3867 = vrot.lane.b32.xlu0 %v2882, 64
      %v3868 = vpop.permute.xlu0 %3867
      %3869 = vrot.lane.b32.xlu0 %v2883, 64
      %v3870 = vpop.permute.xlu0 %3869
      %3871 = vrot.lane.b32.xlu0 %v2884, 64
      %v3872 = vpop.permute.xlu0 %3871
      %3873 = vrot.lane.b32.xlu0 %v2885, 64
      %v3874 = vpop.permute.xlu0 %3873
      %3875 = vrot.lane.b32.xlu0 %v2886, 64
      %v3876 = vpop.permute.xlu0 %3875
      %3877 = vrot.lane.b32.xlu0 %v2887, 64
      %v3878 = vpop.permute.xlu0 %3877
      %3879 = vrot.lane.b32.xlu0 %v2888, 64
      %v3880 = vpop.permute.xlu0 %3879
      %v3913 = vsel %vm1853, %v2600, %v2922
      %v3914 = vsel %vm1853, %v2601, %v2924
      %v3915 = vsel %vm1853, %v2602, %v2926
      %v3916 = vsel %vm1853, %v2603, %v2928
      %v3917 = vsel %vm1853, %v2604, %v2930
      %v3918 = vsel %vm1853, %v2605, %v2932
      %v3919 = vsel %vm1853, %v2606, %v2934
      %v3920 = vsel %vm1853, %v2607, %v2936
      %v3921 = vsel %vm1853, %v2608, %v2938
      %v3922 = vsel %vm1853, %v2609, %v2940
      %v3923 = vsel %vm1853, %v2610, %v2942
      %v3924 = vsel %vm1853, %v2611, %v2944
      %v3925 = vsel %vm1853, %v2612, %v2946
      %v3926 = vsel %vm1853, %v2613, %v2948
      %v3927 = vsel %vm1853, %v2614, %v2950
      %v3928 = vsel %vm1853, %v2615, %v2952
      %v3929 = vsel %vm1853, %v2616, %v2954
      %v3930 = vsel %vm1853, %v2617, %v2956
      %v3931 = vsel %vm1853, %v2618, %v2958
      %v3932 = vsel %vm1853, %v2619, %v2960
      %v3933 = vsel %vm1853, %v2620, %v2962
      %v3934 = vsel %vm1853, %v2621, %v2964
      %v3935 = vsel %vm1853, %v2622, %v2966
      %v3936 = vsel %vm1853, %v2623, %v2968
      %v3937 = vsel %vm1853, %v2624, %v2970
      %v3938 = vsel %vm1853, %v2625, %v2972
      %v3939 = vsel %vm1853, %v2626, %v2974
      %v3940 = vsel %vm1853, %v2627, %v2976
      %v3941 = vsel %vm1853, %v2628, %v2978
      %v3942 = vsel %vm1853, %v2629, %v2980
      %v3943 = vsel %vm1853, %v2630, %v2982
      %v3944 = vsel %vm1853, %v2631, %v2984
      %v3945 = vsel %vm360, %v3913, %v3050
      %v3946 = vsel %vm360, %v3914, %v3052
      %v3947 = vsel %vm360, %v3915, %v3054
      %v3948 = vsel %vm360, %v3916, %v3056
      %v3949 = vsel %vm360, %v3917, %v3058
      %v3950 = vsel %vm360, %v3918, %v3060
      %v3951 = vsel %vm360, %v3919, %v3062
      %v3952 = vsel %vm360, %v3920, %v3064
      %v3953 = vsel %vm360, %v3921, %v3066
      %v3954 = vsel %vm360, %v3922, %v3068
      %v3955 = vsel %vm360, %v3923, %v3070
      %v3956 = vsel %vm360, %v3924, %v3072
      %v3957 = vsel %vm360, %v3925, %v3074
      %v3958 = vsel %vm360, %v3926, %v3076
      %v3959 = vsel %vm360, %v3927, %v3078
      %v3960 = vsel %vm360, %v3928, %v3080
      %v3961 = vsel %vm360, %v3929, %v3082
      %v3962 = vsel %vm360, %v3930, %v3084
      %v3963 = vsel %vm360, %v3931, %v3086
      %v3964 = vsel %vm360, %v3932, %v3088
      %v3965 = vsel %vm360, %v3933, %v3090
      %v3966 = vsel %vm360, %v3934, %v3092
      %v3967 = vsel %vm360, %v3935, %v3094
      %v3968 = vsel %vm360, %v3936, %v3096
      %v3969 = vsel %vm360, %v3937, %v3098
      %v3970 = vsel %vm360, %v3938, %v3100
      %v3971 = vsel %vm360, %v3939, %v3102
      %v3972 = vsel %vm360, %v3940, %v3104
      %v3973 = vsel %vm360, %v3941, %v3106
      %v3974 = vsel %vm360, %v3942, %v3108
      %v3975 = vsel %vm360, %v3943, %v3110
      %v3976 = vsel %vm360, %v3944, %v3112
      %v3977 = vsel %vm1984, %v3945, %v3178
      %v3978 = vsel %vm1984, %v3946, %v3180
      %v3979 = vsel %vm1984, %v3947, %v3182
      %v3980 = vsel %vm1984, %v3948, %v3184
      %v3981 = vsel %vm1984, %v3949, %v3186
      %v3982 = vsel %vm1984, %v3950, %v3188
      %v3983 = vsel %vm1984, %v3951, %v3190
      %v3984 = vsel %vm1984, %v3952, %v3192
      %v3985 = vsel %vm1984, %v3953, %v3194
      %v3986 = vsel %vm1984, %v3954, %v3196
      %v3987 = vsel %vm1984, %v3955, %v3198
      %v3988 = vsel %vm1984, %v3956, %v3200
      %v3989 = vsel %vm1984, %v3957, %v3202
      %v3990 = vsel %vm1984, %v3958, %v3204
      %v3991 = vsel %vm1984, %v3959, %v3206
      %v3992 = vsel %vm1984, %v3960, %v3208
      %v3993 = vsel %vm1984, %v3961, %v3210
      %v3994 = vsel %vm1984, %v3962, %v3212
      %v3995 = vsel %vm1984, %v3963, %v3214
      %v3996 = vsel %vm1984, %v3964, %v3216
      %v3997 = vsel %vm1984, %v3965, %v3218
      %v3998 = vsel %vm1984, %v3966, %v3220
      %v3999 = vsel %vm1984, %v3967, %v3222
      %v4000 = vsel %vm1984, %v3968, %v3224
      %v4001 = vsel %vm1984, %v3969, %v3226
      %v4002 = vsel %vm1984, %v3970, %v3228
      %v4003 = vsel %vm1984, %v3971, %v3230
      %v4004 = vsel %vm1984, %v3972, %v3232
      %v4005 = vsel %vm1984, %v3973, %v3234
      %v4006 = vsel %vm1984, %v3974, %v3236
      %v4007 = vsel %vm1984, %v3975, %v3238
      %v4008 = vsel %vm1984, %v3976, %v3240
      %v4009 = vsel %vm2050, %v3977, %v3306
      %v4010 = vsel %vm2050, %v3978, %v3308
      %v4011 = vsel %vm2050, %v3979, %v3310
      %v4012 = vsel %vm2050, %v3980, %v3312
      %v4013 = vsel %vm2050, %v3981, %v3314
      %v4014 = vsel %vm2050, %v3982, %v3316
      %v4015 = vsel %vm2050, %v3983, %v3318
      %v4016 = vsel %vm2050, %v3984, %v3320
      %v4017 = vsel %vm2050, %v3985, %v3322
      %v4018 = vsel %vm2050, %v3986, %v3324
      %v4019 = vsel %vm2050, %v3987, %v3326
      %v4020 = vsel %vm2050, %v3988, %v3328
      %v4021 = vsel %vm2050, %v3989, %v3330
      %v4022 = vsel %vm2050, %v3990, %v3332
      %v4023 = vsel %vm2050, %v3991, %v3334
      %v4024 = vsel %vm2050, %v3992, %v3336
      %v4025 = vsel %vm2050, %v3993, %v3338
      %v4026 = vsel %vm2050, %v3994, %v3340
      %v4027 = vsel %vm2050, %v3995, %v3342
      %v4028 = vsel %vm2050, %v3996, %v3344
      %v4029 = vsel %vm2050, %v3997, %v3346
      %v4030 = vsel %vm2050, %v3998, %v3348
      %v4031 = vsel %vm2050, %v3999, %v3350
      %v4032 = vsel %vm2050, %v4000, %v3352
      %v4033 = vsel %vm2050, %v4001, %v3354
      %v4034 = vsel %vm2050, %v4002, %v3356
      %v4035 = vsel %vm2050, %v4003, %v3358
      %v4036 = vsel %vm2050, %v4004, %v3360
      %v4037 = vsel %vm2050, %v4005, %v3362
      %v4038 = vsel %vm2050, %v4006, %v3364
      %v4039 = vsel %vm2050, %v4007, %v3366
      %v4040 = vsel %vm2050, %v4008, %v3368
      %vm4041 = vcmask 326656
      %v4042 = vsel %vm4041, %v4009, %v3434
      %v4043 = vsel %vm4041, %v4010, %v3436
      %v4044 = vsel %vm4041, %v4011, %v3438
      %v4045 = vsel %vm4041, %v4012, %v3440
      %v4046 = vsel %vm4041, %v4013, %v3442
      %v4047 = vsel %vm4041, %v4014, %v3444
      %v4048 = vsel %vm4041, %v4015, %v3446
      %v4049 = vsel %vm4041, %v4016, %v3448
      %v4050 = vsel %vm4041, %v4017, %v3450
      %v4051 = vsel %vm4041, %v4018, %v3452
      %v4052 = vsel %vm4041, %v4019, %v3454
      %v4053 = vsel %vm4041, %v4020, %v3456
      %v4054 = vsel %vm4041, %v4021, %v3458
      %v4055 = vsel %vm4041, %v4022, %v3460
      %v4056 = vsel %vm4041, %v4023, %v3462
      %v4057 = vsel %vm4041, %v4024, %v3464
      %v4058 = vsel %vm4041, %v4025, %v3466
      %v4059 = vsel %vm4041, %v4026, %v3468
      %v4060 = vsel %vm4041, %v4027, %v3470
      %v4061 = vsel %vm4041, %v4028, %v3472
      %v4062 = vsel %vm4041, %v4029, %v3474
      %v4063 = vsel %vm4041, %v4030, %v3476
      %v4064 = vsel %vm4041, %v4031, %v3478
      %v4065 = vsel %vm4041, %v4032, %v3480
      %v4066 = vsel %vm4041, %v4033, %v3482
      %v4067 = vsel %vm4041, %v4034, %v3484
      %v4068 = vsel %vm4041, %v4035, %v3486
      %v4069 = vsel %vm4041, %v4036, %v3488
      %v4070 = vsel %vm4041, %v4037, %v3490
      %v4071 = vsel %vm4041, %v4038, %v3492
      %v4072 = vsel %vm4041, %v4039, %v3494
      %v4073 = vsel %vm4041, %v4040, %v3496
      %vm4074 = vcmask 392192
      %v4075 = vsel %vm4074, %v4042, %v3562
      %v4076 = vsel %vm4074, %v4043, %v3564
      %v4077 = vsel %vm4074, %v4044, %v3566
      %v4078 = vsel %vm4074, %v4045, %v3568
      %v4079 = vsel %vm4074, %v4046, %v3570
      %v4080 = vsel %vm4074, %v4047, %v3572
      %v4081 = vsel %vm4074, %v4048, %v3574
      %v4082 = vsel %vm4074, %v4049, %v3576
      %v4083 = vsel %vm4074, %v4050, %v3578
      %v4084 = vsel %vm4074, %v4051, %v3580
      %v4085 = vsel %vm4074, %v4052, %v3582
      %v4086 = vsel %vm4074, %v4053, %v3584
      %v4087 = vsel %vm4074, %v4054, %v3586
      %v4088 = vsel %vm4074, %v4055, %v3588
      %v4089 = vsel %vm4074, %v4056, %v3590
      %v4090 = vsel %vm4074, %v4057, %v3592
      %v4091 = vsel %vm4074, %v4058, %v3594
      %v4092 = vsel %vm4074, %v4059, %v3596
      %v4093 = vsel %vm4074, %v4060, %v3598
      %v4094 = vsel %vm4074, %v4061, %v3600
      %v4095 = vsel %vm4074, %v4062, %v3602
      %v4096 = vsel %vm4074, %v4063, %v3604
      %v4097 = vsel %vm4074, %v4064, %v3606
      %v4098 = vsel %vm4074, %v4065, %v3608
      %v4099 = vsel %vm4074, %v4066, %v3610
      %v4100 = vsel %vm4074, %v4067, %v3612
      %v4101 = vsel %vm4074, %v4068, %v3614
      %v4102 = vsel %vm4074, %v4069, %v3616
      %v4103 = vsel %vm4074, %v4070, %v3618
      %v4104 = vsel %vm4074, %v4071, %v3620
      %v4105 = vsel %vm4074, %v4072, %v3622
      %v4106 = vsel %vm4074, %v4073, %v3624
      %vm4107 = vcmask 457728
      %v4108 = vsel %vm4107, %v4075, %v3690
      %v4109 = vsel %vm4107, %v4076, %v3692
      %v4110 = vsel %vm4107, %v4077, %v3694
      %v4111 = vsel %vm4107, %v4078, %v3696
      %v4112 = vsel %vm4107, %v4079, %v3698
      %v4113 = vsel %vm4107, %v4080, %v3700
      %v4114 = vsel %vm4107, %v4081, %v3702
      %v4115 = vsel %vm4107, %v4082, %v3704
      %v4116 = vsel %vm4107, %v4083, %v3706
      %v4117 = vsel %vm4107, %v4084, %v3708
      %v4118 = vsel %vm4107, %v4085, %v3710
      %v4119 = vsel %vm4107, %v4086, %v3712
      %v4120 = vsel %vm4107, %v4087, %v3714
      %v4121 = vsel %vm4107, %v4088, %v3716
      %v4122 = vsel %vm4107, %v4089, %v3718
      %v4123 = vsel %vm4107, %v4090, %v3720
      %v4124 = vsel %vm4107, %v4091, %v3722
      %v4125 = vsel %vm4107, %v4092, %v3724
      %v4126 = vsel %vm4107, %v4093, %v3726
      %v4127 = vsel %vm4107, %v4094, %v3728
      %v4128 = vsel %vm4107, %v4095, %v3730
      %v4129 = vsel %vm4107, %v4096, %v3732
      %v4130 = vsel %vm4107, %v4097, %v3734
      %v4131 = vsel %vm4107, %v4098, %v3736
      %v4132 = vsel %vm4107, %v4099, %v3738
      %v4133 = vsel %vm4107, %v4100, %v3740
      %v4134 = vsel %vm4107, %v4101, %v3742
      %v4135 = vsel %vm4107, %v4102, %v3744
      %v4136 = vsel %vm4107, %v4103, %v3746
      %v4137 = vsel %vm4107, %v4104, %v3748
      %v4138 = vsel %vm4107, %v4105, %v3750
      %v4139 = vsel %vm4107, %v4106, %v3752
      %vm4140 = vcmask 523264
      %v4141 = vsel %vm4140, %v4108, %v3818
      %v4142 = vsel %vm4140, %v4109, %v3820
      %v4143 = vsel %vm4140, %v4110, %v3822
      %v4144 = vsel %vm4140, %v4111, %v3824
      %v4145 = vsel %vm4140, %v4112, %v3826
      %v4146 = vsel %vm4140, %v4113, %v3828
      %v4147 = vsel %vm4140, %v4114, %v3830
      %v4148 = vsel %vm4140, %v4115, %v3832
      %v4149 = vsel %vm4140, %v4116, %v3834
      %v4150 = vsel %vm4140, %v4117, %v3836
      %v4151 = vsel %vm4140, %v4118, %v3838
      %v4152 = vsel %vm4140, %v4119, %v3840
      %v4153 = vsel %vm4140, %v4120, %v3842
      %v4154 = vsel %vm4140, %v4121, %v3844
      %v4155 = vsel %vm4140, %v4122, %v3846
      %v4156 = vsel %vm4140, %v4123, %v3848
      %v4157 = vsel %vm4140, %v4124, %v3850
      %v4158 = vsel %vm4140, %v4125, %v3852
      %v4159 = vsel %vm4140, %v4126, %v3854
      %v4160 = vsel %vm4140, %v4127, %v3856
      %v4161 = vsel %vm4140, %v4128, %v3858
      %v4162 = vsel %vm4140, %v4129, %v3860
      %v4163 = vsel %vm4140, %v4130, %v3862
      %v4164 = vsel %vm4140, %v4131, %v3864
      %v4165 = vsel %vm4140, %v4132, %v3866
      %v4166 = vsel %vm4140, %v4133, %v3868
      %v4167 = vsel %vm4140, %v4134, %v3870
      %v4168 = vsel %vm4140, %v4135, %v3872
      %v4169 = vsel %vm4140, %v4136, %v3874
      %v4170 = vsel %vm4140, %v4137, %v3876
      %v4171 = vsel %vm4140, %v4138, %v3878
      %v4172 = vsel %vm4140, %v4139, %v3880
      %v4173 = vld [vmem:[%s4] sm:$0xff]
      %v4174 = vld [vmem:[%s4 + $0x8] sm:$0xff]
      %v4175 = vld [vmem:[%s4 + $0x10] sm:$0xff]
      %v4176 = vld [vmem:[%s4 + $0x18] sm:$0xff]
      %v4177 = vld [vmem:[%s4 + $0x20] sm:$0xff]
      %v4178 = vld [vmem:[%s4 + $0x28] sm:$0xff]
      %v4179 = vld [vmem:[%s4 + $0x30] sm:$0xff]
      %v4180 = vld [vmem:[%s4 + $0x38] sm:$0xff]
      %v4181 = vld [vmem:[%s4 + $0x40] sm:$0xff]
      %vm4182 = vcmask 588800
      %v4184 = vsel %vm4182, %v4141, 0
      %v4187 = vsel %vm4182, %v4142, 0
      %v4190 = vsel %vm4182, %v4143, 0
      %v4193 = vsel %vm4182, %v4144, 0
      %v4196 = vsel %vm4182, %v4145, 0
      %v4199 = vsel %vm4182, %v4146, 0
      %v4202 = vsel %vm4182, %v4147, 0
      %v4205 = vsel %vm4182, %v4148, 0
      %v4208 = vsel %vm4182, %v4149, 0
      %v4211 = vsel %vm4182, %v4150, 0
      %v4214 = vsel %vm4182, %v4151, 0
      %v4217 = vsel %vm4182, %v4152, 0
      %v4220 = vsel %vm4182, %v4153, 0
      %v4223 = vsel %vm4182, %v4154, 0
      %v4226 = vsel %vm4182, %v4155, 0
      %v4229 = vsel %vm4182, %v4156, 0
      %v4232 = vsel %vm4182, %v4157, 0
      %v4235 = vsel %vm4182, %v4158, 0
      %v4238 = vsel %vm4182, %v4159, 0
      %v4241 = vsel %vm4182, %v4160, 0
      %v4244 = vsel %vm4182, %v4161, 0
      %v4247 = vsel %vm4182, %v4162, 0
      %v4250 = vsel %vm4182, %v4163, 0
      %v4253 = vsel %vm4182, %v4164, 0
      %v4256 = vsel %vm4182, %v4165, 0
      %v4259 = vsel %vm4182, %v4166, 0
      %v4262 = vsel %vm4182, %v4167, 0
      %v4265 = vsel %vm4182, %v4168, 0
      %v4268 = vsel %vm4182, %v4169, 0
      %v4271 = vsel %vm4182, %v4170, 0
      %v4274 = vsel %vm4182, %v4171, 0
      %v4277 = vsel %vm4182, %v4172, 0
      %4279 = vmatprep.subr.mxu0 0.0
      %4280 = vmatpush1.msra.mxu0 0.0
      %4281 = vmatprep.subr.mxu0 0.0
      %4282 = vmatpush1.msra.mxu0 0.0
      %4283 = vmatprep.subr.mxu0 0.0
      %4284 = vmatpush1.msra.mxu0 0.0
      %4285 = vmatprep.subr.mxu0 0.0
      %4286 = vmatpush1.msra.mxu0 0.0
      %4287 = vmatprep.subr.mxu0 0.0
      %4288 = vmatpush1.msra.mxu0 0.0
      %4289 = vmatprep.subr.mxu0 0.0
      %4290 = vmatpush1.msra.mxu0 0.0
      %4291 = vmatprep.subr.mxu0 0.0
      %4292 = vmatpush1.msra.mxu0 0.0
      %4293 = vmatprep.subr.mxu0 0.0
      %4294 = vmatpush1.msra.mxu0 %v4181
      %4295 = vmatprep.subr.mxu0 0.0
      %4296 = vmatpush1.msra.mxu0 %v4180
      %4297 = vmatprep.subr.mxu0 0.0
      %4298 = vmatpush1.msra.mxu0 %v4179
      %4299 = vmatprep.subr.mxu0 0.0
      %4300 = vmatpush1.msra.mxu0 %v4178
      %4301 = vmatprep.subr.mxu0 0.0
      %4302 = vmatpush1.msra.mxu0 %v4177
      %4303 = vmatprep.subr.mxu0 0.0
      %4304 = vmatpush1.msra.mxu0 %v4176
      %4305 = vmatprep.subr.mxu0 0.0
      %4306 = vmatpush1.msra.mxu0 %v4175
      %4307 = vmatprep.subr.mxu0 0.0
      %4308 = vmatpush1.msra.mxu0 %v4174
      %4309 = vmatprep.subr.mxu0 0.0
      %4310 = vmatpush1.msra.mxu0 %v4173
      %4311 = vmatprep.subr.mxu0 0.0
      %4312 = vmatpush2.msra.mxu0 0.0
      %4313 = vmatprep.subr.mxu0 0.0
      %4314 = vmatpush2.msra.mxu0 0.0
      %4315 = vmatprep.subr.mxu0 0.0
      %4316 = vmatpush2.msra.mxu0 0.0
      %4317 = vmatprep.subr.mxu0 0.0
      %4318 = vmatpush2.msra.mxu0 0.0
      %4319 = vmatprep.subr.mxu0 0.0
      %4320 = vmatpush2.msra.mxu0 0.0
      %4321 = vmatprep.subr.mxu0 0.0
      %4322 = vmatpush2.msra.mxu0 0.0
      %4323 = vmatprep.subr.mxu0 0.0
      %4324 = vmatpush2.msra.mxu0 0.0
      %4325 = vmatprep.subr.mxu0 0.0
      %4326 = vmatpush2.msra.mxu0 0.0
      %4327 = vmatprep.subr.mxu0 0.0
      %4328 = vmatpush2.msra.mxu0 0.0
      %4329 = vmatprep.subr.mxu0 0.0
      %4330 = vmatpush2.msra.mxu0 0.0
      %4331 = vmatprep.subr.mxu0 0.0
      %4332 = vmatpush2.msra.mxu0 0.0
      %4333 = vmatprep.subr.mxu0 0.0
      %4334 = vmatpush2.msra.mxu0 0.0
      %4335 = vmatprep.subr.mxu0 0.0
      %4336 = vmatpush2.msra.mxu0 0.0
      %4337 = vmatprep.subr.mxu0 0.0
      %4338 = vmatpush2.msra.mxu0 0.0
      %4339 = vmatprep.subr.mxu0 0.0
      %4340 = vmatpush2.msra.mxu0 0.0
      %4341 = vmatprep.subr.mxu0 0.0
      %4342 = vmatpush2.msra.mxu0 0.0
      %4343 = vmatprep.mubr.f32.mxu0 0.0
      %4344 = vmatmul.mubr.f32.gmra.mxu0 %v4184
      %v4345 = vpop.f32.mrf.mxu0
      %v4346 = vadd.f32 0.0, %v4345
      %v4347 = vpop.f32.mrf.mxu0
      %4348 = vmatprep.mubr.f32.mxu0 0.0
      %4349 = vmatmul.mubr.f32.gmra.mxu0 %v4187
      %v4350 = vpop.f32.mrf.mxu0
      %v4351 = vadd.f32 0.0, %v4350
      %v4352 = vpop.f32.mrf.mxu0
      %4353 = vmatprep.mubr.f32.mxu0 0.0
      %4354 = vmatmul.mubr.f32.gmra.mxu0 %v4190
      %v4355 = vpop.f32.mrf.mxu0
      %v4356 = vadd.f32 0.0, %v4355
      %v4357 = vpop.f32.mrf.mxu0
      %4358 = vmatprep.mubr.f32.mxu0 0.0
      %4359 = vmatmul.mubr.f32.gmra.mxu0 %v4193
      %v4360 = vpop.f32.mrf.mxu0
      %v4361 = vadd.f32 0.0, %v4360
      %v4362 = vpop.f32.mrf.mxu0
      %4363 = vmatprep.mubr.f32.mxu0 0.0
      %4364 = vmatmul.mubr.f32.gmra.mxu0 %v4196
      %v4365 = vpop.f32.mrf.mxu0
      %v4366 = vadd.f32 0.0, %v4365
      %v4367 = vpop.f32.mrf.mxu0
      %4368 = vmatprep.mubr.f32.mxu0 0.0
      %4369 = vmatmul.mubr.f32.gmra.mxu0 %v4199
      %v4370 = vpop.f32.mrf.mxu0
      %v4371 = vadd.f32 0.0, %v4370
      %v4372 = vpop.f32.mrf.mxu0
      %4373 = vmatprep.mubr.f32.mxu0 0.0
      %4374 = vmatmul.mubr.f32.gmra.mxu0 %v4202
      %v4375 = vpop.f32.mrf.mxu0
      %v4376 = vadd.f32 0.0, %v4375
      %v4377 = vpop.f32.mrf.mxu0
      %4378 = vmatprep.mubr.f32.mxu0 0.0
      %4379 = vmatmul.mubr.f32.gmra.mxu0 %v4205
      %v4380 = vpop.f32.mrf.mxu0
      %v4381 = vadd.f32 0.0, %v4380
      %v4382 = vpop.f32.mrf.mxu0
      %4383 = vmatprep.mubr.f32.mxu0 0.0
      %4384 = vmatmul.mubr.f32.gmra.mxu0 %v4208
      %v4385 = vpop.f32.mrf.mxu0
      %v4386 = vadd.f32 0.0, %v4385
      %v4387 = vpop.f32.mrf.mxu0
      %4388 = vmatprep.mubr.f32.mxu0 0.0
      %4389 = vmatmul.mubr.f32.gmra.mxu0 %v4211
      %v4390 = vpop.f32.mrf.mxu0
      %v4391 = vadd.f32 0.0, %v4390
      %v4392 = vpop.f32.mrf.mxu0
      %4393 = vmatprep.mubr.f32.mxu0 0.0
      %4394 = vmatmul.mubr.f32.gmra.mxu0 %v4214
      %v4395 = vpop.f32.mrf.mxu0
      %v4396 = vadd.f32 0.0, %v4395
      %v4397 = vpop.f32.mrf.mxu0
      %4398 = vmatprep.mubr.f32.mxu0 0.0
      %4399 = vmatmul.mubr.f32.gmra.mxu0 %v4217
      %v4400 = vpop.f32.mrf.mxu0
      %v4401 = vadd.f32 0.0, %v4400
      %v4402 = vpop.f32.mrf.mxu0
      %4403 = vmatprep.mubr.f32.mxu0 0.0
      %4404 = vmatmul.mubr.f32.gmra.mxu0 %v4220
      %v4405 = vpop.f32.mrf.mxu0
      %v4406 = vadd.f32 0.0, %v4405
      %v4407 = vpop.f32.mrf.mxu0
      %4408 = vmatprep.mubr.f32.mxu0 0.0
      %4409 = vmatmul.mubr.f32.gmra.mxu0 %v4223
      %v4410 = vpop.f32.mrf.mxu0
      %v4411 = vadd.f32 0.0, %v4410
      %v4412 = vpop.f32.mrf.mxu0
      %4413 = vmatprep.mubr.f32.mxu0 0.0
      %4414 = vmatmul.mubr.f32.gmra.mxu0 %v4226
      %v4415 = vpop.f32.mrf.mxu0
      %v4416 = vadd.f32 0.0, %v4415
      %v4417 = vpop.f32.mrf.mxu0
      %4418 = vmatprep.mubr.f32.mxu0 0.0
      %4419 = vmatmul.mubr.f32.gmra.mxu0 %v4229
      %v4420 = vpop.f32.mrf.mxu0
      %v4421 = vadd.f32 0.0, %v4420
      %v4422 = vpop.f32.mrf.mxu0
      %4423 = vmatprep.mubr.f32.mxu0 0.0
      %4424 = vmatmul.mubr.f32.gmra.mxu0 %v4232
      %v4425 = vpop.f32.mrf.mxu0
      %v4426 = vadd.f32 0.0, %v4425
      %v4427 = vpop.f32.mrf.mxu0
      %4428 = vmatprep.mubr.f32.mxu0 0.0
      %4429 = vmatmul.mubr.f32.gmra.mxu0 %v4235
      %v4430 = vpop.f32.mrf.mxu0
      %v4431 = vadd.f32 0.0, %v4430
      %v4432 = vpop.f32.mrf.mxu0
      %4433 = vmatprep.mubr.f32.mxu0 0.0
      %4434 = vmatmul.mubr.f32.gmra.mxu0 %v4238
      %v4435 = vpop.f32.mrf.mxu0
      %v4436 = vadd.f32 0.0, %v4435
      %v4437 = vpop.f32.mrf.mxu0
      %4438 = vmatprep.mubr.f32.mxu0 0.0
      %4439 = vmatmul.mubr.f32.gmra.mxu0 %v4241
      %v4440 = vpop.f32.mrf.mxu0
      %v4441 = vadd.f32 0.0, %v4440
      %v4442 = vpop.f32.mrf.mxu0
      %4443 = vmatprep.mubr.f32.mxu0 0.0
      %4444 = vmatmul.mubr.f32.gmra.mxu0 %v4244
      %v4445 = vpop.f32.mrf.mxu0
      %v4446 = vadd.f32 0.0, %v4445
      %v4447 = vpop.f32.mrf.mxu0
      %4448 = vmatprep.mubr.f32.mxu0 0.0
      %4449 = vmatmul.mubr.f32.gmra.mxu0 %v4247
      %v4450 = vpop.f32.mrf.mxu0
      %v4451 = vadd.f32 0.0, %v4450
      %v4452 = vpop.f32.mrf.mxu0
      %4453 = vmatprep.mubr.f32.mxu0 0.0
      %4454 = vmatmul.mubr.f32.gmra.mxu0 %v4250
      %v4455 = vpop.f32.mrf.mxu0
      %v4456 = vadd.f32 0.0, %v4455
      %v4457 = vpop.f32.mrf.mxu0
      %4458 = vmatprep.mubr.f32.mxu0 0.0
      %4459 = vmatmul.mubr.f32.gmra.mxu0 %v4253
      %v4460 = vpop.f32.mrf.mxu0
      %v4461 = vadd.f32 0.0, %v4460
      %v4462 = vpop.f32.mrf.mxu0
      %4463 = vmatprep.mubr.f32.mxu0 0.0
      %4464 = vmatmul.mubr.f32.gmra.mxu0 %v4256
      %v4465 = vpop.f32.mrf.mxu0
      %v4466 = vadd.f32 0.0, %v4465
      %v4467 = vpop.f32.mrf.mxu0
      %4468 = vmatprep.mubr.f32.mxu0 0.0
      %4469 = vmatmul.mubr.f32.gmra.mxu0 %v4259
      %v4470 = vpop.f32.mrf.mxu0
      %v4471 = vadd.f32 0.0, %v4470
      %v4472 = vpop.f32.mrf.mxu0
      %4473 = vmatprep.mubr.f32.mxu0 0.0
      %4474 = vmatmul.mubr.f32.gmra.mxu0 %v4262
      %v4475 = vpop.f32.mrf.mxu0
      %v4476 = vadd.f32 0.0, %v4475
      %v4477 = vpop.f32.mrf.mxu0
      %4478 = vmatprep.mubr.f32.mxu0 0.0
      %4479 = vmatmul.mubr.f32.gmra.mxu0 %v4265
      %v4480 = vpop.f32.mrf.mxu0
      %v4481 = vadd.f32 0.0, %v4480
      %v4482 = vpop.f32.mrf.mxu0
      %4483 = vmatprep.mubr.f32.mxu0 0.0
      %4484 = vmatmul.mubr.f32.gmra.mxu0 %v4268
      %v4485 = vpop.f32.mrf.mxu0
      %v4486 = vadd.f32 0.0, %v4485
      %v4487 = vpop.f32.mrf.mxu0
      %4488 = vmatprep.mubr.f32.mxu0 0.0
      %4489 = vmatmul.mubr.f32.gmra.mxu0 %v4271
      %v4490 = vpop.f32.mrf.mxu0
      %v4491 = vadd.f32 0.0, %v4490
      %v4492 = vpop.f32.mrf.mxu0
      %4493 = vmatprep.mubr.f32.mxu0 0.0
      %4494 = vmatmul.mubr.f32.gmra.mxu0 %v4274
      %v4495 = vpop.f32.mrf.mxu0
      %v4496 = vadd.f32 0.0, %v4495
      %v4497 = vpop.f32.mrf.mxu0
      %4498 = vmatprep.mubr.f32.mxu0 0.0
      %4499 = vmatmul.mubr.f32.gmra.mxu0 %v4277
      %v4500 = vpop.f32.mrf.mxu0
      %v4501 = vadd.f32 0.0, %v4500
      %v4502 = vpop.f32.mrf.mxu0
      %4503 = vdwg.mxu0
      %v4504 = vld [vmem:[%s5] sm:$0x1]
      %v4506 = vlaneseq
      %v4507 = vshrl.u32 %v4506, 7
      %v4508 = vsub.s32 0, %v4507
      %v4509 = vrot.slane %v4504, %v4508
      %v4511 = vmul.f32 %v4346, %v4509
      %v4512 = vmul.f32 %v4351, %v4509
      %v4513 = vmul.f32 %v4356, %v4509
      %v4514 = vmul.f32 %v4361, %v4509
      %v4515 = vmul.f32 %v4366, %v4509
      %v4516 = vmul.f32 %v4371, %v4509
      %v4517 = vmul.f32 %v4376, %v4509
      %v4518 = vmul.f32 %v4381, %v4509
      %v4519 = vmul.f32 %v4386, %v4509
      %v4520 = vmul.f32 %v4391, %v4509
      %v4521 = vmul.f32 %v4396, %v4509
      %v4522 = vmul.f32 %v4401, %v4509
      %v4523 = vmul.f32 %v4406, %v4509
      %v4524 = vmul.f32 %v4411, %v4509
      %v4525 = vmul.f32 %v4416, %v4509
      %v4526 = vmul.f32 %v4421, %v4509
      %v4527 = vmul.f32 %v4426, %v4509
      %v4528 = vmul.f32 %v4431, %v4509
      %v4529 = vmul.f32 %v4436, %v4509
      %v4530 = vmul.f32 %v4441, %v4509
      %v4531 = vmul.f32 %v4446, %v4509
      %v4532 = vmul.f32 %v4451, %v4509
      %v4533 = vmul.f32 %v4456, %v4509
      %v4534 = vmul.f32 %v4461, %v4509
      %v4535 = vmul.f32 %v4466, %v4509
      %v4536 = vmul.f32 %v4471, %v4509
      %v4537 = vmul.f32 %v4476, %v4509
      %v4538 = vmul.f32 %v4481, %v4509
      %v4539 = vmul.f32 %v4486, %v4509
      %v4540 = vmul.f32 %v4491, %v4509
      %v4541 = vmul.f32 %v4496, %v4509
      %v4542 = vmul.f32 %v4501, %v4509
      %v4543 = vld [vmem:[%s6] sm:$0x1]
      %v4545 = vlaneseq
      %v4546 = vshrl.u32 %v4545, 7
      %v4547 = vsub.s32 0, %v4546
      %v4548 = vrot.slane %v4543, %v4547
      %v4550 = vadd.f32 %v4511, %v4548
      %v4551 = vadd.f32 %v4512, %v4548
      %v4552 = vadd.f32 %v4513, %v4548
      %v4553 = vadd.f32 %v4514, %v4548
      %v4554 = vadd.f32 %v4515, %v4548
      %v4555 = vadd.f32 %v4516, %v4548
      %v4556 = vadd.f32 %v4517, %v4548
      %v4557 = vadd.f32 %v4518, %v4548
      %v4558 = vadd.f32 %v4519, %v4548
      %v4559 = vadd.f32 %v4520, %v4548
      %v4560 = vadd.f32 %v4521, %v4548
      %v4561 = vadd.f32 %v4522, %v4548
      %v4562 = vadd.f32 %v4523, %v4548
      %v4563 = vadd.f32 %v4524, %v4548
      %v4564 = vadd.f32 %v4525, %v4548
      %v4565 = vadd.f32 %v4526, %v4548
      %v4566 = vadd.f32 %v4527, %v4548
      %v4567 = vadd.f32 %v4528, %v4548
      %v4568 = vadd.f32 %v4529, %v4548
      %v4569 = vadd.f32 %v4530, %v4548
      %v4570 = vadd.f32 %v4531, %v4548
      %v4571 = vadd.f32 %v4532, %v4548
      %v4572 = vadd.f32 %v4533, %v4548
      %v4573 = vadd.f32 %v4534, %v4548
      %v4574 = vadd.f32 %v4535, %v4548
      %v4575 = vadd.f32 %v4536, %v4548
      %v4576 = vadd.f32 %v4537, %v4548
      %v4577 = vadd.f32 %v4538, %v4548
      %v4578 = vadd.f32 %v4539, %v4548
      %v4579 = vadd.f32 %v4540, %v4548
      %v4580 = vadd.f32 %v4541, %v4548
      %v4581 = vadd.f32 %v4542, %v4548
      %v4582 = vmax.f32 %v4550, 0.0
      %v4583 = vmax.f32 %v4551, 0.0
      %v4584 = vmax.f32 %v4552, 0.0
      %v4585 = vmax.f32 %v4553, 0.0
      %v4586 = vmax.f32 %v4554, 0.0
      %v4587 = vmax.f32 %v4555, 0.0
      %v4588 = vmax.f32 %v4556, 0.0
      %v4589 = vmax.f32 %v4557, 0.0
      %v4590 = vmax.f32 %v4558, 0.0
      %v4591 = vmax.f32 %v4559, 0.0
      %v4592 = vmax.f32 %v4560, 0.0
      %v4593 = vmax.f32 %v4561, 0.0
      %v4594 = vmax.f32 %v4562, 0.0
      %v4595 = vmax.f32 %v4563, 0.0
      %v4596 = vmax.f32 %v4564, 0.0
      %v4597 = vmax.f32 %v4565, 0.0
      %v4598 = vmax.f32 %v4566, 0.0
      %v4599 = vmax.f32 %v4567, 0.0
      %v4600 = vmax.f32 %v4568, 0.0
      %v4601 = vmax.f32 %v4569, 0.0
      %v4602 = vmax.f32 %v4570, 0.0
      %v4603 = vmax.f32 %v4571, 0.0
      %v4604 = vmax.f32 %v4572, 0.0
      %v4605 = vmax.f32 %v4573, 0.0
      %v4606 = vmax.f32 %v4574, 0.0
      %v4607 = vmax.f32 %v4575, 0.0
      %v4608 = vmax.f32 %v4576, 0.0
      %v4609 = vmax.f32 %v4577, 0.0
      %v4610 = vmax.f32 %v4578, 0.0
      %v4611 = vmax.f32 %v4579, 0.0
      %v4612 = vmax.f32 %v4580, 0.0
      %v4613 = vmax.f32 %v4581, 0.0
      %4614 = vst.msk [vmem:[#allocation2] sm:$0xff] %vm360, 0.0
      %4615 = vst.msk [vmem:[#allocation2 + $0x8] sm:$0xff] %vm360, 0.0
      %4616 = vst.msk [vmem:[#allocation2 + $0x10] sm:$0x3] %vm363, 0.0
      %4617 = vst.msk [vmem:[%s365] sm:$0xff] %vm360, 0.0
      %4618 = vst.msk [vmem:[%s365 + $0x8] sm:$0xff] %vm360, 0.0
      %4619 = vst.msk [vmem:[%s365 + $0x10] sm:$0x3] %vm363, 0.0
      %4620 = vst.msk [vmem:[#allocation2] sm:$0x1] %vm369, 0.0
      %4621 = vst.msk [vmem:[#allocation2 + $0x18] sm:$0x1] %vm369, 0.0
      %4622 = vst.msk [vmem:[#allocation2 + $0x30] sm:$0x1] %vm369, 0.0
      %4623 = vst.msk [vmem:[#allocation2 + $0x48] sm:$0x1] %vm369, 0.0
      %4624 = vst.msk [vmem:[#allocation2 + $0x60] sm:$0x1] %vm369, 0.0
      %4625 = vst.msk [vmem:[#allocation2 + $0x78] sm:$0x1] %vm369, 0.0
      %4626 = vst.msk [vmem:[#allocation2 + $0x90] sm:$0x1] %vm369, 0.0
      %4627 = vst.msk [vmem:[#allocation2 + $0xa8] sm:$0x1] %vm369, 0.0
      %4628 = vst.msk [vmem:[#allocation2 + $0xc0] sm:$0x1] %vm369, 0.0
      %4629 = vst.msk [vmem:[#allocation2 + $0xd8] sm:$0x1] %vm369, 0.0
      %4630 = vst.msk [vmem:[#allocation2 + $0xf0] sm:$0x1] %vm369, 0.0
      %4631 = vst.msk [vmem:[#allocation2 + $0x108] sm:$0x1] %vm369, 0.0
      %4632 = vst.msk [vmem:[#allocation2 + $0x120] sm:$0x1] %vm369, 0.0
      %4633 = vst.msk [vmem:[#allocation2 + $0x138] sm:$0x1] %vm369, 0.0
      %4634 = vst.msk [vmem:[#allocation2 + $0x150] sm:$0x1] %vm369, 0.0
      %4635 = vst.msk [vmem:[#allocation2 + $0x168] sm:$0x1] %vm369, 0.0
      %4636 = vst.msk [vmem:[#allocation2 + $0x180] sm:$0x1] %vm369, 0.0
      %4637 = vst.msk [vmem:[#allocation2 + $0x198] sm:$0x1] %vm369, 0.0
      %4638 = vst.msk [vmem:[#allocation2 + $0x11] sm:$0x1] %vm369, 0.0
      %4639 = vst.msk [vmem:[#allocation2 + $0x29] sm:$0x1] %vm369, 0.0
      %4640 = vst.msk [vmem:[#allocation2 + $0x41] sm:$0x1] %vm369, 0.0
      %4641 = vst.msk [vmem:[#allocation2 + $0x59] sm:$0x1] %vm369, 0.0
      %4642 = vst.msk [vmem:[#allocation2 + $0x71] sm:$0x1] %vm369, 0.0
      %4643 = vst.msk [vmem:[#allocation2 + $0x89] sm:$0x1] %vm369, 0.0
      %4644 = vst.msk [vmem:[#allocation2 + $0xa1] sm:$0x1] %vm369, 0.0
      %4645 = vst.msk [vmem:[#allocation2 + $0xb9] sm:$0x1] %vm369, 0.0
      %4646 = vst.msk [vmem:[#allocation2 + $0xd1] sm:$0x1] %vm369, 0.0
      %4647 = vst.msk [vmem:[#allocation2 + $0xe9] sm:$0x1] %vm369, 0.0
      %4648 = vst.msk [vmem:[#allocation2 + $0x101] sm:$0x1] %vm369, 0.0
      %4649 = vst.msk [vmem:[#allocation2 + $0x119] sm:$0x1] %vm369, 0.0
      %4650 = vst.msk [vmem:[#allocation2 + $0x131] sm:$0x1] %vm369, 0.0
      %4651 = vst.msk [vmem:[#allocation2 + $0x149] sm:$0x1] %vm369, 0.0
      %4652 = vst.msk [vmem:[#allocation2 + $0x161] sm:$0x1] %vm369, 0.0
      %4653 = vst.msk [vmem:[#allocation2 + $0x179] sm:$0x1] %vm369, 0.0
      %4654 = vst.msk [vmem:[#allocation2 + $0x191] sm:$0x1] %vm369, 0.0
      %4655 = vst.msk [vmem:[#allocation2 + $0x1a9] sm:$0x1] %vm369, 0.0
      %4656 = vst.msk [vmem:[%s474 + $0x1] sm:$0xff] %vm360, %v4582
      %4657 = vst.msk [vmem:[%s474 + $0x9] sm:$0xff] %vm360, %v4583
      %4658 = vst.msk [vmem:[%s474 + $0x19] sm:$0xff] %vm360, %v4584
      %4659 = vst.msk [vmem:[%s474 + $0x21] sm:$0xff] %vm360, %v4585
      %4660 = vst.msk [vmem:[%s474 + $0x31] sm:$0xff] %vm360, %v4586
      %4661 = vst.msk [vmem:[%s474 + $0x39] sm:$0xff] %vm360, %v4587
      %4662 = vst.msk [vmem:[%s474 + $0x49] sm:$0xff] %vm360, %v4588
      %4663 = vst.msk [vmem:[%s474 + $0x51] sm:$0xff] %vm360, %v4589
      %4664 = vst.msk [vmem:[%s474 + $0x61] sm:$0xff] %vm360, %v4590
      %4665 = vst.msk [vmem:[%s474 + $0x69] sm:$0xff] %vm360, %v4591
      %4666 = vst.msk [vmem:[%s474 + $0x79] sm:$0xff] %vm360, %v4592
      %4667 = vst.msk [vmem:[%s474 + $0x81] sm:$0xff] %vm360, %v4593
      %4668 = vst.msk [vmem:[%s474 + $0x91] sm:$0xff] %vm360, %v4594
      %4669 = vst.msk [vmem:[%s474 + $0x99] sm:$0xff] %vm360, %v4595
      %4670 = vst.msk [vmem:[%s474 + $0xa9] sm:$0xff] %vm360, %v4596
      %4671 = vst.msk [vmem:[%s474 + $0xb1] sm:$0xff] %vm360, %v4597
      %4672 = vst.msk [vmem:[%s474 + $0xc1] sm:$0xff] %vm360, %v4598
      %4673 = vst.msk [vmem:[%s474 + $0xc9] sm:$0xff] %vm360, %v4599
      %4674 = vst.msk [vmem:[%s474 + $0xd9] sm:$0xff] %vm360, %v4600
      %4675 = vst.msk [vmem:[%s474 + $0xe1] sm:$0xff] %vm360, %v4601
      %4676 = vst.msk [vmem:[%s474 + $0xf1] sm:$0xff] %vm360, %v4602
      %4677 = vst.msk [vmem:[%s474 + $0xf9] sm:$0xff] %vm360, %v4603
      %4678 = vst.msk [vmem:[%s474 + $0x109] sm:$0xff] %vm360, %v4604
      %4679 = vst.msk [vmem:[%s474 + $0x111] sm:$0xff] %vm360, %v4605
      %4680 = vst.msk [vmem:[%s474 + $0x121] sm:$0xff] %vm360, %v4606
      %4681 = vst.msk [vmem:[%s474 + $0x129] sm:$0xff] %vm360, %v4607
      %4682 = vst.msk [vmem:[%s474 + $0x139] sm:$0xff] %vm360, %v4608
      %4683 = vst.msk [vmem:[%s474 + $0x141] sm:$0xff] %vm360, %v4609
      %4684 = vst.msk [vmem:[%s474 + $0x151] sm:$0xff] %vm360, %v4610
      %4685 = vst.msk [vmem:[%s474 + $0x159] sm:$0xff] %vm360, %v4611
      %4686 = vst.msk [vmem:[%s474 + $0x169] sm:$0xff] %vm360, %v4612
      %4687 = vst.msk [vmem:[%s474 + $0x171] sm:$0xff] %vm360, %v4613
      %v4688 = vld [vmem:[#allocation2] ss:$2 sm:$0xff]
      %s4689 = scalar_lea.vmem [#allocation2], 48
      %v4690 = vld [vmem:[%s4689] ss:$2 sm:$0xff]
      %s4691 = scalar_lea.vmem [#allocation2], 96
      %v4692 = vld [vmem:[%s4691] ss:$2 sm:$0xff]
      %s4693 = scalar_lea.vmem [#allocation2], 144
      %v4694 = vld [vmem:[%s4693] ss:$2 sm:$0xff]
      %s4695 = scalar_lea.vmem [#allocation2], 192
      %v4696 = vld [vmem:[%s4695] ss:$2 sm:$0xff]
      %s4697 = scalar_lea.vmem [#allocation2], 240
      %v4698 = vld [vmem:[%s4697] ss:$2 sm:$0xff]
      %s4699 = scalar_lea.vmem [#allocation2], 288
      %v4700 = vld [vmem:[%s4699] ss:$2 sm:$0xff]
      %s4701 = scalar_lea.vmem [#allocation2], 336
      %v4702 = vld [vmem:[%s4701] ss:$2 sm:$0xff]
      %s4703 = scalar_lea.vmem [#allocation2], 1
      %v4704 = vld [vmem:[%s4703] ss:$2 sm:$0xff]
      %s4705 = scalar_lea.vmem [#allocation2], 49
      %v4706 = vld [vmem:[%s4705] ss:$2 sm:$0xff]
      %s4707 = scalar_lea.vmem [#allocation2], 97
      %v4708 = vld [vmem:[%s4707] ss:$2 sm:$0xff]
      %s4709 = scalar_lea.vmem [#allocation2], 145
      %v4710 = vld [vmem:[%s4709] ss:$2 sm:$0xff]
      %s4711 = scalar_lea.vmem [#allocation2], 193
      %v4712 = vld [vmem:[%s4711] ss:$2 sm:$0xff]
      %s4713 = scalar_lea.vmem [#allocation2], 241
      %v4714 = vld [vmem:[%s4713] ss:$2 sm:$0xff]
      %s4715 = scalar_lea.vmem [#allocation2], 289
      %v4716 = vld [vmem:[%s4715] ss:$2 sm:$0xff]
      %s4717 = scalar_lea.vmem [#allocation2], 337
      %v4718 = vld [vmem:[%s4717] ss:$2 sm:$0xff]
      %s4719 = scalar_lea.vmem [#allocation2], 2
      %v4720 = vld [vmem:[%s4719] ss:$2 sm:$0xff]
      %s4721 = scalar_lea.vmem [#allocation2], 50
      %v4722 = vld [vmem:[%s4721] ss:$2 sm:$0xff]
      %s4723 = scalar_lea.vmem [#allocation2], 98
      %v4724 = vld [vmem:[%s4723] ss:$2 sm:$0xff]
      %s4725 = scalar_lea.vmem [#allocation2], 146
      %v4726 = vld [vmem:[%s4725] ss:$2 sm:$0xff]
      %s4727 = scalar_lea.vmem [#allocation2], 194
      %v4728 = vld [vmem:[%s4727] ss:$2 sm:$0xff]
      %s4729 = scalar_lea.vmem [#allocation2], 242
      %v4730 = vld [vmem:[%s4729] ss:$2 sm:$0xff]
      %s4731 = scalar_lea.vmem [#allocation2], 290
      %v4732 = vld [vmem:[%s4731] ss:$2 sm:$0xff]
      %s4733 = scalar_lea.vmem [#allocation2], 338
      %v4734 = vld [vmem:[%s4733] ss:$2 sm:$0xff]
      %v4735 = vld [vmem:[%s474] ss:$2 sm:$0xff]
      %s4736 = scalar_lea.vmem %s474, 48 [#allocation2]
      %v4737 = vld [vmem:[%s4736] ss:$2 sm:$0xff]
      %s4738 = scalar_lea.vmem %s474, 96 [#allocation2]
      %v4739 = vld [vmem:[%s4738] ss:$2 sm:$0xff]
      %s4740 = scalar_lea.vmem %s474, 144 [#allocation2]
      %v4741 = vld [vmem:[%s4740] ss:$2 sm:$0xff]
      %s4742 = scalar_lea.vmem %s474, 192 [#allocation2]
      %v4743 = vld [vmem:[%s4742] ss:$2 sm:$0xff]
      %s4744 = scalar_lea.vmem %s474, 240 [#allocation2]
      %v4745 = vld [vmem:[%s4744] ss:$2 sm:$0xff]
      %s4746 = scalar_lea.vmem %s474, 288 [#allocation2]
      %v4747 = vld [vmem:[%s4746] ss:$2 sm:$0xff]
      %s4748 = scalar_lea.vmem %s474, 336 [#allocation2]
      %v4749 = vld [vmem:[%s4748] ss:$2 sm:$0xff]
      %s4750 = scalar_lea.vmem %s474, 1 [#allocation2]
      %v4751 = vld [vmem:[%s4750] ss:$2 sm:$0xff]
      %s4752 = scalar_lea.vmem %s474, 49 [#allocation2]
      %v4753 = vld [vmem:[%s4752] ss:$2 sm:$0xff]
      %s4754 = scalar_lea.vmem %s474, 97 [#allocation2]
      %v4755 = vld [vmem:[%s4754] ss:$2 sm:$0xff]
      %s4756 = scalar_lea.vmem %s474, 145 [#allocation2]
      %v4757 = vld [vmem:[%s4756] ss:$2 sm:$0xff]
      %s4758 = scalar_lea.vmem %s474, 193 [#allocation2]
      %v4759 = vld [vmem:[%s4758] ss:$2 sm:$0xff]
      %s4760 = scalar_lea.vmem %s474, 241 [#allocation2]
      %v4761 = vld [vmem:[%s4760] ss:$2 sm:$0xff]
      %s4762 = scalar_lea.vmem %s474, 289 [#allocation2]
      %v4763 = vld [vmem:[%s4762] ss:$2 sm:$0xff]
      %s4764 = scalar_lea.vmem %s474, 337 [#allocation2]
      %v4765 = vld [vmem:[%s4764] ss:$2 sm:$0xff]
      %s4766 = scalar_lea.vmem %s474, 2 [#allocation2]
      %v4767 = vld [vmem:[%s4766] ss:$2 sm:$0xff]
      %s4768 = scalar_lea.vmem %s474, 50 [#allocation2]
      %v4769 = vld [vmem:[%s4768] ss:$2 sm:$0xff]
      %s4770 = scalar_lea.vmem %s474, 98 [#allocation2]
      %v4771 = vld [vmem:[%s4770] ss:$2 sm:$0xff]
      %s4772 = scalar_lea.vmem %s474, 146 [#allocation2]
      %v4773 = vld [vmem:[%s4772] ss:$2 sm:$0xff]
      %s4774 = scalar_lea.vmem %s474, 194 [#allocation2]
      %v4775 = vld [vmem:[%s4774] ss:$2 sm:$0xff]
      %s4776 = scalar_lea.vmem %s474, 242 [#allocation2]
      %v4777 = vld [vmem:[%s4776] ss:$2 sm:$0xff]
      %s4778 = scalar_lea.vmem %s474, 290 [#allocation2]
      %v4779 = vld [vmem:[%s4778] ss:$2 sm:$0xff]
      %s4780 = scalar_lea.vmem %s474, 338 [#allocation2]
      %v4781 = vld [vmem:[%s4780] ss:$2 sm:$0xff]
      %v4782 = vld [vmem:[%s700] ss:$2 sm:$0xff]
      %s4783 = scalar_lea.vmem %s700, 48 [#allocation2]
      %v4784 = vld [vmem:[%s4783] ss:$2 sm:$0xff]
      %s4785 = scalar_lea.vmem %s700, 96 [#allocation2]
      %v4786 = vld [vmem:[%s4785] ss:$2 sm:$0xff]
      %s4787 = scalar_lea.vmem %s700, 144 [#allocation2]
      %v4788 = vld [vmem:[%s4787] ss:$2 sm:$0xff]
      %s4789 = scalar_lea.vmem %s700, 192 [#allocation2]
      %v4790 = vld [vmem:[%s4789] ss:$2 sm:$0xff]
      %s4791 = scalar_lea.vmem %s700, 240 [#allocation2]
      %v4792 = vld [vmem:[%s4791] ss:$2 sm:$0xff]
      %s4793 = scalar_lea.vmem %s700, 288 [#allocation2]
      %v4794 = vld [vmem:[%s4793] ss:$2 sm:$0xff]
      %s4795 = scalar_lea.vmem %s700, 336 [#allocation2]
      %v4796 = vld [vmem:[%s4795] ss:$2 sm:$0xff]
      %s4797 = scalar_lea.vmem %s700, 1 [#allocation2]
      %v4798 = vld [vmem:[%s4797] ss:$2 sm:$0xff]
      %s4799 = scalar_lea.vmem %s700, 49 [#allocation2]
      %v4800 = vld [vmem:[%s4799] ss:$2 sm:$0xff]
      %s4801 = scalar_lea.vmem %s700, 97 [#allocation2]
      %v4802 = vld [vmem:[%s4801] ss:$2 sm:$0xff]
      %s4803 = scalar_lea.vmem %s700, 145 [#allocation2]
      %v4804 = vld [vmem:[%s4803] ss:$2 sm:$0xff]
      %s4805 = scalar_lea.vmem %s700, 193 [#allocation2]
      %v4806 = vld [vmem:[%s4805] ss:$2 sm:$0xff]
      %s4807 = scalar_lea.vmem %s700, 241 [#allocation2]
      %v4808 = vld [vmem:[%s4807] ss:$2 sm:$0xff]
      %s4809 = scalar_lea.vmem %s700, 289 [#allocation2]
      %v4810 = vld [vmem:[%s4809] ss:$2 sm:$0xff]
      %s4811 = scalar_lea.vmem %s700, 337 [#allocation2]
      %v4812 = vld [vmem:[%s4811] ss:$2 sm:$0xff]
      %s4813 = scalar_lea.vmem %s700, 2 [#allocation2]
      %v4814 = vld [vmem:[%s4813] ss:$2 sm:$0xff]
      %s4815 = scalar_lea.vmem %s700, 50 [#allocation2]
      %v4816 = vld [vmem:[%s4815] ss:$2 sm:$0xff]
      %s4817 = scalar_lea.vmem %s700, 98 [#allocation2]
      %v4818 = vld [vmem:[%s4817] ss:$2 sm:$0xff]
      %s4819 = scalar_lea.vmem %s700, 146 [#allocation2]
      %v4820 = vld [vmem:[%s4819] ss:$2 sm:$0xff]
      %s4821 = scalar_lea.vmem %s700, 194 [#allocation2]
      %v4822 = vld [vmem:[%s4821] ss:$2 sm:$0xff]
      %s4823 = scalar_lea.vmem %s700, 242 [#allocation2]
      %v4824 = vld [vmem:[%s4823] ss:$2 sm:$0xff]
      %s4825 = scalar_lea.vmem %s700, 290 [#allocation2]
      %v4826 = vld [vmem:[%s4825] ss:$2 sm:$0xff]
      %s4827 = scalar_lea.vmem %s700, 338 [#allocation2]
      %v4828 = vld [vmem:[%s4827] ss:$2 sm:$0xff]
      %4837 = vrot.lane.b32.xlu0 %v4704, 16
      %v4838 = vpop.permute.xlu0 %4837
      %4839 = vrot.lane.b32.xlu0 %v4706, 16
      %v4840 = vpop.permute.xlu0 %4839
      %4841 = vrot.lane.b32.xlu0 %v4708, 16
      %v4842 = vpop.permute.xlu0 %4841
      %4843 = vrot.lane.b32.xlu0 %v4710, 16
      %v4844 = vpop.permute.xlu0 %4843
      %4845 = vrot.lane.b32.xlu0 %v4712, 16
      %v4846 = vpop.permute.xlu0 %4845
      %4847 = vrot.lane.b32.xlu0 %v4714, 16
      %v4848 = vpop.permute.xlu0 %4847
      %4849 = vrot.lane.b32.xlu0 %v4716, 16
      %v4850 = vpop.permute.xlu0 %4849
      %4851 = vrot.lane.b32.xlu0 %v4718, 16
      %v4852 = vpop.permute.xlu0 %4851
      %4869 = vrot.lane.b32.xlu0 %v4720, 32
      %v4870 = vpop.permute.xlu0 %4869
      %4871 = vrot.lane.b32.xlu0 %v4722, 32
      %v4872 = vpop.permute.xlu0 %4871
      %4873 = vrot.lane.b32.xlu0 %v4724, 32
      %v4874 = vpop.permute.xlu0 %4873
      %4875 = vrot.lane.b32.xlu0 %v4726, 32
      %v4876 = vpop.permute.xlu0 %4875
      %4877 = vrot.lane.b32.xlu0 %v4728, 32
      %v4878 = vpop.permute.xlu0 %4877
      %4879 = vrot.lane.b32.xlu0 %v4730, 32
      %v4880 = vpop.permute.xlu0 %4879
      %4881 = vrot.lane.b32.xlu0 %v4732, 32
      %v4882 = vpop.permute.xlu0 %4881
      %4883 = vrot.lane.b32.xlu0 %v4734, 32
      %v4884 = vpop.permute.xlu0 %4883
      %4901 = vrot.lane.b32.xlu0 %v4735, 48
      %v4902 = vpop.permute.xlu0 %4901
      %4903 = vrot.lane.b32.xlu0 %v4737, 48
      %v4904 = vpop.permute.xlu0 %4903
      %4905 = vrot.lane.b32.xlu0 %v4739, 48
      %v4906 = vpop.permute.xlu0 %4905
      %4907 = vrot.lane.b32.xlu0 %v4741, 48
      %v4908 = vpop.permute.xlu0 %4907
      %4909 = vrot.lane.b32.xlu0 %v4743, 48
      %v4910 = vpop.permute.xlu0 %4909
      %4911 = vrot.lane.b32.xlu0 %v4745, 48
      %v4912 = vpop.permute.xlu0 %4911
      %4913 = vrot.lane.b32.xlu0 %v4747, 48
      %v4914 = vpop.permute.xlu0 %4913
      %4915 = vrot.lane.b32.xlu0 %v4749, 48
      %v4916 = vpop.permute.xlu0 %4915
      %4933 = vrot.lane.b32.xlu0 %v4751, 64
      %v4934 = vpop.permute.xlu0 %4933
      %4935 = vrot.lane.b32.xlu0 %v4753, 64
      %v4936 = vpop.permute.xlu0 %4935
      %4937 = vrot.lane.b32.xlu0 %v4755, 64
      %v4938 = vpop.permute.xlu0 %4937
      %4939 = vrot.lane.b32.xlu0 %v4757, 64
      %v4940 = vpop.permute.xlu0 %4939
      %4941 = vrot.lane.b32.xlu0 %v4759, 64
      %v4942 = vpop.permute.xlu0 %4941
      %4943 = vrot.lane.b32.xlu0 %v4761, 64
      %v4944 = vpop.permute.xlu0 %4943
      %4945 = vrot.lane.b32.xlu0 %v4763, 64
      %v4946 = vpop.permute.xlu0 %4945
      %4947 = vrot.lane.b32.xlu0 %v4765, 64
      %v4948 = vpop.permute.xlu0 %4947
      %4965 = vrot.lane.b32.xlu0 %v4767, 80
      %v4966 = vpop.permute.xlu0 %4965
      %4967 = vrot.lane.b32.xlu0 %v4769, 80
      %v4968 = vpop.permute.xlu0 %4967
      %4969 = vrot.lane.b32.xlu0 %v4771, 80
      %v4970 = vpop.permute.xlu0 %4969
      %4971 = vrot.lane.b32.xlu0 %v4773, 80
      %v4972 = vpop.permute.xlu0 %4971
      %4973 = vrot.lane.b32.xlu0 %v4775, 80
      %v4974 = vpop.permute.xlu0 %4973
      %4975 = vrot.lane.b32.xlu0 %v4777, 80
      %v4976 = vpop.permute.xlu0 %4975
      %4977 = vrot.lane.b32.xlu0 %v4779, 80
      %v4978 = vpop.permute.xlu0 %4977
      %4979 = vrot.lane.b32.xlu0 %v4781, 80
      %v4980 = vpop.permute.xlu0 %4979
      %4997 = vrot.lane.b32.xlu0 %v4782, 96
      %v4998 = vpop.permute.xlu0 %4997
      %4999 = vrot.lane.b32.xlu0 %v4784, 96
      %v5000 = vpop.permute.xlu0 %4999
      %5001 = vrot.lane.b32.xlu0 %v4786, 96
      %v5002 = vpop.permute.xlu0 %5001
      %5003 = vrot.lane.b32.xlu0 %v4788, 96
      %v5004 = vpop.permute.xlu0 %5003
      %5005 = vrot.lane.b32.xlu0 %v4790, 96
      %v5006 = vpop.permute.xlu0 %5005
      %5007 = vrot.lane.b32.xlu0 %v4792, 96
      %v5008 = vpop.permute.xlu0 %5007
      %5009 = vrot.lane.b32.xlu0 %v4794, 96
      %v5010 = vpop.permute.xlu0 %5009
      %5011 = vrot.lane.b32.xlu0 %v4796, 96
      %v5012 = vpop.permute.xlu0 %5011
      %5029 = vrot.lane.b32.xlu0 %v4798, 112
      %v5030 = vpop.permute.xlu0 %5029
      %5031 = vrot.lane.b32.xlu0 %v4800, 112
      %v5032 = vpop.permute.xlu0 %5031
      %5033 = vrot.lane.b32.xlu0 %v4802, 112
      %v5034 = vpop.permute.xlu0 %5033
      %5035 = vrot.lane.b32.xlu0 %v4804, 112
      %v5036 = vpop.permute.xlu0 %5035
      %5037 = vrot.lane.b32.xlu0 %v4806, 112
      %v5038 = vpop.permute.xlu0 %5037
      %5039 = vrot.lane.b32.xlu0 %v4808, 112
      %v5040 = vpop.permute.xlu0 %5039
      %5041 = vrot.lane.b32.xlu0 %v4810, 112
      %v5042 = vpop.permute.xlu0 %5041
      %5043 = vrot.lane.b32.xlu0 %v4812, 112
      %v5044 = vpop.permute.xlu0 %5043
      %v5053 = vsel %vm360, %v4688, %v4838
      %v5054 = vsel %vm360, %v4690, %v4840
      %v5055 = vsel %vm360, %v4692, %v4842
      %v5056 = vsel %vm360, %v4694, %v4844
      %v5057 = vsel %vm360, %v4696, %v4846
      %v5058 = vsel %vm360, %v4698, %v4848
      %v5059 = vsel %vm360, %v4700, %v4850
      %v5060 = vsel %vm360, %v4702, %v4852
      %v5061 = vsel %vm2050, %v5053, %v4870
      %v5062 = vsel %vm2050, %v5054, %v4872
      %v5063 = vsel %vm2050, %v5055, %v4874
      %v5064 = vsel %vm2050, %v5056, %v4876
      %v5065 = vsel %vm2050, %v5057, %v4878
      %v5066 = vsel %vm2050, %v5058, %v4880
      %v5067 = vsel %vm2050, %v5059, %v4882
      %v5068 = vsel %vm2050, %v5060, %v4884
      %v5069 = vsel %vm4074, %v5061, %v4902
      %v5070 = vsel %vm4074, %v5062, %v4904
      %v5071 = vsel %vm4074, %v5063, %v4906
      %v5072 = vsel %vm4074, %v5064, %v4908
      %v5073 = vsel %vm4074, %v5065, %v4910
      %v5074 = vsel %vm4074, %v5066, %v4912
      %v5075 = vsel %vm4074, %v5067, %v4914
      %v5076 = vsel %vm4074, %v5068, %v4916
      %v5077 = vsel %vm4140, %v5069, %v4934
      %v5078 = vsel %vm4140, %v5070, %v4936
      %v5079 = vsel %vm4140, %v5071, %v4938
      %v5080 = vsel %vm4140, %v5072, %v4940
      %v5081 = vsel %vm4140, %v5073, %v4942
      %v5082 = vsel %vm4140, %v5074, %v4944
      %v5083 = vsel %vm4140, %v5075, %v4946
      %v5084 = vsel %vm4140, %v5076, %v4948
      %vm5085 = vcmask 654336
      %v5086 = vsel %vm5085, %v5077, %v4966
      %v5087 = vsel %vm5085, %v5078, %v4968
      %v5088 = vsel %vm5085, %v5079, %v4970
      %v5089 = vsel %vm5085, %v5080, %v4972
      %v5090 = vsel %vm5085, %v5081, %v4974
      %v5091 = vsel %vm5085, %v5082, %v4976
      %v5092 = vsel %vm5085, %v5083, %v4978
      %v5093 = vsel %vm5085, %v5084, %v4980
      %vm5094 = vcmask 785408
      %v5095 = vsel %vm5094, %v5086, %v4998
      %v5096 = vsel %vm5094, %v5087, %v5000
      %v5097 = vsel %vm5094, %v5088, %v5002
      %v5098 = vsel %vm5094, %v5089, %v5004
      %v5099 = vsel %vm5094, %v5090, %v5006
      %v5100 = vsel %vm5094, %v5091, %v5008
      %v5101 = vsel %vm5094, %v5092, %v5010
      %v5102 = vsel %vm5094, %v5093, %v5012
      %vm5103 = vcmask 916480
      %v5104 = vsel %vm5103, %v5095, %v5030
      %v5105 = vsel %vm5103, %v5096, %v5032
      %v5106 = vsel %vm5103, %v5097, %v5034
      %v5107 = vsel %vm5103, %v5098, %v5036
      %v5108 = vsel %vm5103, %v5099, %v5038
      %v5109 = vsel %vm5103, %v5100, %v5040
      %v5110 = vsel %vm5103, %v5101, %v5042
      %v5111 = vsel %vm5103, %v5102, %v5044
      %v5112 = vld [vmem:[%s7] sm:$0xff]
      %v5113 = vld [vmem:[%s7 + $0x8] sm:$0xff]
      %v5114 = vld [vmem:[%s7 + $0x10] sm:$0xff]
      %v5115 = vld [vmem:[%s7 + $0x18] sm:$0xff]
      %v5116 = vld [vmem:[%s7 + $0x20] sm:$0xff]
      %v5117 = vld [vmem:[%s7 + $0x28] sm:$0xff]
      %v5118 = vld [vmem:[%s7 + $0x30] sm:$0xff]
      %v5119 = vld [vmem:[%s7 + $0x38] sm:$0xff]
      %v5120 = vld [vmem:[%s7 + $0x40] sm:$0xff]
      %v5121 = vld [vmem:[%s7 + $0x48] sm:$0xff]
      %v5122 = vld [vmem:[%s7 + $0x50] sm:$0xff]
      %v5123 = vld [vmem:[%s7 + $0x58] sm:$0xff]
      %v5124 = vld [vmem:[%s7 + $0x60] sm:$0xff]
      %v5125 = vld [vmem:[%s7 + $0x68] sm:$0xff]
      %v5126 = vld [vmem:[%s7 + $0x70] sm:$0xff]
      %v5127 = vld [vmem:[%s7 + $0x78] sm:$0xff]
      %v5128 = vld [vmem:[%s7 + $0x80] sm:$0xff]
      %v5129 = vld [vmem:[%s7 + $0x88] sm:$0xff]
      %v5131 = vsel %vm360, %v4814, 0
      %v5134 = vsel %vm360, %v4816, 0
      %v5137 = vsel %vm360, %v4818, 0
      %v5140 = vsel %vm360, %v4820, 0
      %v5143 = vsel %vm360, %v4822, 0
      %v5146 = vsel %vm360, %v4824, 0
      %v5149 = vsel %vm360, %v4826, 0
      %v5152 = vsel %vm360, %v4828, 0
      %5154 = vmatprep.subr.mxu0 0.0
      %5155 = vmatpush1.msra.mxu0 %v5127
      %5156 = vmatprep.subr.mxu0 0.0
      %5157 = vmatpush1.msra.mxu0 %v5126
      %5158 = vmatprep.subr.mxu0 0.0
      %5159 = vmatpush1.msra.mxu0 %v5125
      %5160 = vmatprep.subr.mxu0 0.0
      %5161 = vmatpush1.msra.mxu0 %v5124
      %5162 = vmatprep.subr.mxu0 0.0
      %5163 = vmatpush1.msra.mxu0 %v5123
      %5164 = vmatprep.subr.mxu0 0.0
      %5165 = vmatpush1.msra.mxu0 %v5122
      %5166 = vmatprep.subr.mxu0 0.0
      %5167 = vmatpush1.msra.mxu0 %v5121
      %5168 = vmatprep.subr.mxu0 0.0
      %5169 = vmatpush1.msra.mxu0 %v5120
      %5170 = vmatprep.subr.mxu0 0.0
      %5171 = vmatpush1.msra.mxu0 %v5119
      %5172 = vmatprep.subr.mxu0 0.0
      %5173 = vmatpush1.msra.mxu0 %v5118
      %5174 = vmatprep.subr.mxu0 0.0
      %5175 = vmatpush1.msra.mxu0 %v5117
      %5176 = vmatprep.subr.mxu0 0.0
      %5177 = vmatpush1.msra.mxu0 %v5116
      %5178 = vmatprep.subr.mxu0 0.0
      %5179 = vmatpush1.msra.mxu0 %v5115
      %5180 = vmatprep.subr.mxu0 0.0
      %5181 = vmatpush1.msra.mxu0 %v5114
      %5182 = vmatprep.subr.mxu0 0.0
      %5183 = vmatpush1.msra.mxu0 %v5113
      %5184 = vmatprep.subr.mxu0 0.0
      %5185 = vmatpush1.msra.mxu0 %v5112
      %5186 = vmatprep.subr.mxu0 0.0
      %5187 = vmatpush2.msra.mxu0 0.0
      %5188 = vmatprep.subr.mxu0 0.0
      %5189 = vmatpush2.msra.mxu0 0.0
      %5190 = vmatprep.subr.mxu0 0.0
      %5191 = vmatpush2.msra.mxu0 0.0
      %5192 = vmatprep.subr.mxu0 0.0
      %5193 = vmatpush2.msra.mxu0 0.0
      %5194 = vmatprep.subr.mxu0 0.0
      %5195 = vmatpush2.msra.mxu0 0.0
      %5196 = vmatprep.subr.mxu0 0.0
      %5197 = vmatpush2.msra.mxu0 0.0
      %5198 = vmatprep.subr.mxu0 0.0
      %5199 = vmatpush2.msra.mxu0 0.0
      %5200 = vmatprep.subr.mxu0 0.0
      %5201 = vmatpush2.msra.mxu0 0.0
      %5202 = vmatprep.subr.mxu0 0.0
      %5203 = vmatpush2.msra.mxu0 0.0
      %5204 = vmatprep.subr.mxu0 0.0
      %5205 = vmatpush2.msra.mxu0 0.0
      %5206 = vmatprep.subr.mxu0 0.0
      %5207 = vmatpush2.msra.mxu0 0.0
      %5208 = vmatprep.subr.mxu0 0.0
      %5209 = vmatpush2.msra.mxu0 0.0
      %5210 = vmatprep.subr.mxu0 0.0
      %5211 = vmatpush2.msra.mxu0 0.0
      %5212 = vmatprep.subr.mxu0 0.0
      %5213 = vmatpush2.msra.mxu0 0.0
      %5214 = vmatprep.subr.mxu0 0.0
      %5215 = vmatpush2.msra.mxu0 %v5129
      %5216 = vmatprep.subr.mxu0 0.0
      %5217 = vmatpush2.msra.mxu0 %v5128
      %5218 = vmatprep.mubr.f32.mxu0 %v5131
      %5219 = vmatmul.mubr.f32.gmra.mxu0 %v5104
      %v5220 = vpop.f32.mrf.mxu0
      %v5221 = vadd.f32 0.0, %v5220
      %v5222 = vpop.f32.mrf.mxu0
      %5223 = vmatprep.mubr.f32.mxu0 %v5134
      %5224 = vmatmul.mubr.f32.gmra.mxu0 %v5105
      %v5225 = vpop.f32.mrf.mxu0
      %v5226 = vadd.f32 0.0, %v5225
      %v5227 = vpop.f32.mrf.mxu0
      %5228 = vmatprep.mubr.f32.mxu0 %v5137
      %5229 = vmatmul.mubr.f32.gmra.mxu0 %v5106
      %v5230 = vpop.f32.mrf.mxu0
      %v5231 = vadd.f32 0.0, %v5230
      %v5232 = vpop.f32.mrf.mxu0
      %5233 = vmatprep.mubr.f32.mxu0 %v5140
      %5234 = vmatmul.mubr.f32.gmra.mxu0 %v5107
      %v5235 = vpop.f32.mrf.mxu0
      %v5236 = vadd.f32 0.0, %v5235
      %v5237 = vpop.f32.mrf.mxu0
      %5238 = vmatprep.mubr.f32.mxu0 %v5143
      %5239 = vmatmul.mubr.f32.gmra.mxu0 %v5108
      %v5240 = vpop.f32.mrf.mxu0
      %v5241 = vadd.f32 0.0, %v5240
      %v5242 = vpop.f32.mrf.mxu0
      %5243 = vmatprep.mubr.f32.mxu0 %v5146
      %5244 = vmatmul.mubr.f32.gmra.mxu0 %v5109
      %v5245 = vpop.f32.mrf.mxu0
      %v5246 = vadd.f32 0.0, %v5245
      %v5247 = vpop.f32.mrf.mxu0
      %5248 = vmatprep.mubr.f32.mxu0 %v5149
      %5249 = vmatmul.mubr.f32.gmra.mxu0 %v5110
      %v5250 = vpop.f32.mrf.mxu0
      %v5251 = vadd.f32 0.0, %v5250
      %v5252 = vpop.f32.mrf.mxu0
      %5253 = vmatprep.mubr.f32.mxu0 %v5152
      %5254 = vmatmul.mubr.f32.gmra.mxu0 %v5111
      %v5255 = vpop.f32.mrf.mxu0
      %v5256 = vadd.f32 0.0, %v5255
      %v5257 = vpop.f32.mrf.mxu0
      %5258 = vdwg.mxu0
      %v5259 = vld [vmem:[%s8] sm:$0x1]
      %v5261 = vlaneseq
      %v5262 = vshrl.u32 %v5261, 7
      %v5263 = vsub.s32 0, %v5262
      %v5264 = vrot.slane %v5259, %v5263
      %v5266 = vmul.f32 %v5221, %v5264
      %v5267 = vmul.f32 %v5226, %v5264
      %v5268 = vmul.f32 %v5231, %v5264
      %v5269 = vmul.f32 %v5236, %v5264
      %v5270 = vmul.f32 %v5241, %v5264
      %v5271 = vmul.f32 %v5246, %v5264
      %v5272 = vmul.f32 %v5251, %v5264
      %v5273 = vmul.f32 %v5256, %v5264
      %v5274 = vld [vmem:[%s9] sm:$0x1]
      %v5276 = vlaneseq
      %v5277 = vshrl.u32 %v5276, 7
      %v5278 = vsub.s32 0, %v5277
      %v5279 = vrot.slane %v5274, %v5278
      %v5281 = vadd.f32 %v5266, %v5279
      %v5282 = vadd.f32 %v5267, %v5279
      %v5283 = vadd.f32 %v5268, %v5279
      %v5284 = vadd.f32 %v5269, %v5279
      %v5285 = vadd.f32 %v5270, %v5279
      %v5286 = vadd.f32 %v5271, %v5279
      %v5287 = vadd.f32 %v5272, %v5279
      %v5288 = vadd.f32 %v5273, %v5279
      %v5289 = vmax.f32 %v5281, 0.0
      %v5290 = vmax.f32 %v5282, 0.0
      %v5291 = vmax.f32 %v5283, 0.0
      %v5292 = vmax.f32 %v5284, 0.0
      %v5293 = vmax.f32 %v5285, 0.0
      %v5294 = vmax.f32 %v5286, 0.0
      %v5295 = vmax.f32 %v5287, 0.0
      %v5296 = vmax.f32 %v5288, 0.0
      %5297 = vxpose.xlu0.b32.start [1/16] %v5289, 128
      %5298 = vxpose.xlu0.b32.cont [2/16] %v5290, 128
      %5299 = vxpose.xlu0.b32.cont [3/16] %v5291, 128
      %5300 = vxpose.xlu0.b32.cont [4/16] %v5292, 128
      %5301 = vxpose.xlu0.b32.cont [5/16] %v5293, 128
      %5302 = vxpose.xlu0.b32.cont [6/16] %v5294, 128
      %5303 = vxpose.xlu0.b32.cont [7/16] %v5295, 128
      %5304 = vxpose.xlu0.b32.cont [8/16] %v5296, 128
      %5305 = vxpose.xlu0.b32.cont [9/16] 0.0, 128
      %5306 = vxpose.xlu0.b32.cont [10/16] 0.0, 128
      %5307 = vxpose.xlu0.b32.cont [11/16] 0.0, 128
      %5308 = vxpose.xlu0.b32.cont [12/16] 0.0, 128
      %5309 = vxpose.xlu0.b32.cont [13/16] 0.0, 128
      %5310 = vxpose.xlu0.b32.cont [14/16] 0.0, 128
      %5311 = vxpose.xlu0.b32.cont [15/16] 0.0, 128
      %5312 = vxpose.xlu0.b32.end [16/16] 0.0, 128
      %v5313 = vpop.trf.xlu0
      %v5314 = vpop.trf.xlu0
      %v5315 = vpop.trf.xlu0
      %v5316 = vpop.trf.xlu0
      %v5317 = vpop.trf.xlu0
      %v5318 = vpop.trf.xlu0
      %v5319 = vpop.trf.xlu0
      %v5320 = vpop.trf.xlu0
      %v5321 = vpop.trf.xlu0
      %v5322 = vpop.trf.xlu0
      %v5323 = vpop.trf.xlu0
      %v5324 = vpop.trf.xlu0
      %v5325 = vpop.trf.xlu0
      %v5326 = vpop.trf.xlu0
      %v5327 = vpop.trf.xlu0
      %v5328 = vpop.trf.xlu0
      %5329 = vst.msk [vmem:[%s359] sm:$0xff] %vm4140, %v5313
      %5330 = vst.msk [vmem:[%s359 + $0x8] sm:$0xff] %vm4140, %v5314
      %p5331 = scmp.lt.s32.totalorder %s21, 1
      %s5332 = scalar_select %p5331, %s21, 1
      %s5333 = smul.addr %s5332, 2
      %s5334 = smul.addr %s5333, 8
      %s5335 = scalar_lea.vmem %s10, %s5334
      // Predicated region
      $region61: #{encoder_forward.1} parent=59 // pred_check
        %p5336 = pneg %p254
      $region62: #{encoder_forward.1} parent=59 // pred_check_branch
        %5338 = sbr.rel (%p5336) target = $region64
      $region63: #{encoder_forward.1} parent=59 // pred_region
        _
      $region64: #{encoder_forward.1} parent=59 // pred_fallthru
        _
    $region60: #{encoder_forward.1} parent=5 // pred_fallthru
      _
    %p5339 = scmp.le.s32.totalorder 2, %s16
    // Predicated region
    $region65: #{encoder_forward.1} parent=5 // pred_check
      %p5340 = pneg %p5339
    $region66: #{encoder_forward.1} parent=5 // pred_check_branch
      %5342 = sbr.rel (%p5340) target = $region68
    $region67: #{encoder_forward.1} parent=5 // pred_region
      %s5343 = ssub.s32 %s16, 2
      // Predicated region
      $region69: #{encoder_forward.1} parent=67 // pred_check
        %p5344 = pneg %p260
      $region70: #{encoder_forward.1} parent=67 // pred_check_branch
        %5346 = sbr.rel (%p5344) target = $region72
      $region71: #{encoder_forward.1} parent=67 // pred_region
        %p5347 = scmp.lt.s32.totalorder %s22, 1
        %s5348 = scalar_select %p5347, %s22, 1
        %s5349 = smul.addr %s5348, 2
        %s5350 = smul.addr %s5349, 8
        %s5351 = scalar_lea.vmem %s10, %s5350
      $region72: #{encoder_forward.1} parent=67 // pred_fallthru
        _
    $region68: #{encoder_forward.1} parent=5 // pred_fallthru
      _
  $region6: #{encoder_forward.1} parent=0 // loop_footer
    %s20 = sadd.s32 1, %s16
  $region7: #{encoder_forward.1} parent=0 // loop_footer_branch
    %15 = sbr.rel target = $region3
  $region8: #{encoder_forward.1} parent=0 // loop_exit
    _

</llo_original>
